<compile_context>
chip_gen: v7x
topology: tpu7x:2x2x1
jax: 0.10.0
libtpu: 0.0.40
codegen_flags: <defaults>
</compile_context>

<pallas_src>
import jax
import jax.numpy as jnp
from jax.experimental import pallas as pl
from jax.experimental.pallas import tpu as pltpu


# ----------------------------------------------------------------- helpers

def _round_up(x, m):
    return (x + m - 1) // m * m


def _h_tile(h_out, w_out, target_rows=2048):
    """Output-row tile height: divides h_out, keeps (tile*w_out) % 8 == 0."""
    th = max(1, min(h_out, max(1, target_rows // max(1, w_out))))
    while th > 1 and (h_out % th or (th * w_out) % 8):
        th -= 1
    return th


def _row_tile(m, target=1024):
    """Row tile for the flat [M, C] normalize pass (always divides m)."""
    if m <= target:
        return m
    for t in range(target, 7, -1):
        if m % t == 0 and t % 8 == 0:
            return t
    return m


# ----------------------------------------------------------------- kernels

def _make_conv_stats_kernel(ksize, stride, th, w_out, cpad):
    """Conv (ksize x ksize, given stride) as K*K shifted matmuls, plus fused
    per-channel sum / sum-of-squares (BatchNorm batch statistics)."""
    s = stride
    nphase = s * s
    rows = th * w_out

    def kernel(*refs):
        phase_refs = refs[:nphase]
        w_ref = refs[nphase]
        y_ref, sum_ref, ssq_ref = refs[nphase + 1:nphase + 4]
        sum_scr, ssq_scr = refs[nphase + 4:nphase + 6]

        ht = pl.program_id(1)
        h0 = ht * th

        acc = jnp.zeros((rows, cpad), jnp.float32)
        for kh in range(ksize):
            for kw in range(ksize):
                pref = phase_refs[(kh % s) * s + (kw % s)]
                # [th, w_out, cpad] bf16 slab for this tap (unit-stride slices).
                slab = pref[0, pl.ds(h0 + kh // s, th),
                            pl.ds(kw // s, w_out), :]
                # Widen before the (th, w_out, C) -> (th*w_out, C) collapse so the
                # reshape is f32 tile-aligned, then feed the MXU in bf16.
                slab2 = slab.astype(jnp.float32).reshape(rows, cpad)
                acc = acc + jnp.dot(slab2.astype(jnp.bfloat16),
                                    w_ref[kh * ksize + kw],
                                    preferred_element_type=jnp.float32)
        y_ref[...] = acc

        # BatchNorm batch statistics, accumulated across the whole grid.
        @pl.when(jnp.logical_and(pl.program_id(0) == 0, ht == 0))
        def _init():
            sum_scr[...] = jnp.zeros_like(sum_scr)
            ssq_scr[...] = jnp.zeros_like(ssq_scr)

        sum_scr[...] += jnp.sum(acc, axis=0, keepdims=True)
        ssq_scr[...] += jnp.sum(acc * acc, axis=0, keepdims=True)
        sum_ref[...] = sum_scr[...]
        ssq_ref[...] = ssq_scr[...]

    return kernel


def _make_norm_act_kernel(with_residual):
    """normalize (precomputed scale/shift) + LeakyReLU(0.1) (+ residual add)."""
    if with_residual:
        def kernel(y_ref, scale_ref, shift_ref, res_ref, o_ref):
            yn = y_ref[...] * scale_ref[...] + shift_ref[...]
            o_ref[...] = res_ref[...] + jnp.where(yn >= 0, yn, 0.1 * yn)
    else:
        def kernel(y_ref, scale_ref, shift_ref, o_ref):
            yn = y_ref[...] * scale_ref[...] + shift_ref[...]
            o_ref[...] = jnp.where(yn >= 0, yn, 0.1 * yn)
    return kernel


# ----------------------------------------------------------------- ConvBlock

def conv_block(x_nhwc, w_oihw, gamma, beta, *, stride, padding, cpad,
               residual=None):
    """Conv2d(bias=False) -> BatchNorm2d (batch stats) -> LeakyReLU(0.1).
    Input / output are NHWC with channels already zero-padded to `cpad`.
    Optionally fuses `residual + activation` into the normalize pass."""
    n, h, w, _ = x_nhwc.shape
    cout_r, cin_r, ksize, _ = w_oihw.shape
    s, p = stride, padding
    hp, wp = h + 2 * p, w + 2 * p
    h_out = (hp - ksize) // s + 1
    w_out = (wp - ksize) // s + 1
    m = n * h_out * w_out

    # ---- pass 1: conv (shifted matmuls) + fused BN sum / sumsq --------------
    xp = jnp.pad(x_nhwc, ((0, 0), (p, p), (p, p), (0, 0))).astype(jnp.bfloat16)

    hu = h_out + (ksize - 1) // s
    wu = w_out + (ksize - 1) // s
    phases = []
    for ph in range(s):
        for pw in range(s):
            xph = xp[:, ph::s, pw::s, :]
            hpad = max(0, hu - xph.shape[1])
            wpad = max(0, wu - xph.shape[2])
            if hpad or wpad:   # padded tail is never read; keeps shapes uniform
                xph = jnp.pad(xph, ((0, 0), (0, hpad), (0, wpad), (0, 0)))
            phases.append(xph[:, :hu, :wu, :])

    # Per-tap weights [K*K, cpad, cpad]; zero rows/cols cover the padded channels.
    w_t = jnp.transpose(w_oihw, (2, 3, 1, 0)).astype(jnp.bfloat16)
    w_taps = jnp.zeros((ksize * ksize, cpad, cpad), jnp.bfloat16)
    w_taps = w_taps.at[:, :cin_r, :cout_r].set(
        w_t.reshape(ksize * ksize, cin_r, cout_r))

    th = _h_tile(h_out, w_out)
    n_ht = h_out // th

    phase_spec = pl.BlockSpec((1, hu, wu, cpad), lambda i, t: (i, 0, 0, 0))
    y_flat, ssum, ssq = pl.pallas_call(
        _make_conv_stats_kernel(ksize, s, th, w_out, cpad),
        out_shape=(jax.ShapeDtypeStruct((m, cpad), jnp.float32),
                   jax.ShapeDtypeStruct((1, cpad), jnp.float32),
                   jax.ShapeDtypeStruct((1, cpad), jnp.float32)),
        grid_spec=pltpu.PrefetchScalarGridSpec(
            num_scalar_prefetch=0,
            grid=(n, n_ht),
            in_specs=[phase_spec] * (s * s) + [
                pl.BlockSpec((ksize * ksize, cpad, cpad),
                             lambda i, t: (0, 0, 0))],
            out_specs=[
                pl.BlockSpec((th * w_out, cpad), lambda i, t: (i * n_ht + t, 0)),
                pl.BlockSpec((1, cpad), lambda i, t: (0, 0)),
                pl.BlockSpec((1, cpad), lambda i, t: (0, 0)),
            ],
            scratch_shapes=[pltpu.VMEM((1, cpad), jnp.float32),
                            pltpu.VMEM((1, cpad), jnp.float32)]),
        compiler_params=pltpu.CompilerParams(
            dimension_semantics=("arbitrary", "arbitrary")),
    )(*phases, w_taps)

    # ---- BN scale / shift from the fused statistics (tiny per-channel math) -
    gpad = jnp.zeros((cpad,), jnp.float32).at[:cout_r].set(gamma.astype(jnp.float32))
    bpad = jnp.zeros((cpad,), jnp.float32).at[:cout_r].set(beta.astype(jnp.float32))
    mean = ssum[0] / m
    var = jnp.maximum(ssq[0] / m - mean * mean, 0.0)   # biased var (train mode)
    inv = jax.lax.rsqrt(var + 1e-5)
    scale = (gpad * inv).reshape(1, cpad)
    shift = (bpad - mean * gpad * inv).reshape(1, cpad)

    # ---- pass 2: normalize + LeakyReLU (+ fused residual add), tiled --------
    tm = _row_tile(m)
    row_spec = pl.BlockSpec((tm, cpad), lambda i: (i, 0))
    vec_spec = pl.BlockSpec((1, cpad), lambda i: (0, 0))
    args = [y_flat, scale, shift]
    in_specs = [row_spec, vec_spec, vec_spec]
    if residual is not None:
        args.append(residual.reshape(m, cpad))
        in_specs.append(row_spec)

    out_flat = pl.pallas_call(
        _make_norm_act_kernel(residual is not None),
        out_shape=jax.ShapeDtypeStruct((m, cpad), jnp.float32),
        grid_spec=pltpu.PrefetchScalarGridSpec(
            num_scalar_prefetch=0,
            grid=(m // tm,),
            in_specs=in_specs,
            out_specs=row_spec),
        compiler_params=pltpu.CompilerParams(
            dimension_semantics=("parallel",)),
    )(*args)

    return out_flat.reshape(n, h_out, w_out, cpad)


# --------------------------------------------------------------- full block

def residual_block_forward(x_nchw, params):
    """ResidualBlock.forward (training-mode BatchNorm).
    params = ((w, g, b)_downsample, (((w, g, b)_1x1, (w, g, b)_3x3), ...))."""
    down, units = params
    n, cin, h, w = x_nchw.shape

    chans = [cin, down[0].shape[0]]
    for u1, u2 in units:
        chans += [u1[0].shape[0], u2[0].shape[0]]
    cpad = _round_up(max(chans), 128)

    # Single layout change in: NCHW -> NHWC, channels zero-padded to lane width.
    x = jnp.transpose(x_nchw, (0, 2, 3, 1)).astype(jnp.float32)
    x = jnp.pad(x, ((0, 0), (0, 0), (0, 0), (0, cpad - cin)))

    w0, g0, b0 = down
    x = conv_block(x, w0, g0, b0, stride=2, padding=1, cpad=cpad)
    for (w1, g1, b1), (w2, g2, b2) in units:
        mid = conv_block(x, w1, g1, b1, stride=1, padding=0, cpad=cpad)
        x = conv_block(mid, w2, g2, b2, stride=1, padding=1, cpad=cpad,
                       residual=x)

    cout = down[0].shape[0]
    out = x[..., :cout]
    return jnp.transpose(out, (0, 3, 1, 2))   # back to NCHW once, at the end


# ----------------------------------------------------- pure-JAX reference

def _ref_conv_block(x, w, gamma, beta, stride, padding):
    # Mirrors the kernel numerics: bf16 conv operands, f32 accumulation, f32 BN.
    y = jax.lax.conv_general_dilated(
        x.astype(jnp.bfloat16), w.astype(jnp.bfloat16),
        window_strides=(stride, stride),
        padding=((padding, padding), (padding, padding)),
        dimension_numbers=("NCHW", "OIHW", "NCHW"),
        preferred_element_type=jnp.float32)
    mean = y.mean(axis=(0, 2, 3), keepdims=True)
    var = jnp.square(y - mean).mean(axis=(0, 2, 3), keepdims=True)
    yn = (y - mean) * jax.lax.rsqrt(var + 1e-5) * gamma.reshape(1, -1, 1, 1) \
        + beta.reshape(1, -1, 1, 1)
    return jnp.where(yn >= 0, yn, 0.1 * yn)


def reference(x, params):
    down, units = params
    w0, g0, b0 = down
    x = _ref_conv_block(x, w0, g0, b0, 2, 1)
    for (w1, g1, b1), (w2, g2, b2) in units:
        mid = _ref_conv_block(x, w1, g1, b1, 1, 0)
        x = x + _ref_conv_block(mid, w2, g2, b2, 1, 1)
    return x


if __name__ == "__main__":
    in_channels, n_units = 4, 2
    batch, height, width = 2, 16, 16
    c2 = in_channels * 2

    root = jax.random.PRNGKey(0)
    kx, kp = jax.random.split(root)
    x = jax.random.normal(kx, (batch, in_channels, height, width), jnp.float32)

    def make_cb(key, cout, cin, ksz):
        k1, k2, k3 = jax.random.split(key, 3)
        wgt = 0.1 * jax.random.normal(k1, (cout, cin, ksz, ksz), jnp.float32)
        gam = 1.0 + 0.1 * jax.random.normal(k2, (cout,), jnp.float32)
        bet = 0.05 * jax.random.normal(k3, (cout,), jnp.float32)
        return wgt, gam, bet

    keys = jax.random.split(kp, 1 + 2 * n_units)
    down = make_cb(keys[0], c2, in_channels, 3)
    units = tuple(
        (make_cb(keys[1 + 2 * i], c2 // 2, c2, 1),
         make_cb(keys[2 + 2 * i], c2, c2 // 2, 3))
        for i in range(n_units))
    params = (down, units)

    fwd = jax.jit(residual_block_forward)
    out = jax.block_until_ready(fwd(x, params))

    ref = jax.block_until_ready(reference(x, params))
    assert out.shape == (batch, c2, height // 2, width // 2), out.shape
    max_err = float(jnp.max(jnp.abs(out - ref)))
    assert jnp.allclose(out, ref, atol=5e-3, rtol=5e-3), f"max err {max_err}"
    print("KERNEL_OK")
</pallas_src>

<mosaic_0001>
module attributes {stable_mosaic.version = 11 : i64} {
  func.func @kernel(%arg0: i32, %arg1: i32, %arg2: memref<1x9x9x128xbf16, #tpu.memory_space<vmem>>, %arg3: memref<1x9x9x128xbf16, #tpu.memory_space<vmem>>, %arg4: memref<1x9x9x128xbf16, #tpu.memory_space<vmem>>, %arg5: memref<1x9x9x128xbf16, #tpu.memory_space<vmem>>, %arg6: memref<9x128x128xbf16, #tpu.memory_space<vmem>>, %arg7: memref<64x128xf32, #tpu.memory_space<vmem>>, %arg8: memref<1x128xf32, #tpu.memory_space<vmem>>, %arg9: memref<1x128xf32, #tpu.memory_space<vmem>>, %arg10: memref<1x128xf32, #tpu.memory_space<vmem>>, %arg11: memref<1x128xf32, #tpu.memory_space<vmem>>) attributes {dimension_semantics = [#tpu.dimension_semantics<arbitrary>, #tpu.dimension_semantics<arbitrary>], iteration_bounds = array<i64: 2, 1>, scalar_prefetch = 0 : i64, scratch_operands = 2 : i64, tpu.core_type = #tpu.core_type<tc>, window_params = [{transform_indices = @transform_0, window_bounds = array<i64: 1, 9, 9, 128>}, {transform_indices = @transform_1, window_bounds = array<i64: 1, 9, 9, 128>}, {transform_indices = @transform_2, window_bounds = array<i64: 1, 9, 9, 128>}, {transform_indices = @transform_3, window_bounds = array<i64: 1, 9, 9, 128>}, {pipeline_mode = #tpu.pipeline_mode<synchronous>, transform_indices = @transform_4, window_bounds = array<i64: 9, 128, 128>}, {transform_indices = @transform_5, window_bounds = array<i64: 64, 128>}, {pipeline_mode = #tpu.pipeline_mode<synchronous>, transform_indices = @transform_6, window_bounds = array<i64: 1, 128>}, {pipeline_mode = #tpu.pipeline_mode<synchronous>, transform_indices = @transform_7, window_bounds = array<i64: 1, 128>}]} {
    %c8_i32 = arith.constant 8 : i32
    %0 = arith.muli %arg1, %c8_i32 : i32
    %cst = arith.constant 0.000000e+00 : f32
    %1 = vector.broadcast %cst : f32 to vector<64x128xf32>
    %c0_i32 = arith.constant 0 : i32
    %2 = arith.addi %0, %c0_i32 : i32
    %c0 = arith.constant 0 : index
    %3 = arith.index_cast %2 : i32 to index
    %c0_0 = arith.constant 0 : index
    %c0_1 = arith.constant 0 : index
    %4 = vector.load %arg2[%c0, %3, %c0_0, %c0_1] : memref<1x9x9x128xbf16, #tpu.memory_space<vmem>>, vector<1x8x8x128xbf16>
    %5 = vector.shape_cast %4 : vector<1x8x8x128xbf16> to vector<8x8x128xbf16>
    %6 = arith.extf %5 : vector<8x8x128xbf16> to vector<8x8x128xf32>
    %7 = vector.shape_cast %6 : vector<8x8x128xf32> to vector<64x128xf32>
    %8 = arith.truncf %7 : vector<64x128xf32> to vector<64x128xbf16>
    %c0_2 = arith.constant 0 : index
    %c0_3 = arith.constant 0 : index
    %c0_4 = arith.constant 0 : index
    %9 = vector.load %arg6[%c0_2, %c0_3, %c0_4] : memref<9x128x128xbf16, #tpu.memory_space<vmem>>, vector<1x128x128xbf16>
    %10 = vector.shape_cast %9 : vector<1x128x128xbf16> to vector<128x128xbf16>
    %cst_5 = arith.constant dense<0.000000e+00> : vector<64x128xf32>
    %11 = tpu.matmul %8, %10, %cst_5 {dimension_numbers = #tpu.dot_dimension_numbers<[1], [0], [0], [1], [0, 0, 1, 1], [], []>} : vector<64x128xbf16>, vector<128x128xbf16>, vector<64x128xf32> -> vector<64x128xf32>
    %12 = arith.addf %1, %11 : vector<64x128xf32>
    %c0_i32_6 = arith.constant 0 : i32
    %13 = arith.addi %0, %c0_i32_6 : i32
    %c0_7 = arith.constant 0 : index
    %14 = arith.index_cast %13 : i32 to index
    %c0_8 = arith.constant 0 : index
    %c0_9 = arith.constant 0 : index
    %15 = vector.load %arg3[%c0_7, %14, %c0_8, %c0_9] : memref<1x9x9x128xbf16, #tpu.memory_space<vmem>>, vector<1x8x8x128xbf16>
    %16 = vector.shape_cast %15 : vector<1x8x8x128xbf16> to vector<8x8x128xbf16>
    %17 = arith.extf %16 : vector<8x8x128xbf16> to vector<8x8x128xf32>
    %18 = vector.shape_cast %17 : vector<8x8x128xf32> to vector<64x128xf32>
    %19 = arith.truncf %18 : vector<64x128xf32> to vector<64x128xbf16>
    %c1 = arith.constant 1 : index
    %c0_10 = arith.constant 0 : index
    %c0_11 = arith.constant 0 : index
    %20 = vector.load %arg6[%c1, %c0_10, %c0_11] : memref<9x128x128xbf16, #tpu.memory_space<vmem>>, vector<1x128x128xbf16>
    %21 = vector.shape_cast %20 : vector<1x128x128xbf16> to vector<128x128xbf16>
    %cst_12 = arith.constant dense<0.000000e+00> : vector<64x128xf32>
    %22 = tpu.matmul %19, %21, %cst_12 {dimension_numbers = #tpu.dot_dimension_numbers<[1], [0], [0], [1], [0, 0, 1, 1], [], []>} : vector<64x128xbf16>, vector<128x128xbf16>, vector<64x128xf32> -> vector<64x128xf32>
    %23 = arith.addf %12, %22 : vector<64x128xf32>
    %c0_i32_13 = arith.constant 0 : i32
    %24 = arith.addi %0, %c0_i32_13 : i32
    %c0_14 = arith.constant 0 : index
    %25 = arith.index_cast %24 : i32 to index
    %c1_15 = arith.constant 1 : index
    %c0_16 = arith.constant 0 : index
    %26 = vector.load %arg2[%c0_14, %25, %c1_15, %c0_16] : memref<1x9x9x128xbf16, #tpu.memory_space<vmem>>, vector<1x8x8x128xbf16>
    %27 = vector.shape_cast %26 : vector<1x8x8x128xbf16> to vector<8x8x128xbf16>
    %28 = arith.extf %27 : vector<8x8x128xbf16> to vector<8x8x128xf32>
    %29 = vector.shape_cast %28 : vector<8x8x128xf32> to vector<64x128xf32>
    %30 = arith.truncf %29 : vector<64x128xf32> to vector<64x128xbf16>
    %c2 = arith.constant 2 : index
    %c0_17 = arith.constant 0 : index
    %c0_18 = arith.constant 0 : index
    %31 = vector.load %arg6[%c2, %c0_17, %c0_18] : memref<9x128x128xbf16, #tpu.memory_space<vmem>>, vector<1x128x128xbf16>
    %32 = vector.shape_cast %31 : vector<1x128x128xbf16> to vector<128x128xbf16>
    %cst_19 = arith.constant dense<0.000000e+00> : vector<64x128xf32>
    %33 = tpu.matmul %30, %32, %cst_19 {dimension_numbers = #tpu.dot_dimension_numbers<[1], [0], [0], [1], [0, 0, 1, 1], [], []>} : vector<64x128xbf16>, vector<128x128xbf16>, vector<64x128xf32> -> vector<64x128xf32>
    %34 = arith.addf %23, %33 : vector<64x128xf32>
    %c0_i32_20 = arith.constant 0 : i32
    %35 = arith.addi %0, %c0_i32_20 : i32
    %c0_21 = arith.constant 0 : index
    %36 = arith.index_cast %35 : i32 to index
    %c0_22 = arith.constant 0 : index
    %c0_23 = arith.constant 0 : index
    %37 = vector.load %arg4[%c0_21, %36, %c0_22, %c0_23] : memref<1x9x9x128xbf16, #tpu.memory_space<vmem>>, vector<1x8x8x128xbf16>
    %38 = vector.shape_cast %37 : vector<1x8x8x128xbf16> to vector<8x8x128xbf16>
    %39 = arith.extf %38 : vector<8x8x128xbf16> to vector<8x8x128xf32>
    %40 = vector.shape_cast %39 : vector<8x8x128xf32> to vector<64x128xf32>
    %41 = arith.truncf %40 : vector<64x128xf32> to vector<64x128xbf16>
    %c3 = arith.constant 3 : index
    %c0_24 = arith.constant 0 : index
    %c0_25 = arith.constant 0 : index
    %42 = vector.load %arg6[%c3, %c0_24, %c0_25] : memref<9x128x128xbf16, #tpu.memory_space<vmem>>, vector<1x128x128xbf16>
    %43 = vector.shape_cast %42 : vector<1x128x128xbf16> to vector<128x128xbf16>
    %cst_26 = arith.constant dense<0.000000e+00> : vector<64x128xf32>
    %44 = tpu.matmul %41, %43, %cst_26 {dimension_numbers = #tpu.dot_dimension_numbers<[1], [0], [0], [1], [0, 0, 1, 1], [], []>} : vector<64x128xbf16>, vector<128x128xbf16>, vector<64x128xf32> -> vector<64x128xf32>
    %45 = arith.addf %34, %44 : vector<64x128xf32>
    %c0_i32_27 = arith.constant 0 : i32
    %46 = arith.addi %0, %c0_i32_27 : i32
    %c0_28 = arith.constant 0 : index
    %47 = arith.index_cast %46 : i32 to index
    %c0_29 = arith.constant 0 : index
    %c0_30 = arith.constant 0 : index
    %48 = vector.load %arg5[%c0_28, %47, %c0_29, %c0_30] : memref<1x9x9x128xbf16, #tpu.memory_space<vmem>>, vector<1x8x8x128xbf16>
    %49 = vector.shape_cast %48 : vector<1x8x8x128xbf16> to vector<8x8x128xbf16>
    %50 = arith.extf %49 : vector<8x8x128xbf16> to vector<8x8x128xf32>
    %51 = vector.shape_cast %50 : vector<8x8x128xf32> to vector<64x128xf32>
    %52 = arith.truncf %51 : vector<64x128xf32> to vector<64x128xbf16>
    %c4 = arith.constant 4 : index
    %c0_31 = arith.constant 0 : index
    %c0_32 = arith.constant 0 : index
    %53 = vector.load %arg6[%c4, %c0_31, %c0_32] : memref<9x128x128xbf16, #tpu.memory_space<vmem>>, vector<1x128x128xbf16>
    %54 = vector.shape_cast %53 : vector<1x128x128xbf16> to vector<128x128xbf16>
    %cst_33 = arith.constant dense<0.000000e+00> : vector<64x128xf32>
    %55 = tpu.matmul %52, %54, %cst_33 {dimension_numbers = #tpu.dot_dimension_numbers<[1], [0], [0], [1], [0, 0, 1, 1], [], []>} : vector<64x128xbf16>, vector<128x128xbf16>, vector<64x128xf32> -> vector<64x128xf32>
    %56 = arith.addf %45, %55 : vector<64x128xf32>
    %c0_i32_34 = arith.constant 0 : i32
    %57 = arith.addi %0, %c0_i32_34 : i32
    %c0_35 = arith.constant 0 : index
    %58 = arith.index_cast %57 : i32 to index
    %c1_36 = arith.constant 1 : index
    %c0_37 = arith.constant 0 : index
    %59 = vector.load %arg4[%c0_35, %58, %c1_36, %c0_37] : memref<1x9x9x128xbf16, #tpu.memory_space<vmem>>, vector<1x8x8x128xbf16>
    %60 = vector.shape_cast %59 : vector<1x8x8x128xbf16> to vector<8x8x128xbf16>
    %61 = arith.extf %60 : vector<8x8x128xbf16> to vector<8x8x128xf32>
    %62 = vector.shape_cast %61 : vector<8x8x128xf32> to vector<64x128xf32>
    %63 = arith.truncf %62 : vector<64x128xf32> to vector<64x128xbf16>
    %c5 = arith.constant 5 : index
    %c0_38 = arith.constant 0 : index
    %c0_39 = arith.constant 0 : index
    %64 = vector.load %arg6[%c5, %c0_38, %c0_39] : memref<9x128x128xbf16, #tpu.memory_space<vmem>>, vector<1x128x128xbf16>
    %65 = vector.shape_cast %64 : vector<1x128x128xbf16> to vector<128x128xbf16>
    %cst_40 = arith.constant dense<0.000000e+00> : vector<64x128xf32>
    %66 = tpu.matmul %63, %65, %cst_40 {dimension_numbers = #tpu.dot_dimension_numbers<[1], [0], [0], [1], [0, 0, 1, 1], [], []>} : vector<64x128xbf16>, vector<128x128xbf16>, vector<64x128xf32> -> vector<64x128xf32>
    %67 = arith.addf %56, %66 : vector<64x128xf32>
    %c1_i32 = arith.constant 1 : i32
    %68 = arith.addi %0, %c1_i32 : i32
    %c0_41 = arith.constant 0 : index
    %69 = arith.index_cast %68 : i32 to index
    %c0_42 = arith.constant 0 : index
    %c0_43 = arith.constant 0 : index
    %70 = vector.load %arg2[%c0_41, %69, %c0_42, %c0_43] : memref<1x9x9x128xbf16, #tpu.memory_space<vmem>>, vector<1x8x8x128xbf16>
    %71 = vector.shape_cast %70 : vector<1x8x8x128xbf16> to vector<8x8x128xbf16>
    %72 = arith.extf %71 : vector<8x8x128xbf16> to vector<8x8x128xf32>
    %73 = vector.shape_cast %72 : vector<8x8x128xf32> to vector<64x128xf32>
    %74 = arith.truncf %73 : vector<64x128xf32> to vector<64x128xbf16>
    %c6 = arith.constant 6 : index
    %c0_44 = arith.constant 0 : index
    %c0_45 = arith.constant 0 : index
    %75 = vector.load %arg6[%c6, %c0_44, %c0_45] : memref<9x128x128xbf16, #tpu.memory_space<vmem>>, vector<1x128x128xbf16>
    %76 = vector.shape_cast %75 : vector<1x128x128xbf16> to vector<128x128xbf16>
    %cst_46 = arith.constant dense<0.000000e+00> : vector<64x128xf32>
    %77 = tpu.matmul %74, %76, %cst_46 {dimension_numbers = #tpu.dot_dimension_numbers<[1], [0], [0], [1], [0, 0, 1, 1], [], []>} : vector<64x128xbf16>, vector<128x128xbf16>, vector<64x128xf32> -> vector<64x128xf32>
    %78 = arith.addf %67, %77 : vector<64x128xf32>
    %c1_i32_47 = arith.constant 1 : i32
    %79 = arith.addi %0, %c1_i32_47 : i32
    %c0_48 = arith.constant 0 : index
    %80 = arith.index_cast %79 : i32 to index
    %c0_49 = arith.constant 0 : index
    %c0_50 = arith.constant 0 : index
    %81 = vector.load %arg3[%c0_48, %80, %c0_49, %c0_50] : memref<1x9x9x128xbf16, #tpu.memory_space<vmem>>, vector<1x8x8x128xbf16>
    %82 = vector.shape_cast %81 : vector<1x8x8x128xbf16> to vector<8x8x128xbf16>
    %83 = arith.extf %82 : vector<8x8x128xbf16> to vector<8x8x128xf32>
    %84 = vector.shape_cast %83 : vector<8x8x128xf32> to vector<64x128xf32>
    %85 = arith.truncf %84 : vector<64x128xf32> to vector<64x128xbf16>
    %c7 = arith.constant 7 : index
    %c0_51 = arith.constant 0 : index
    %c0_52 = arith.constant 0 : index
    %86 = vector.load %arg6[%c7, %c0_51, %c0_52] : memref<9x128x128xbf16, #tpu.memory_space<vmem>>, vector<1x128x128xbf16>
    %87 = vector.shape_cast %86 : vector<1x128x128xbf16> to vector<128x128xbf16>
    %cst_53 = arith.constant dense<0.000000e+00> : vector<64x128xf32>
    %88 = tpu.matmul %85, %87, %cst_53 {dimension_numbers = #tpu.dot_dimension_numbers<[1], [0], [0], [1], [0, 0, 1, 1], [], []>} : vector<64x128xbf16>, vector<128x128xbf16>, vector<64x128xf32> -> vector<64x128xf32>
    %89 = arith.addf %78, %88 : vector<64x128xf32>
    %c1_i32_54 = arith.constant 1 : i32
    %90 = arith.addi %0, %c1_i32_54 : i32
    %c0_55 = arith.constant 0 : index
    %91 = arith.index_cast %90 : i32 to index
    %c1_56 = arith.constant 1 : index
    %c0_57 = arith.constant 0 : index
    %92 = vector.load %arg2[%c0_55, %91, %c1_56, %c0_57] : memref<1x9x9x128xbf16, #tpu.memory_space<vmem>>, vector<1x8x8x128xbf16>
    %93 = vector.shape_cast %92 : vector<1x8x8x128xbf16> to vector<8x8x128xbf16>
    %94 = arith.extf %93 : vector<8x8x128xbf16> to vector<8x8x128xf32>
    %95 = vector.shape_cast %94 : vector<8x8x128xf32> to vector<64x128xf32>
    %96 = arith.truncf %95 : vector<64x128xf32> to vector<64x128xbf16>
    %c8 = arith.constant 8 : index
    %c0_58 = arith.constant 0 : index
    %c0_59 = arith.constant 0 : index
    %97 = vector.load %arg6[%c8, %c0_58, %c0_59] : memref<9x128x128xbf16, #tpu.memory_space<vmem>>, vector<1x128x128xbf16>
    %98 = vector.shape_cast %97 : vector<1x128x128xbf16> to vector<128x128xbf16>
    %cst_60 = arith.constant dense<0.000000e+00> : vector<64x128xf32>
    %99 = tpu.matmul %96, %98, %cst_60 {dimension_numbers = #tpu.dot_dimension_numbers<[1], [0], [0], [1], [0, 0, 1, 1], [], []>} : vector<64x128xbf16>, vector<128x128xbf16>, vector<64x128xf32> -> vector<64x128xf32>
    %100 = arith.addf %89, %99 : vector<64x128xf32>
    %c0_61 = arith.constant 0 : index
    %c0_62 = arith.constant 0 : index
    %101 = vector.load %arg7[%c0_61, %c0_62] : memref<64x128xf32, #tpu.memory_space<vmem>>, vector<64x128xf32>
    tpu.vector_store %arg7[%c0_61, %c0_62], %100 {strides = array<i32>} : memref<64x128xf32, #tpu.memory_space<vmem>>, vector<64x128xf32>,
    %c0_i32_63 = arith.constant 0 : i32
    %102 = arith.cmpi eq, %arg0, %c0_i32_63 : i32
    %c0_i32_64 = arith.constant 0 : i32
    %103 = arith.cmpi eq, %arg1, %c0_i32_64 : i32
    %104 = arith.andi %102, %103 : i1
    %105 = arith.extui %104 : i1 to i32
    %c0_i32_65 = arith.constant 0 : i32
    %106 = arith.cmpi ne, %105, %c0_i32_65 : i32
    scf.if %106 {
      %cst_84 = arith.constant 0.000000e+00 : f32
      %122 = vector.broadcast %cst_84 : f32 to vector<1x128xf32>
      %c0_85 = arith.constant 0 : index
      %c0_86 = arith.constant 0 : index
      %123 = vector.load %arg10[%c0_85, %c0_86] : memref<1x128xf32, #tpu.memory_space<vmem>>, vector<1x128xf32>
      tpu.vector_store %arg10[%c0_85, %c0_86], %122 {strides = array<i32>} : memref<1x128xf32, #tpu.memory_space<vmem>>, vector<1x128xf32>,
      %cst_87 = arith.constant 0.000000e+00 : f32
      %124 = vector.broadcast %cst_87 : f32 to vector<1x128xf32>
      %c0_88 = arith.constant 0 : index
      %c0_89 = arith.constant 0 : index
      %125 = vector.load %arg11[%c0_88, %c0_89] : memref<1x128xf32, #tpu.memory_space<vmem>>, vector<1x128xf32>
      tpu.vector_store %arg11[%c0_88, %c0_89], %124 {strides = array<i32>} : memref<1x128xf32, #tpu.memory_space<vmem>>, vector<1x128xf32>,
    } else {
    }
    %c0_66 = arith.constant 0 : index
    %c0_67 = arith.constant 0 : index
    %107 = vector.load %arg10[%c0_66, %c0_67] : memref<1x128xf32, #tpu.memory_space<vmem>>, vector<1x128xf32>
    %cst_68 = arith.constant dense<0.000000e+00> : vector<128xf32>
    %108 = vector.multi_reduction <add>, %100, %cst_68 [0] : vector<64x128xf32> to vector<128xf32>
    %109 = vector.shape_cast %108 : vector<128xf32> to vector<1x128xf32>
    %110 = arith.addf %107, %109 : vector<1x128xf32>
    %c0_69 = arith.constant 0 : index
    %c0_70 = arith.constant 0 : index
    %111 = vector.load %arg10[%c0_69, %c0_70] : memref<1x128xf32, #tpu.memory_space<vmem>>, vector<1x128xf32>
    tpu.vector_store %arg10[%c0_69, %c0_70], %110 {strides = array<i32>} : memref<1x128xf32, #tpu.memory_space<vmem>>, vector<1x128xf32>,
    %c0_71 = arith.constant 0 : index
    %c0_72 = arith.constant 0 : index
    %112 = vector.load %arg11[%c0_71, %c0_72] : memref<1x128xf32, #tpu.memory_space<vmem>>, vector<1x128xf32>
    %113 = arith.mulf %100, %100 : vector<64x128xf32>
    %cst_73 = arith.constant dense<0.000000e+00> : vector<128xf32>
    %114 = vector.multi_reduction <add>, %113, %cst_73 [0] : vector<64x128xf32> to vector<128xf32>
    %115 = vector.shape_cast %114 : vector<128xf32> to vector<1x128xf32>
    %116 = arith.addf %112, %115 : vector<1x128xf32>
    %c0_74 = arith.constant 0 : index
    %c0_75 = arith.constant 0 : index
    %117 = vector.load %arg11[%c0_74, %c0_75] : memref<1x128xf32, #tpu.memory_space<vmem>>, vector<1x128xf32>
    tpu.vector_store %arg11[%c0_74, %c0_75], %116 {strides = array<i32>} : memref<1x128xf32, #tpu.memory_space<vmem>>, vector<1x128xf32>,
    %c0_76 = arith.constant 0 : index
    %c0_77 = arith.constant 0 : index
    %118 = vector.load %arg10[%c0_76, %c0_77] : memref<1x128xf32, #tpu.memory_space<vmem>>, vector<1x128xf32>
    %c0_78 = arith.constant 0 : index
    %c0_79 = arith.constant 0 : index
    %119 = vector.load %arg8[%c0_78, %c0_79] : memref<1x128xf32, #tpu.memory_space<vmem>>, vector<1x128xf32>
    tpu.vector_store %arg8[%c0_78, %c0_79], %118 {strides = array<i32>} : memref<1x128xf32, #tpu.memory_space<vmem>>, vector<1x128xf32>,
    %c0_80 = arith.constant 0 : index
    %c0_81 = arith.constant 0 : index
    %120 = vector.load %arg11[%c0_80, %c0_81] : memref<1x128xf32, #tpu.memory_space<vmem>>, vector<1x128xf32>
    %c0_82 = arith.constant 0 : index
    %c0_83 = arith.constant 0 : index
    %121 = vector.load %arg9[%c0_82, %c0_83] : memref<1x128xf32, #tpu.memory_space<vmem>>, vector<1x128xf32>
    tpu.vector_store %arg9[%c0_82, %c0_83], %120 {strides = array<i32>} : memref<1x128xf32, #tpu.memory_space<vmem>>, vector<1x128xf32>,
    return
  }
  func.func @transform_0(%arg0: i32, %arg1: i32) -> (i32, i32, i32, i32) {
    %c0_i32 = arith.constant 0 : i32
    %c0_i32_0 = arith.constant 0 : i32
    %c0_i32_1 = arith.constant 0 : i32
    %c0_i32_2 = arith.constant 0 : i32
    return %arg0, %c0_i32, %c0_i32_0, %c0_i32_1 : i32, i32, i32, i32
  }
  func.func @transform_1(%arg0: i32, %arg1: i32) -> (i32, i32, i32, i32) {
    %c0_i32 = arith.constant 0 : i32
    %c0_i32_0 = arith.constant 0 : i32
    %c0_i32_1 = arith.constant 0 : i32
    %c0_i32_2 = arith.constant 0 : i32
    return %arg0, %c0_i32, %c0_i32_0, %c0_i32_1 : i32, i32, i32, i32
  }
  func.func @transform_2(%arg0: i32, %arg1: i32) -> (i32, i32, i32, i32) {
    %c0_i32 = arith.constant 0 : i32
    %c0_i32_0 = arith.constant 0 : i32
    %c0_i32_1 = arith.constant 0 : i32
    %c0_i32_2 = arith.constant 0 : i32
    return %arg0, %c0_i32, %c0_i32_0, %c0_i32_1 : i32, i32, i32, i32
  }
  func.func @transform_3(%arg0: i32, %arg1: i32) -> (i32, i32, i32, i32) {
    %c0_i32 = arith.constant 0 : i32
    %c0_i32_0 = arith.constant 0 : i32
    %c0_i32_1 = arith.constant 0 : i32
    %c0_i32_2 = arith.constant 0 : i32
    return %arg0, %c0_i32, %c0_i32_0, %c0_i32_1 : i32, i32, i32, i32
  }
  func.func @transform_4(%arg0: i32, %arg1: i32) -> (i32, i32, i32) {
    %c0_i32 = arith.constant 0 : i32
    %c0_i32_0 = arith.constant 0 : i32
    %c0_i32_1 = arith.constant 0 : i32
    %c0_i32_2 = arith.constant 0 : i32
    return %c0_i32, %c0_i32_0, %c0_i32_1 : i32, i32, i32
  }
  func.func @transform_5(%arg0: i32, %arg1: i32) -> (i32, i32) {
    %c1_i32 = arith.constant 1 : i32
    %0 = arith.muli %arg0, %c1_i32 : i32
    %1 = arith.addi %0, %arg1 : i32
    %c0_i32 = arith.constant 0 : i32
    %c0_i32_0 = arith.constant 0 : i32
    return %1, %c0_i32 : i32, i32
  }
  func.func @transform_6(%arg0: i32, %arg1: i32) -> (i32, i32) {
    %c0_i32 = arith.constant 0 : i32
    %c0_i32_0 = arith.constant 0 : i32
    %c0_i32_1 = arith.constant 0 : i32
    return %c0_i32, %c0_i32_0 : i32, i32
  }
  func.func @transform_7(%arg0: i32, %arg1: i32) -> (i32, i32) {
    %c0_i32 = arith.constant 0 : i32
    %c0_i32_0 = arith.constant 0 : i32
    %c0_i32_1 = arith.constant 0 : i32
    return %c0_i32, %c0_i32_0 : i32, i32
  }
}

module attributes {stable_mosaic.version = 11 : i64} {
  func.func @kernel(%arg0: i32, %arg1: memref<128x128xf32, #tpu.memory_space<vmem>>, %arg2: memref<1x128xf32, #tpu.memory_space<vmem>>, %arg3: memref<1x128xf32, #tpu.memory_space<vmem>>, %arg4: memref<128x128xf32, #tpu.memory_space<vmem>>) attributes {dimension_semantics = [#tpu.dimension_semantics<parallel>], iteration_bounds = array<i64: 1>, scalar_prefetch = 0 : i64, scratch_operands = 0 : i64, tpu.core_type = #tpu.core_type<tc>, window_params = [{transform_indices = @transform_0, window_bounds = array<i64: 128, 128>}, {pipeline_mode = #tpu.pipeline_mode<synchronous>, transform_indices = @transform_1, window_bounds = array<i64: 1, 128>}, {pipeline_mode = #tpu.pipeline_mode<synchronous>, transform_indices = @transform_2, window_bounds = array<i64: 1, 128>}, {transform_indices = @transform_3, window_bounds = array<i64: 128, 128>}]} {
    %c0 = arith.constant 0 : index
    %c0_0 = arith.constant 0 : index
    %0 = vector.load %arg1[%c0, %c0_0] : memref<128x128xf32, #tpu.memory_space<vmem>>, vector<128x128xf32>
    %c0_1 = arith.constant 0 : index
    %c0_2 = arith.constant 0 : index
    %1 = vector.load %arg2[%c0_1, %c0_2] : memref<1x128xf32, #tpu.memory_space<vmem>>, vector<1x128xf32>
    %2 = vector.broadcast %1 : vector<1x128xf32> to vector<128x128xf32>
    %3 = arith.mulf %0, %2 : vector<128x128xf32>
    %c0_3 = arith.constant 0 : index
    %c0_4 = arith.constant 0 : index
    %4 = vector.load %arg3[%c0_3, %c0_4] : memref<1x128xf32, #tpu.memory_space<vmem>>, vector<1x128xf32>
    %5 = vector.broadcast %4 : vector<1x128xf32> to vector<128x128xf32>
    %6 = arith.addf %3, %5 : vector<128x128xf32>
    %cst = arith.constant 0.000000e+00 : f32
    %7 = vector.broadcast %cst : f32 to vector<128x128xf32>
    %8 = arith.cmpf oge, %6, %7 : vector<128x128xf32>
    %cst_5 = arith.constant 1.000000e-01 : f32
    %9 = vector.broadcast %cst_5 : f32 to vector<128x128xf32>
    %10 = arith.mulf %9, %6 : vector<128x128xf32>
    %11 = arith.select %8, %6, %10 : vector<128x128xi1>, vector<128x128xf32>
    %c0_6 = arith.constant 0 : index
    %c0_7 = arith.constant 0 : index
    %12 = vector.load %arg4[%c0_6, %c0_7] : memref<128x128xf32, #tpu.memory_space<vmem>>, vector<128x128xf32>
    tpu.vector_store %arg4[%c0_6, %c0_7], %11 {strides = array<i32>} : memref<128x128xf32, #tpu.memory_space<vmem>>, vector<128x128xf32>,
    return
  }
  func.func @transform_0(%arg0: i32) -> (i32, i32) {
    %c0_i32 = arith.constant 0 : i32
    %c0_i32_0 = arith.constant 0 : i32
    return %arg0, %c0_i32 : i32, i32
  }
  func.func @transform_1(%arg0: i32) -> (i32, i32) {
    %c0_i32 = arith.constant 0 : i32
    %c0_i32_0 = arith.constant 0 : i32
    %c0_i32_1 = arith.constant 0 : i32
    return %c0_i32, %c0_i32_0 : i32, i32
  }
  func.func @transform_2(%arg0: i32) -> (i32, i32) {
    %c0_i32 = arith.constant 0 : i32
    %c0_i32_0 = arith.constant 0 : i32
    %c0_i32_1 = arith.constant 0 : i32
    return %c0_i32, %c0_i32_0 : i32, i32
  }
  func.func @transform_3(%arg0: i32) -> (i32, i32) {
    %c0_i32 = arith.constant 0 : i32
    %c0_i32_0 = arith.constant 0 : i32
    return %arg0, %c0_i32 : i32, i32
  }
}

module attributes {stable_mosaic.version = 11 : i64} {
  func.func @kernel(%arg0: i32, %arg1: i32, %arg2: memref<1x8x8x128xbf16, #tpu.memory_space<vmem>>, %arg3: memref<1x128x128xbf16, #tpu.memory_space<vmem>>, %arg4: memref<64x128xf32, #tpu.memory_space<vmem>>, %arg5: memref<1x128xf32, #tpu.memory_space<vmem>>, %arg6: memref<1x128xf32, #tpu.memory_space<vmem>>, %arg7: memref<1x128xf32, #tpu.memory_space<vmem>>, %arg8: memref<1x128xf32, #tpu.memory_space<vmem>>) attributes {dimension_semantics = [#tpu.dimension_semantics<arbitrary>, #tpu.dimension_semantics<arbitrary>], iteration_bounds = array<i64: 2, 1>, scalar_prefetch = 0 : i64, scratch_operands = 2 : i64, tpu.core_type = #tpu.core_type<tc>, window_params = [{transform_indices = @transform_0, window_bounds = array<i64: 1, 8, 8, 128>}, {pipeline_mode = #tpu.pipeline_mode<synchronous>, transform_indices = @transform_1, window_bounds = array<i64: 1, 128, 128>}, {transform_indices = @transform_2, window_bounds = array<i64: 64, 128>}, {pipeline_mode = #tpu.pipeline_mode<synchronous>, transform_indices = @transform_3, window_bounds = array<i64: 1, 128>}, {pipeline_mode = #tpu.pipeline_mode<synchronous>, transform_indices = @transform_4, window_bounds = array<i64: 1, 128>}]} {
    %c8_i32 = arith.constant 8 : i32
    %0 = arith.muli %arg1, %c8_i32 : i32
    %cst = arith.constant 0.000000e+00 : f32
    %1 = vector.broadcast %cst : f32 to vector<64x128xf32>
    %c0_i32 = arith.constant 0 : i32
    %2 = arith.addi %0, %c0_i32 : i32
    %c0 = arith.constant 0 : index
    %3 = arith.index_cast %2 : i32 to index
    %c0_0 = arith.constant 0 : index
    %c0_1 = arith.constant 0 : index
    %4 = vector.load %arg2[%c0, %3, %c0_0, %c0_1] : memref<1x8x8x128xbf16, #tpu.memory_space<vmem>>, vector<1x8x8x128xbf16>
    %5 = vector.shape_cast %4 : vector<1x8x8x128xbf16> to vector<8x8x128xbf16>
    %6 = arith.extf %5 : vector<8x8x128xbf16> to vector<8x8x128xf32>
    %7 = vector.shape_cast %6 : vector<8x8x128xf32> to vector<64x128xf32>
    %8 = arith.truncf %7 : vector<64x128xf32> to vector<64x128xbf16>
    %c0_2 = arith.constant 0 : index
    %c0_3 = arith.constant 0 : index
    %c0_4 = arith.constant 0 : index
    %9 = vector.load %arg3[%c0_2, %c0_3, %c0_4] : memref<1x128x128xbf16, #tpu.memory_space<vmem>>, vector<1x128x128xbf16>
    %10 = vector.shape_cast %9 : vector<1x128x128xbf16> to vector<128x128xbf16>
    %cst_5 = arith.constant dense<0.000000e+00> : vector<64x128xf32>
    %11 = tpu.matmul %8, %10, %cst_5 {dimension_numbers = #tpu.dot_dimension_numbers<[1], [0], [0], [1], [0, 0, 1, 1], [], []>} : vector<64x128xbf16>, vector<128x128xbf16>, vector<64x128xf32> -> vector<64x128xf32>
    %12 = arith.addf %1, %11 : vector<64x128xf32>
    %c0_6 = arith.constant 0 : index
    %c0_7 = arith.constant 0 : index
    %13 = vector.load %arg4[%c0_6, %c0_7] : memref<64x128xf32, #tpu.memory_space<vmem>>, vector<64x128xf32>
    tpu.vector_store %arg4[%c0_6, %c0_7], %12 {strides = array<i32>} : memref<64x128xf32, #tpu.memory_space<vmem>>, vector<64x128xf32>,
    %c0_i32_8 = arith.constant 0 : i32
    %14 = arith.cmpi eq, %arg0, %c0_i32_8 : i32
    %c0_i32_9 = arith.constant 0 : i32
    %15 = arith.cmpi eq, %arg1, %c0_i32_9 : i32
    %16 = arith.andi %14, %15 : i1
    %17 = arith.extui %16 : i1 to i32
    %c0_i32_10 = arith.constant 0 : i32
    %18 = arith.cmpi ne, %17, %c0_i32_10 : i32
    scf.if %18 {
      %cst_29 = arith.constant 0.000000e+00 : f32
      %34 = vector.broadcast %cst_29 : f32 to vector<1x128xf32>
      %c0_30 = arith.constant 0 : index
      %c0_31 = arith.constant 0 : index
      %35 = vector.load %arg7[%c0_30, %c0_31] : memref<1x128xf32, #tpu.memory_space<vmem>>, vector<1x128xf32>
      tpu.vector_store %arg7[%c0_30, %c0_31], %34 {strides = array<i32>} : memref<1x128xf32, #tpu.memory_space<vmem>>, vector<1x128xf32>,
      %cst_32 = arith.constant 0.000000e+00 : f32
      %36 = vector.broadcast %cst_32 : f32 to vector<1x128xf32>
      %c0_33 = arith.constant 0 : index
      %c0_34 = arith.constant 0 : index
      %37 = vector.load %arg8[%c0_33, %c0_34] : memref<1x128xf32, #tpu.memory_space<vmem>>, vector<1x128xf32>
      tpu.vector_store %arg8[%c0_33, %c0_34], %36 {strides = array<i32>} : memref<1x128xf32, #tpu.memory_space<vmem>>, vector<1x128xf32>,
    } else {
    }
    %c0_11 = arith.constant 0 : index
    %c0_12 = arith.constant 0 : index
    %19 = vector.load %arg7[%c0_11, %c0_12] : memref<1x128xf32, #tpu.memory_space<vmem>>, vector<1x128xf32>
    %cst_13 = arith.constant dense<0.000000e+00> : vector<128xf32>
    %20 = vector.multi_reduction <add>, %12, %cst_13 [0] : vector<64x128xf32> to vector<128xf32>
    %21 = vector.shape_cast %20 : vector<128xf32> to vector<1x128xf32>
    %22 = arith.addf %19, %21 : vector<1x128xf32>
    %c0_14 = arith.constant 0 : index
    %c0_15 = arith.constant 0 : index
    %23 = vector.load %arg7[%c0_14, %c0_15] : memref<1x128xf32, #tpu.memory_space<vmem>>, vector<1x128xf32>
    tpu.vector_store %arg7[%c0_14, %c0_15], %22 {strides = array<i32>} : memref<1x128xf32, #tpu.memory_space<vmem>>, vector<1x128xf32>,
    %c0_16 = arith.constant 0 : index
    %c0_17 = arith.constant 0 : index
    %24 = vector.load %arg8[%c0_16, %c0_17] : memref<1x128xf32, #tpu.memory_space<vmem>>, vector<1x128xf32>
    %25 = arith.mulf %12, %12 : vector<64x128xf32>
    %cst_18 = arith.constant dense<0.000000e+00> : vector<128xf32>
    %26 = vector.multi_reduction <add>, %25, %cst_18 [0] : vector<64x128xf32> to vector<128xf32>
    %27 = vector.shape_cast %26 : vector<128xf32> to vector<1x128xf32>
    %28 = arith.addf %24, %27 : vector<1x128xf32>
    %c0_19 = arith.constant 0 : index
    %c0_20 = arith.constant 0 : index
    %29 = vector.load %arg8[%c0_19, %c0_20] : memref<1x128xf32, #tpu.memory_space<vmem>>, vector<1x128xf32>
    tpu.vector_store %arg8[%c0_19, %c0_20], %28 {strides = array<i32>} : memref<1x128xf32, #tpu.memory_space<vmem>>, vector<1x128xf32>,
    %c0_21 = arith.constant 0 : index
    %c0_22 = arith.constant 0 : index
    %30 = vector.load %arg7[%c0_21, %c0_22] : memref<1x128xf32, #tpu.memory_space<vmem>>, vector<1x128xf32>
    %c0_23 = arith.constant 0 : index
    %c0_24 = arith.constant 0 : index
    %31 = vector.load %arg5[%c0_23, %c0_24] : memref<1x128xf32, #tpu.memory_space<vmem>>, vector<1x128xf32>
    tpu.vector_store %arg5[%c0_23, %c0_24], %30 {strides = array<i32>} : memref<1x128xf32, #tpu.memory_space<vmem>>, vector<1x128xf32>,
    %c0_25 = arith.constant 0 : index
    %c0_26 = arith.constant 0 : index
    %32 = vector.load %arg8[%c0_25, %c0_26] : memref<1x128xf32, #tpu.memory_space<vmem>>, vector<1x128xf32>
    %c0_27 = arith.constant 0 : index
    %c0_28 = arith.constant 0 : index
    %33 = vector.load %arg6[%c0_27, %c0_28] : memref<1x128xf32, #tpu.memory_space<vmem>>, vector<1x128xf32>
    tpu.vector_store %arg6[%c0_27, %c0_28], %32 {strides = array<i32>} : memref<1x128xf32, #tpu.memory_space<vmem>>, vector<1x128xf32>,
    return
  }
  func.func @transform_0(%arg0: i32, %arg1: i32) -> (i32, i32, i32, i32) {
    %c0_i32 = arith.constant 0 : i32
    %c0_i32_0 = arith.constant 0 : i32
    %c0_i32_1 = arith.constant 0 : i32
    %c0_i32_2 = arith.constant 0 : i32
    return %arg0, %c0_i32, %c0_i32_0, %c0_i32_1 : i32, i32, i32, i32
  }
  func.func @transform_1(%arg0: i32, %arg1: i32) -> (i32, i32, i32) {
    %c0_i32 = arith.constant 0 : i32
    %c0_i32_0 = arith.constant 0 : i32
    %c0_i32_1 = arith.constant 0 : i32
    %c0_i32_2 = arith.constant 0 : i32
    return %c0_i32, %c0_i32_0, %c0_i32_1 : i32, i32, i32
  }
  func.func @transform_2(%arg0: i32, %arg1: i32) -> (i32, i32) {
    %c1_i32 = arith.constant 1 : i32
    %0 = arith.muli %arg0, %c1_i32 : i32
    %1 = arith.addi %0, %arg1 : i32
    %c0_i32 = arith.constant 0 : i32
    %c0_i32_0 = arith.constant 0 : i32
    return %1, %c0_i32 : i32, i32
  }
  func.func @transform_3(%arg0: i32, %arg1: i32) -> (i32, i32) {
    %c0_i32 = arith.constant 0 : i32
    %c0_i32_0 = arith.constant 0 : i32
    %c0_i32_1 = arith.constant 0 : i32
    return %c0_i32, %c0_i32_0 : i32, i32
  }
  func.func @transform_4(%arg0: i32, %arg1: i32) -> (i32, i32) {
    %c0_i32 = arith.constant 0 : i32
    %c0_i32_0 = arith.constant 0 : i32
    %c0_i32_1 = arith.constant 0 : i32
    return %c0_i32, %c0_i32_0 : i32, i32
  }
}

module attributes {stable_mosaic.version = 11 : i64} {
  func.func @kernel(%arg0: i32, %arg1: i32, %arg2: memref<1x10x10x128xbf16, #tpu.memory_space<vmem>>, %arg3: memref<9x128x128xbf16, #tpu.memory_space<vmem>>, %arg4: memref<64x128xf32, #tpu.memory_space<vmem>>, %arg5: memref<1x128xf32, #tpu.memory_space<vmem>>, %arg6: memref<1x128xf32, #tpu.memory_space<vmem>>, %arg7: memref<1x128xf32, #tpu.memory_space<vmem>>, %arg8: memref<1x128xf32, #tpu.memory_space<vmem>>) attributes {dimension_semantics = [#tpu.dimension_semantics<arbitrary>, #tpu.dimension_semantics<arbitrary>], iteration_bounds = array<i64: 2, 1>, scalar_prefetch = 0 : i64, scratch_operands = 2 : i64, tpu.core_type = #tpu.core_type<tc>, window_params = [{transform_indices = @transform_0, window_bounds = array<i64: 1, 10, 10, 128>}, {pipeline_mode = #tpu.pipeline_mode<synchronous>, transform_indices = @transform_1, window_bounds = array<i64: 9, 128, 128>}, {transform_indices = @transform_2, window_bounds = array<i64: 64, 128>}, {pipeline_mode = #tpu.pipeline_mode<synchronous>, transform_indices = @transform_3, window_bounds = array<i64: 1, 128>}, {pipeline_mode = #tpu.pipeline_mode<synchronous>, transform_indices = @transform_4, window_bounds = array<i64: 1, 128>}]} {
    %c8_i32 = arith.constant 8 : i32
    %0 = arith.muli %arg1, %c8_i32 : i32
    %cst = arith.constant 0.000000e+00 : f32
    %1 = vector.broadcast %cst : f32 to vector<64x128xf32>
    %c0_i32 = arith.constant 0 : i32
    %2 = arith.addi %0, %c0_i32 : i32
    %c0 = arith.constant 0 : index
    %3 = arith.index_cast %2 : i32 to index
    %c0_0 = arith.constant 0 : index
    %c0_1 = arith.constant 0 : index
    %4 = vector.load %arg2[%c0, %3, %c0_0, %c0_1] : memref<1x10x10x128xbf16, #tpu.memory_space<vmem>>, vector<1x8x8x128xbf16>
    %5 = vector.shape_cast %4 : vector<1x8x8x128xbf16> to vector<8x8x128xbf16>
    %6 = arith.extf %5 : vector<8x8x128xbf16> to vector<8x8x128xf32>
    %7 = vector.shape_cast %6 : vector<8x8x128xf32> to vector<64x128xf32>
    %8 = arith.truncf %7 : vector<64x128xf32> to vector<64x128xbf16>
    %c0_2 = arith.constant 0 : index
    %c0_3 = arith.constant 0 : index
    %c0_4 = arith.constant 0 : index
    %9 = vector.load %arg3[%c0_2, %c0_3, %c0_4] : memref<9x128x128xbf16, #tpu.memory_space<vmem>>, vector<1x128x128xbf16>
    %10 = vector.shape_cast %9 : vector<1x128x128xbf16> to vector<128x128xbf16>
    %cst_5 = arith.constant dense<0.000000e+00> : vector<64x128xf32>
    %11 = tpu.matmul %8, %10, %cst_5 {dimension_numbers = #tpu.dot_dimension_numbers<[1], [0], [0], [1], [0, 0, 1, 1], [], []>} : vector<64x128xbf16>, vector<128x128xbf16>, vector<64x128xf32> -> vector<64x128xf32>
    %12 = arith.addf %1, %11 : vector<64x128xf32>
    %c0_i32_6 = arith.constant 0 : i32
    %13 = arith.addi %0, %c0_i32_6 : i32
    %c0_7 = arith.constant 0 : index
    %14 = arith.index_cast %13 : i32 to index
    %c1 = arith.constant 1 : index
    %c0_8 = arith.constant 0 : index
    %15 = vector.load %arg2[%c0_7, %14, %c1, %c0_8] : memref<1x10x10x128xbf16, #tpu.memory_space<vmem>>, vector<1x8x8x128xbf16>
    %16 = vector.shape_cast %15 : vector<1x8x8x128xbf16> to vector<8x8x128xbf16>
    %17 = arith.extf %16 : vector<8x8x128xbf16> to vector<8x8x128xf32>
    %18 = vector.shape_cast %17 : vector<8x8x128xf32> to vector<64x128xf32>
    %19 = arith.truncf %18 : vector<64x128xf32> to vector<64x128xbf16>
    %c1_9 = arith.constant 1 : index
    %c0_10 = arith.constant 0 : index
    %c0_11 = arith.constant 0 : index
    %20 = vector.load %arg3[%c1_9, %c0_10, %c0_11] : memref<9x128x128xbf16, #tpu.memory_space<vmem>>, vector<1x128x128xbf16>
    %21 = vector.shape_cast %20 : vector<1x128x128xbf16> to vector<128x128xbf16>
    %cst_12 = arith.constant dense<0.000000e+00> : vector<64x128xf32>
    %22 = tpu.matmul %19, %21, %cst_12 {dimension_numbers = #tpu.dot_dimension_numbers<[1], [0], [0], [1], [0, 0, 1, 1], [], []>} : vector<64x128xbf16>, vector<128x128xbf16>, vector<64x128xf32> -> vector<64x128xf32>
    %23 = arith.addf %12, %22 : vector<64x128xf32>
    %c0_i32_13 = arith.constant 0 : i32
    %24 = arith.addi %0, %c0_i32_13 : i32
    %c0_14 = arith.constant 0 : index
    %25 = arith.index_cast %24 : i32 to index
    %c2 = arith.constant 2 : index
    %c0_15 = arith.constant 0 : index
    %26 = vector.load %arg2[%c0_14, %25, %c2, %c0_15] : memref<1x10x10x128xbf16, #tpu.memory_space<vmem>>, vector<1x8x8x128xbf16>
    %27 = vector.shape_cast %26 : vector<1x8x8x128xbf16> to vector<8x8x128xbf16>
    %28 = arith.extf %27 : vector<8x8x128xbf16> to vector<8x8x128xf32>
    %29 = vector.shape_cast %28 : vector<8x8x128xf32> to vector<64x128xf32>
    %30 = arith.truncf %29 : vector<64x128xf32> to vector<64x128xbf16>
    %c2_16 = arith.constant 2 : index
    %c0_17 = arith.constant 0 : index
    %c0_18 = arith.constant 0 : index
    %31 = vector.load %arg3[%c2_16, %c0_17, %c0_18] : memref<9x128x128xbf16, #tpu.memory_space<vmem>>, vector<1x128x128xbf16>
    %32 = vector.shape_cast %31 : vector<1x128x128xbf16> to vector<128x128xbf16>
    %cst_19 = arith.constant dense<0.000000e+00> : vector<64x128xf32>
    %33 = tpu.matmul %30, %32, %cst_19 {dimension_numbers = #tpu.dot_dimension_numbers<[1], [0], [0], [1], [0, 0, 1, 1], [], []>} : vector<64x128xbf16>, vector<128x128xbf16>, vector<64x128xf32> -> vector<64x128xf32>
    %34 = arith.addf %23, %33 : vector<64x128xf32>
    %c1_i32 = arith.constant 1 : i32
    %35 = arith.addi %0, %c1_i32 : i32
    %c0_20 = arith.constant 0 : index
    %36 = arith.index_cast %35 : i32 to index
    %c0_21 = arith.constant 0 : index
    %c0_22 = arith.constant 0 : index
    %37 = vector.load %arg2[%c0_20, %36, %c0_21, %c0_22] : memref<1x10x10x128xbf16, #tpu.memory_space<vmem>>, vector<1x8x8x128xbf16>
    %38 = vector.shape_cast %37 : vector<1x8x8x128xbf16> to vector<8x8x128xbf16>
    %39 = arith.extf %38 : vector<8x8x128xbf16> to vector<8x8x128xf32>
    %40 = vector.shape_cast %39 : vector<8x8x128xf32> to vector<64x128xf32>
    %41 = arith.truncf %40 : vector<64x128xf32> to vector<64x128xbf16>
    %c3 = arith.constant 3 : index
    %c0_23 = arith.constant 0 : index
    %c0_24 = arith.constant 0 : index
    %42 = vector.load %arg3[%c3, %c0_23, %c0_24] : memref<9x128x128xbf16, #tpu.memory_space<vmem>>, vector<1x128x128xbf16>
    %43 = vector.shape_cast %42 : vector<1x128x128xbf16> to vector<128x128xbf16>
    %cst_25 = arith.constant dense<0.000000e+00> : vector<64x128xf32>
    %44 = tpu.matmul %41, %43, %cst_25 {dimension_numbers = #tpu.dot_dimension_numbers<[1], [0], [0], [1], [0, 0, 1, 1], [], []>} : vector<64x128xbf16>, vector<128x128xbf16>, vector<64x128xf32> -> vector<64x128xf32>
    %45 = arith.addf %34, %44 : vector<64x128xf32>
    %c1_i32_26 = arith.constant 1 : i32
    %46 = arith.addi %0, %c1_i32_26 : i32
    %c0_27 = arith.constant 0 : index
    %47 = arith.index_cast %46 : i32 to index
    %c1_28 = arith.constant 1 : index
    %c0_29 = arith.constant 0 : index
    %48 = vector.load %arg2[%c0_27, %47, %c1_28, %c0_29] : memref<1x10x10x128xbf16, #tpu.memory_space<vmem>>, vector<1x8x8x128xbf16>
    %49 = vector.shape_cast %48 : vector<1x8x8x128xbf16> to vector<8x8x128xbf16>
    %50 = arith.extf %49 : vector<8x8x128xbf16> to vector<8x8x128xf32>
    %51 = vector.shape_cast %50 : vector<8x8x128xf32> to vector<64x128xf32>
    %52 = arith.truncf %51 : vector<64x128xf32> to vector<64x128xbf16>
    %c4 = arith.constant 4 : index
    %c0_30 = arith.constant 0 : index
    %c0_31 = arith.constant 0 : index
    %53 = vector.load %arg3[%c4, %c0_30, %c0_31] : memref<9x128x128xbf16, #tpu.memory_space<vmem>>, vector<1x128x128xbf16>
    %54 = vector.shape_cast %53 : vector<1x128x128xbf16> to vector<128x128xbf16>
    %cst_32 = arith.constant dense<0.000000e+00> : vector<64x128xf32>
    %55 = tpu.matmul %52, %54, %cst_32 {dimension_numbers = #tpu.dot_dimension_numbers<[1], [0], [0], [1], [0, 0, 1, 1], [], []>} : vector<64x128xbf16>, vector<128x128xbf16>, vector<64x128xf32> -> vector<64x128xf32>
    %56 = arith.addf %45, %55 : vector<64x128xf32>
    %c1_i32_33 = arith.constant 1 : i32
    %57 = arith.addi %0, %c1_i32_33 : i32
    %c0_34 = arith.constant 0 : index
    %58 = arith.index_cast %57 : i32 to index
    %c2_35 = arith.constant 2 : index
    %c0_36 = arith.constant 0 : index
    %59 = vector.load %arg2[%c0_34, %58, %c2_35, %c0_36] : memref<1x10x10x128xbf16, #tpu.memory_space<vmem>>, vector<1x8x8x128xbf16>
    %60 = vector.shape_cast %59 : vector<1x8x8x128xbf16> to vector<8x8x128xbf16>
    %61 = arith.extf %60 : vector<8x8x128xbf16> to vector<8x8x128xf32>
    %62 = vector.shape_cast %61 : vector<8x8x128xf32> to vector<64x128xf32>
    %63 = arith.truncf %62 : vector<64x128xf32> to vector<64x128xbf16>
    %c5 = arith.constant 5 : index
    %c0_37 = arith.constant 0 : index
    %c0_38 = arith.constant 0 : index
    %64 = vector.load %arg3[%c5, %c0_37, %c0_38] : memref<9x128x128xbf16, #tpu.memory_space<vmem>>, vector<1x128x128xbf16>
    %65 = vector.shape_cast %64 : vector<1x128x128xbf16> to vector<128x128xbf16>
    %cst_39 = arith.constant dense<0.000000e+00> : vector<64x128xf32>
    %66 = tpu.matmul %63, %65, %cst_39 {dimension_numbers = #tpu.dot_dimension_numbers<[1], [0], [0], [1], [0, 0, 1, 1], [], []>} : vector<64x128xbf16>, vector<128x128xbf16>, vector<64x128xf32> -> vector<64x128xf32>
    %67 = arith.addf %56, %66 : vector<64x128xf32>
    %c2_i32 = arith.constant 2 : i32
    %68 = arith.addi %0, %c2_i32 : i32
    %c0_40 = arith.constant 0 : index
    %69 = arith.index_cast %68 : i32 to index
    %c0_41 = arith.constant 0 : index
    %c0_42 = arith.constant 0 : index
    %70 = vector.load %arg2[%c0_40, %69, %c0_41, %c0_42] : memref<1x10x10x128xbf16, #tpu.memory_space<vmem>>, vector<1x8x8x128xbf16>
    %71 = vector.shape_cast %70 : vector<1x8x8x128xbf16> to vector<8x8x128xbf16>
    %72 = arith.extf %71 : vector<8x8x128xbf16> to vector<8x8x128xf32>
    %73 = vector.shape_cast %72 : vector<8x8x128xf32> to vector<64x128xf32>
    %74 = arith.truncf %73 : vector<64x128xf32> to vector<64x128xbf16>
    %c6 = arith.constant 6 : index
    %c0_43 = arith.constant 0 : index
    %c0_44 = arith.constant 0 : index
    %75 = vector.load %arg3[%c6, %c0_43, %c0_44] : memref<9x128x128xbf16, #tpu.memory_space<vmem>>, vector<1x128x128xbf16>
    %76 = vector.shape_cast %75 : vector<1x128x128xbf16> to vector<128x128xbf16>
    %cst_45 = arith.constant dense<0.000000e+00> : vector<64x128xf32>
    %77 = tpu.matmul %74, %76, %cst_45 {dimension_numbers = #tpu.dot_dimension_numbers<[1], [0], [0], [1], [0, 0, 1, 1], [], []>} : vector<64x128xbf16>, vector<128x128xbf16>, vector<64x128xf32> -> vector<64x128xf32>
    %78 = arith.addf %67, %77 : vector<64x128xf32>
    %c2_i32_46 = arith.constant 2 : i32
    %79 = arith.addi %0, %c2_i32_46 : i32
    %c0_47 = arith.constant 0 : index
    %80 = arith.index_cast %79 : i32 to index
    %c1_48 = arith.constant 1 : index
    %c0_49 = arith.constant 0 : index
    %81 = vector.load %arg2[%c0_47, %80, %c1_48, %c0_49] : memref<1x10x10x128xbf16, #tpu.memory_space<vmem>>, vector<1x8x8x128xbf16>
    %82 = vector.shape_cast %81 : vector<1x8x8x128xbf16> to vector<8x8x128xbf16>
    %83 = arith.extf %82 : vector<8x8x128xbf16> to vector<8x8x128xf32>
    %84 = vector.shape_cast %83 : vector<8x8x128xf32> to vector<64x128xf32>
    %85 = arith.truncf %84 : vector<64x128xf32> to vector<64x128xbf16>
    %c7 = arith.constant 7 : index
    %c0_50 = arith.constant 0 : index
    %c0_51 = arith.constant 0 : index
    %86 = vector.load %arg3[%c7, %c0_50, %c0_51] : memref<9x128x128xbf16, #tpu.memory_space<vmem>>, vector<1x128x128xbf16>
    %87 = vector.shape_cast %86 : vector<1x128x128xbf16> to vector<128x128xbf16>
    %cst_52 = arith.constant dense<0.000000e+00> : vector<64x128xf32>
    %88 = tpu.matmul %85, %87, %cst_52 {dimension_numbers = #tpu.dot_dimension_numbers<[1], [0], [0], [1], [0, 0, 1, 1], [], []>} : vector<64x128xbf16>, vector<128x128xbf16>, vector<64x128xf32> -> vector<64x128xf32>
    %89 = arith.addf %78, %88 : vector<64x128xf32>
    %c2_i32_53 = arith.constant 2 : i32
    %90 = arith.addi %0, %c2_i32_53 : i32
    %c0_54 = arith.constant 0 : index
    %91 = arith.index_cast %90 : i32 to index
    %c2_55 = arith.constant 2 : index
    %c0_56 = arith.constant 0 : index
    %92 = vector.load %arg2[%c0_54, %91, %c2_55, %c0_56] : memref<1x10x10x128xbf16, #tpu.memory_space<vmem>>, vector<1x8x8x128xbf16>
    %93 = vector.shape_cast %92 : vector<1x8x8x128xbf16> to vector<8x8x128xbf16>
    %94 = arith.extf %93 : vector<8x8x128xbf16> to vector<8x8x128xf32>
    %95 = vector.shape_cast %94 : vector<8x8x128xf32> to vector<64x128xf32>
    %96 = arith.truncf %95 : vector<64x128xf32> to vector<64x128xbf16>
    %c8 = arith.constant 8 : index
    %c0_57 = arith.constant 0 : index
    %c0_58 = arith.constant 0 : index
    %97 = vector.load %arg3[%c8, %c0_57, %c0_58] : memref<9x128x128xbf16, #tpu.memory_space<vmem>>, vector<1x128x128xbf16>
    %98 = vector.shape_cast %97 : vector<1x128x128xbf16> to vector<128x128xbf16>
    %cst_59 = arith.constant dense<0.000000e+00> : vector<64x128xf32>
    %99 = tpu.matmul %96, %98, %cst_59 {dimension_numbers = #tpu.dot_dimension_numbers<[1], [0], [0], [1], [0, 0, 1, 1], [], []>} : vector<64x128xbf16>, vector<128x128xbf16>, vector<64x128xf32> -> vector<64x128xf32>
    %100 = arith.addf %89, %99 : vector<64x128xf32>
    %c0_60 = arith.constant 0 : index
    %c0_61 = arith.constant 0 : index
    %101 = vector.load %arg4[%c0_60, %c0_61] : memref<64x128xf32, #tpu.memory_space<vmem>>, vector<64x128xf32>
    tpu.vector_store %arg4[%c0_60, %c0_61], %100 {strides = array<i32>} : memref<64x128xf32, #tpu.memory_space<vmem>>, vector<64x128xf32>,
    %c0_i32_62 = arith.constant 0 : i32
    %102 = arith.cmpi eq, %arg0, %c0_i32_62 : i32
    %c0_i32_63 = arith.constant 0 : i32
    %103 = arith.cmpi eq, %arg1, %c0_i32_63 : i32
    %104 = arith.andi %102, %103 : i1
    %105 = arith.extui %104 : i1 to i32
    %c0_i32_64 = arith.constant 0 : i32
    %106 = arith.cmpi ne, %105, %c0_i32_64 : i32
    scf.if %106 {
      %cst_83 = arith.constant 0.000000e+00 : f32
      %122 = vector.broadcast %cst_83 : f32 to vector<1x128xf32>
      %c0_84 = arith.constant 0 : index
      %c0_85 = arith.constant 0 : index
      %123 = vector.load %arg7[%c0_84, %c0_85] : memref<1x128xf32, #tpu.memory_space<vmem>>, vector<1x128xf32>
      tpu.vector_store %arg7[%c0_84, %c0_85], %122 {strides = array<i32>} : memref<1x128xf32, #tpu.memory_space<vmem>>, vector<1x128xf32>,
      %cst_86 = arith.constant 0.000000e+00 : f32
      %124 = vector.broadcast %cst_86 : f32 to vector<1x128xf32>
      %c0_87 = arith.constant 0 : index
      %c0_88 = arith.constant 0 : index
      %125 = vector.load %arg8[%c0_87, %c0_88] : memref<1x128xf32, #tpu.memory_space<vmem>>, vector<1x128xf32>
      tpu.vector_store %arg8[%c0_87, %c0_88], %124 {strides = array<i32>} : memref<1x128xf32, #tpu.memory_space<vmem>>, vector<1x128xf32>,
    } else {
    }
    %c0_65 = arith.constant 0 : index
    %c0_66 = arith.constant 0 : index
    %107 = vector.load %arg7[%c0_65, %c0_66] : memref<1x128xf32, #tpu.memory_space<vmem>>, vector<1x128xf32>
    %cst_67 = arith.constant dense<0.000000e+00> : vector<128xf32>
    %108 = vector.multi_reduction <add>, %100, %cst_67 [0] : vector<64x128xf32> to vector<128xf32>
    %109 = vector.shape_cast %108 : vector<128xf32> to vector<1x128xf32>
    %110 = arith.addf %107, %109 : vector<1x128xf32>
    %c0_68 = arith.constant 0 : index
    %c0_69 = arith.constant 0 : index
    %111 = vector.load %arg7[%c0_68, %c0_69] : memref<1x128xf32, #tpu.memory_space<vmem>>, vector<1x128xf32>
    tpu.vector_store %arg7[%c0_68, %c0_69], %110 {strides = array<i32>} : memref<1x128xf32, #tpu.memory_space<vmem>>, vector<1x128xf32>,
    %c0_70 = arith.constant 0 : index
    %c0_71 = arith.constant 0 : index
    %112 = vector.load %arg8[%c0_70, %c0_71] : memref<1x128xf32, #tpu.memory_space<vmem>>, vector<1x128xf32>
    %113 = arith.mulf %100, %100 : vector<64x128xf32>
    %cst_72 = arith.constant dense<0.000000e+00> : vector<128xf32>
    %114 = vector.multi_reduction <add>, %113, %cst_72 [0] : vector<64x128xf32> to vector<128xf32>
    %115 = vector.shape_cast %114 : vector<128xf32> to vector<1x128xf32>
    %116 = arith.addf %112, %115 : vector<1x128xf32>
    %c0_73 = arith.constant 0 : index
    %c0_74 = arith.constant 0 : index
    %117 = vector.load %arg8[%c0_73, %c0_74] : memref<1x128xf32, #tpu.memory_space<vmem>>, vector<1x128xf32>
    tpu.vector_store %arg8[%c0_73, %c0_74], %116 {strides = array<i32>} : memref<1x128xf32, #tpu.memory_space<vmem>>, vector<1x128xf32>,
    %c0_75 = arith.constant 0 : index
    %c0_76 = arith.constant 0 : index
    %118 = vector.load %arg7[%c0_75, %c0_76] : memref<1x128xf32, #tpu.memory_space<vmem>>, vector<1x128xf32>
    %c0_77 = arith.constant 0 : index
    %c0_78 = arith.constant 0 : index
    %119 = vector.load %arg5[%c0_77, %c0_78] : memref<1x128xf32, #tpu.memory_space<vmem>>, vector<1x128xf32>
    tpu.vector_store %arg5[%c0_77, %c0_78], %118 {strides = array<i32>} : memref<1x128xf32, #tpu.memory_space<vmem>>, vector<1x128xf32>,
    %c0_79 = arith.constant 0 : index
    %c0_80 = arith.constant 0 : index
    %120 = vector.load %arg8[%c0_79, %c0_80] : memref<1x128xf32, #tpu.memory_space<vmem>>, vector<1x128xf32>
    %c0_81 = arith.constant 0 : index
    %c0_82 = arith.constant 0 : index
    %121 = vector.load %arg6[%c0_81, %c0_82] : memref<1x128xf32, #tpu.memory_space<vmem>>, vector<1x128xf32>
    tpu.vector_store %arg6[%c0_81, %c0_82], %120 {strides = array<i32>} : memref<1x128xf32, #tpu.memory_space<vmem>>, vector<1x128xf32>,
    return
  }
  func.func @transform_0(%arg0: i32, %arg1: i32) -> (i32, i32, i32, i32) {
    %c0_i32 = arith.constant 0 : i32
    %c0_i32_0 = arith.constant 0 : i32
    %c0_i32_1 = arith.constant 0 : i32
    %c0_i32_2 = arith.constant 0 : i32
    return %arg0, %c0_i32, %c0_i32_0, %c0_i32_1 : i32, i32, i32, i32
  }
  func.func @transform_1(%arg0: i32, %arg1: i32) -> (i32, i32, i32) {
    %c0_i32 = arith.constant 0 : i32
    %c0_i32_0 = arith.constant 0 : i32
    %c0_i32_1 = arith.constant 0 : i32
    %c0_i32_2 = arith.constant 0 : i32
    return %c0_i32, %c0_i32_0, %c0_i32_1 : i32, i32, i32
  }
  func.func @transform_2(%arg0: i32, %arg1: i32) -> (i32, i32) {
    %c1_i32 = arith.constant 1 : i32
    %0 = arith.muli %arg0, %c1_i32 : i32
    %1 = arith.addi %0, %arg1 : i32
    %c0_i32 = arith.constant 0 : i32
    %c0_i32_0 = arith.constant 0 : i32
    return %1, %c0_i32 : i32, i32
  }
  func.func @transform_3(%arg0: i32, %arg1: i32) -> (i32, i32) {
    %c0_i32 = arith.constant 0 : i32
    %c0_i32_0 = arith.constant 0 : i32
    %c0_i32_1 = arith.constant 0 : i32
    return %c0_i32, %c0_i32_0 : i32, i32
  }
  func.func @transform_4(%arg0: i32, %arg1: i32) -> (i32, i32) {
    %c0_i32 = arith.constant 0 : i32
    %c0_i32_0 = arith.constant 0 : i32
    %c0_i32_1 = arith.constant 0 : i32
    return %c0_i32, %c0_i32_0 : i32, i32
  }
}

module attributes {stable_mosaic.version = 11 : i64} {
  func.func @kernel(%arg0: i32, %arg1: memref<128x128xf32, #tpu.memory_space<vmem>>, %arg2: memref<1x128xf32, #tpu.memory_space<vmem>>, %arg3: memref<1x128xf32, #tpu.memory_space<vmem>>, %arg4: memref<128x128xf32, #tpu.memory_space<vmem>>, %arg5: memref<128x128xf32, #tpu.memory_space<vmem>>) attributes {dimension_semantics = [#tpu.dimension_semantics<parallel>], iteration_bounds = array<i64: 1>, scalar_prefetch = 0 : i64, scratch_operands = 0 : i64, tpu.core_type = #tpu.core_type<tc>, window_params = [{transform_indices = @transform_0, window_bounds = array<i64: 128, 128>}, {pipeline_mode = #tpu.pipeline_mode<synchronous>, transform_indices = @transform_1, window_bounds = array<i64: 1, 128>}, {pipeline_mode = #tpu.pipeline_mode<synchronous>, transform_indices = @transform_2, window_bounds = array<i64: 1, 128>}, {transform_indices = @transform_3, window_bounds = array<i64: 128, 128>}, {transform_indices = @transform_4, window_bounds = array<i64: 128, 128>}]} {
    %c0 = arith.constant 0 : index
    %c0_0 = arith.constant 0 : index
    %0 = vector.load %arg1[%c0, %c0_0] : memref<128x128xf32, #tpu.memory_space<vmem>>, vector<128x128xf32>
    %c0_1 = arith.constant 0 : index
    %c0_2 = arith.constant 0 : index
    %1 = vector.load %arg2[%c0_1, %c0_2] : memref<1x128xf32, #tpu.memory_space<vmem>>, vector<1x128xf32>
    %2 = vector.broadcast %1 : vector<1x128xf32> to vector<128x128xf32>
    %3 = arith.mulf %0, %2 : vector<128x128xf32>
    %c0_3 = arith.constant 0 : index
    %c0_4 = arith.constant 0 : index
    %4 = vector.load %arg3[%c0_3, %c0_4] : memref<1x128xf32, #tpu.memory_space<vmem>>, vector<1x128xf32>
    %5 = vector.broadcast %4 : vector<1x128xf32> to vector<128x128xf32>
    %6 = arith.addf %3, %5 : vector<128x128xf32>
    %c0_5 = arith.constant 0 : index
    %c0_6 = arith.constant 0 : index
    %7 = vector.load %arg4[%c0_5, %c0_6] : memref<128x128xf32, #tpu.memory_space<vmem>>, vector<128x128xf32>
    %cst = arith.constant 0.000000e+00 : f32
    %8 = vector.broadcast %cst : f32 to vector<128x128xf32>
    %9 = arith.cmpf oge, %6, %8 : vector<128x128xf32>
    %cst_7 = arith.constant 1.000000e-01 : f32
    %10 = vector.broadcast %cst_7 : f32 to vector<128x128xf32>
    %11 = arith.mulf %10, %6 : vector<128x128xf32>
    %12 = arith.select %9, %6, %11 : vector<128x128xi1>, vector<128x128xf32>
    %13 = arith.addf %7, %12 : vector<128x128xf32>
    %c0_8 = arith.constant 0 : index
    %c0_9 = arith.constant 0 : index
    %14 = vector.load %arg5[%c0_8, %c0_9] : memref<128x128xf32, #tpu.memory_space<vmem>>, vector<128x128xf32>
    tpu.vector_store %arg5[%c0_8, %c0_9], %13 {strides = array<i32>} : memref<128x128xf32, #tpu.memory_space<vmem>>, vector<128x128xf32>,
    return
  }
  func.func @transform_0(%arg0: i32) -> (i32, i32) {
    %c0_i32 = arith.constant 0 : i32
    %c0_i32_0 = arith.constant 0 : i32
    return %arg0, %c0_i32 : i32, i32
  }
  func.func @transform_1(%arg0: i32) -> (i32, i32) {
    %c0_i32 = arith.constant 0 : i32
    %c0_i32_0 = arith.constant 0 : i32
    %c0_i32_1 = arith.constant 0 : i32
    return %c0_i32, %c0_i32_0 : i32, i32
  }
  func.func @transform_2(%arg0: i32) -> (i32, i32) {
    %c0_i32 = arith.constant 0 : i32
    %c0_i32_0 = arith.constant 0 : i32
    %c0_i32_1 = arith.constant 0 : i32
    return %c0_i32, %c0_i32_0 : i32, i32
  }
  func.func @transform_3(%arg0: i32) -> (i32, i32) {
    %c0_i32 = arith.constant 0 : i32
    %c0_i32_0 = arith.constant 0 : i32
    return %arg0, %c0_i32 : i32, i32
  }
  func.func @transform_4(%arg0: i32) -> (i32, i32) {
    %c0_i32 = arith.constant 0 : i32
    %c0_i32_0 = arith.constant 0 : i32
    return %arg0, %c0_i32 : i32, i32
  }
}

</mosaic_0001>

<llo_original>
// kernel: residual_block_forward.11
$region0: #{residual_block_forward.11}
  #allocation0 [shape = 'u32[]', space=smem, size = 0x4, offset = 0x4, fixed_abs, tag = 'smem constant byte address 0x4 - core index']
  #allocation1 [shape = 'u32[144,128]{1,0:T(1,128)}', space=vmem, size = 0x12000, scoped, tag = 'internal scratch']
  %s0 = inlined_call_operand.vmem [shape: f32[128,128], index: 0, kind: input, shape index: {}]
  %s1 = inlined_call_operand.vmem [shape: f32[1,128], index: 1, kind: input, shape index: {}]
  %s2 = inlined_call_operand.vmem [shape: f32[1,128], index: 2, kind: input, shape index: {}]
  %s3 = inlined_call_operand.vmem [shape: f32[128,128], index: 3, kind: output, shape index: {}]
  %s4 = sld [smem:[#allocation0]]
  $region22: #{residual_block_forward.11} parent=0
    _
  %s6 = ssub.s32 1, %s4
  %s7 = scalar_select 0, %s6, %s4
  // Predicated region
  $region2: #{residual_block_forward.11} parent=0 // pred_check
    _
  $region3: #{residual_block_forward.11} parent=0 // pred_check_branch
    %9 = sbr.rel (0) target = $region5
  $region4: #{residual_block_forward.11} parent=0 // pred_region
    _
  $region5: #{residual_block_forward.11} parent=0 // pred_fallthru
    _
  // Predicated region
  $region6: #{residual_block_forward.11} parent=0 // pred_check
    _
  $region7: #{residual_block_forward.11} parent=0 // pred_check_branch
    %11 = sbr.rel (0) target = $region9
  $region8: #{residual_block_forward.11} parent=0 // pred_region
    _
  $region9: #{residual_block_forward.11} parent=0 // pred_fallthru
    _
  // Predicated region
  $region10: #{residual_block_forward.11} parent=0 // pred_check
    _
  $region11: #{residual_block_forward.11} parent=0 // pred_check_branch
    %13 = sbr.rel (0) target = $region13
  $region12: #{residual_block_forward.11} parent=0 // pred_region
    _
  $region13: #{residual_block_forward.11} parent=0 // pred_fallthru
    _
  %v14 = vld [vmem:[%s0] sm:$0xff]
  %v15 = vld [vmem:[%s0 + $0x8] sm:$0xff]
  %v16 = vld [vmem:[%s0 + $0x10] sm:$0xff]
  %v17 = vld [vmem:[%s0 + $0x18] sm:$0xff]
  %v18 = vld [vmem:[%s0 + $0x20] sm:$0xff]
  %v19 = vld [vmem:[%s0 + $0x28] sm:$0xff]
  %v20 = vld [vmem:[%s0 + $0x30] sm:$0xff]
  %v21 = vld [vmem:[%s0 + $0x38] sm:$0xff]
  %v22 = vld [vmem:[%s0 + $0x40] sm:$0xff]
  %v23 = vld [vmem:[%s0 + $0x48] sm:$0xff]
  %v24 = vld [vmem:[%s0 + $0x50] sm:$0xff]
  %v25 = vld [vmem:[%s0 + $0x58] sm:$0xff]
  %v26 = vld [vmem:[%s0 + $0x60] sm:$0xff]
  %v27 = vld [vmem:[%s0 + $0x68] sm:$0xff]
  %v28 = vld [vmem:[%s0 + $0x70] sm:$0xff]
  %v29 = vld [vmem:[%s0 + $0x78] sm:$0xff]
  %v30 = vld [vmem:[%s1] sm:$0x1]
  %v32 = vlaneseq
  %v33 = vshrl.u32 %v32, 7
  %v34 = vsub.s32 0, %v33
  %v35 = vrot.slane %v30, %v34
  %v37 = vmul.f32 %v14, %v35
  %v38 = vmul.f32 %v15, %v35
  %v39 = vmul.f32 %v16, %v35
  %v40 = vmul.f32 %v17, %v35
  %v41 = vmul.f32 %v18, %v35
  %v42 = vmul.f32 %v19, %v35
  %v43 = vmul.f32 %v20, %v35
  %v44 = vmul.f32 %v21, %v35
  %v45 = vmul.f32 %v22, %v35
  %v46 = vmul.f32 %v23, %v35
  %v47 = vmul.f32 %v24, %v35
  %v48 = vmul.f32 %v25, %v35
  %v49 = vmul.f32 %v26, %v35
  %v50 = vmul.f32 %v27, %v35
  %v51 = vmul.f32 %v28, %v35
  %v52 = vmul.f32 %v29, %v35
  %v53 = vld [vmem:[%s2] sm:$0x1]
  %v55 = vlaneseq
  %v56 = vshrl.u32 %v55, 7
  %v57 = vsub.s32 0, %v56
  %v58 = vrot.slane %v53, %v57
  %v60 = vadd.f32 %v37, %v58
  %v61 = vadd.f32 %v38, %v58
  %v62 = vadd.f32 %v39, %v58
  %v63 = vadd.f32 %v40, %v58
  %v64 = vadd.f32 %v41, %v58
  %v65 = vadd.f32 %v42, %v58
  %v66 = vadd.f32 %v43, %v58
  %v67 = vadd.f32 %v44, %v58
  %v68 = vadd.f32 %v45, %v58
  %v69 = vadd.f32 %v46, %v58
  %v70 = vadd.f32 %v47, %v58
  %v71 = vadd.f32 %v48, %v58
  %v72 = vadd.f32 %v49, %v58
  %v73 = vadd.f32 %v50, %v58
  %v74 = vadd.f32 %v51, %v58
  %v75 = vadd.f32 %v52, %v58
  %vm76 = vcmp.ge.f32.partialorder %v60, 0.0
  %vm77 = vcmp.ge.f32.partialorder %v61, 0.0
  %vm78 = vcmp.ge.f32.partialorder %v62, 0.0
  %vm79 = vcmp.ge.f32.partialorder %v63, 0.0
  %vm80 = vcmp.ge.f32.partialorder %v64, 0.0
  %vm81 = vcmp.ge.f32.partialorder %v65, 0.0
  %vm82 = vcmp.ge.f32.partialorder %v66, 0.0
  %vm83 = vcmp.ge.f32.partialorder %v67, 0.0
  %vm84 = vcmp.ge.f32.partialorder %v68, 0.0
  %vm85 = vcmp.ge.f32.partialorder %v69, 0.0
  %vm86 = vcmp.ge.f32.partialorder %v70, 0.0
  %vm87 = vcmp.ge.f32.partialorder %v71, 0.0
  %vm88 = vcmp.ge.f32.partialorder %v72, 0.0
  %vm89 = vcmp.ge.f32.partialorder %v73, 0.0
  %vm90 = vcmp.ge.f32.partialorder %v74, 0.0
  %vm91 = vcmp.ge.f32.partialorder %v75, 0.0
  %v92 = vmul.f32 %v60, 0.1
  %v93 = vmul.f32 %v61, 0.1
  %v94 = vmul.f32 %v62, 0.1
  %v95 = vmul.f32 %v63, 0.1
  %v96 = vmul.f32 %v64, 0.1
  %v97 = vmul.f32 %v65, 0.1
  %v98 = vmul.f32 %v66, 0.1
  %v99 = vmul.f32 %v67, 0.1
  %v100 = vmul.f32 %v68, 0.1
  %v101 = vmul.f32 %v69, 0.1
  %v102 = vmul.f32 %v70, 0.1
  %v103 = vmul.f32 %v71, 0.1
  %v104 = vmul.f32 %v72, 0.1
  %v105 = vmul.f32 %v73, 0.1
  %v106 = vmul.f32 %v74, 0.1
  %v107 = vmul.f32 %v75, 0.1
  %v108 = vsel %vm76, %v60, %v92
  %v109 = vsel %vm77, %v61, %v93
  %v110 = vsel %vm78, %v62, %v94
  %v111 = vsel %vm79, %v63, %v95
  %v112 = vsel %vm80, %v64, %v96
  %v113 = vsel %vm81, %v65, %v97
  %v114 = vsel %vm82, %v66, %v98
  %v115 = vsel %vm83, %v67, %v99
  %v116 = vsel %vm84, %v68, %v100
  %v117 = vsel %vm85, %v69, %v101
  %v118 = vsel %vm86, %v70, %v102
  %v119 = vsel %vm87, %v71, %v103
  %v120 = vsel %vm88, %v72, %v104
  %v121 = vsel %vm89, %v73, %v105
  %v122 = vsel %vm90, %v74, %v106
  %v123 = vsel %vm91, %v75, %v107
  %124 = vst [vmem:[%s3] sm:$0xff] %v108
  %125 = vst [vmem:[%s3 + $0x8] sm:$0xff] %v109
  %126 = vst [vmem:[%s3 + $0x10] sm:$0xff] %v110
  %127 = vst [vmem:[%s3 + $0x18] sm:$0xff] %v111
  %128 = vst [vmem:[%s3 + $0x20] sm:$0xff] %v112
  %129 = vst [vmem:[%s3 + $0x28] sm:$0xff] %v113
  %130 = vst [vmem:[%s3 + $0x30] sm:$0xff] %v114
  %131 = vst [vmem:[%s3 + $0x38] sm:$0xff] %v115
  %132 = vst [vmem:[%s3 + $0x40] sm:$0xff] %v116
  %133 = vst [vmem:[%s3 + $0x48] sm:$0xff] %v117
  %134 = vst [vmem:[%s3 + $0x50] sm:$0xff] %v118
  %135 = vst [vmem:[%s3 + $0x58] sm:$0xff] %v119
  %136 = vst [vmem:[%s3 + $0x60] sm:$0xff] %v120
  %137 = vst [vmem:[%s3 + $0x68] sm:$0xff] %v121
  %138 = vst [vmem:[%s3 + $0x70] sm:$0xff] %v122
  %139 = vst [vmem:[%s3 + $0x78] sm:$0xff] %v123
  // Predicated region
  $region14: #{residual_block_forward.11} parent=0 // pred_check
    _
  $region15: #{residual_block_forward.11} parent=0 // pred_check_branch
    %141 = sbr.rel (0) target = $region17
  $region16: #{residual_block_forward.11} parent=0 // pred_region
    _
  $region17: #{residual_block_forward.11} parent=0 // pred_fallthru
    _
  // Predicated region
  $region18: #{residual_block_forward.11} parent=0 // pred_check
    _
  $region19: #{residual_block_forward.11} parent=0 // pred_check_branch
    %143 = sbr.rel (0) target = $region21
  $region20: #{residual_block_forward.11} parent=0 // pred_region
    _
  $region21: #{residual_block_forward.11} parent=0 // pred_fallthru
    _

// kernel: residual_block_forward.12
$region0: #{residual_block_forward.12}
  #allocation0 [shape = 'u32[]', space=smem, size = 0x4, offset = 0x4, fixed_abs, tag = 'smem constant byte address 0x4 - core index']
  #allocation1 [shape = 'u32[144,128]{1,0:T(1,128)}', space=vmem, size = 0x12000, scoped, tag = 'internal scratch']
  #allocation2 [shape = 'f32[1,128]{1,0:T(1,128)}', space=vmem, size = 0x200, scoped, tag = 'scratch operand']
  #allocation3 [shape = 'f32[1,128]{1,0:T(1,128)}', space=vmem, size = 0x200, scoped, tag = 'scratch operand']
  %s0 = inlined_call_operand.vmem [shape: bf16[2,8,8,128], index: 0, kind: input, shape index: {}]
  %s1 = inlined_call_operand.vmem [shape: bf16[1,128,128], index: 1, kind: input, shape index: {}]
  %s2 = inlined_call_operand.vmem [shape: f32[128,128], index: 2, kind: output, shape index: {0}]
  %s3 = inlined_call_operand.vmem [shape: f32[1,128], index: 3, kind: output, shape index: {1}]
  %s4 = inlined_call_operand.vmem [shape: f32[1,128], index: 4, kind: output, shape index: {2}]
  %5 = xla_tuple %s2, %s3, %s4
  %s6 = sld [smem:[#allocation0]]
  $region61: #{residual_block_forward.12} parent=0
    _
  %s8 = ssub.s32 1, %s6
  %s9 = scalar_select 0, %s8, %s6
  loop: start=0, step=1, limit=4
  $region2: #{residual_block_forward.12} parent=0 // loop_pre_header
    _
  $region3: #{residual_block_forward.12} parent=0 // loop_header
    %s11 = sphi 0, %s15
    %p12 = scmp.ge.s32.totalorder %s11, 4
    %s18 = sphi 0, %s30
    %s19 = sphi 0, %s26
    %s20 = sphi 0, %s18
    %s21 = sphi 0, %s19
    %s22 = sphi 0, %s20
    %s23 = sphi 0, %s21
    %s33 = sphi 0, %s35
    %s36 = sphi 0, %s33
    %s37 = sphi 0, %s36
    %s53 = sphi 0, %s37
    %s57 = sphi 0, %s57
    %s59 = sphi 0, %s57
    %s60 = sphi 0, %s59
    %s74 = sphi 0, %s60
    %s82 = sphi 0, %s84
    %s85 = sphi 0, %s82
    %s86 = sphi 0, %s85
    %s102 = sphi 0, %s86
    %s106 = sphi 0, %s106
    %s108 = sphi 0, %s106
    %s109 = sphi 0, %s108
    %s123 = sphi 0, %s109
    %s127 = sphi 0, %s127
    %s129 = sphi 0, %s127
    %s130 = sphi 0, %s129
    %s144 = sphi 0, %s130
  $region4: #{residual_block_forward.12} parent=0 // loop_header_branch
    %14 = sbr.rel (%p12) target = $region8
  $region5: #{residual_block_forward.12} parent=0 // loop_body
    %s16 = ssub.s32 %s11, 1
    %s17 = ssub.s32 %s11, 2
    %s24 = sadd.s32 1, %s19
    %p25 = scmp.ge.s32.totalorder %s24, 1
    %s26 = scalar_select %p25, 0, %s24
    %s27 = sadd.s32 1, %s18
    %s28 = scalar_select %p25, %s27, %s18
    %p29 = scmp.ge.s32.totalorder %s28, 2
    %s30 = scalar_select %p29, 0, %s28
    %s31 = ssub.s32 %s18, %s30
    %p32 = scmp.eq.s32.totalorder %s31, 0
    %s34 = sadd.s32 %s33, 1
    %s35 = scalar_select %p32, %s33, %s34
    %p38 = pneg %p32
    %p39 = scmp.eq.s32.totalorder %s11, 1
    %p40 = por %p38, %p39
    %p41 = scmp.ne.s32.totalorder %s33, %s36
    %p42 = scmp.eq.s32.totalorder %s11, 0
    %p43 = por %p41, %p42
    %p44 = scmp.ne.s32.totalorder %s33, %s36
    %p45 = scmp.eq.s32.totalorder %s16, 1
    %p46 = por %p44, %p45
    %p47 = scmp.ne.s32.totalorder %s36, %s37
    %p48 = scmp.eq.s32.totalorder %s16, 0
    %p49 = por %p47, %p48
    %p50 = scmp.ne.s32.totalorder %s36, %s37
    %p51 = scmp.eq.s32.totalorder %s17, 1
    %p52 = por %p50, %p51
    %p54 = scmp.ne.s32.totalorder %s37, %s53
    %p55 = scmp.eq.s32.totalorder %s17, 0
    %p56 = por %p54, %p55
    %s58 = sadd.s32 %s57, 1
    %p61 = scmp.eq.s32.totalorder %s11, 1
    %p62 = scmp.ne.s32.totalorder %s57, %s59
    %p63 = scmp.eq.s32.totalorder %s11, 0
    %p64 = por %p62, %p63
    %p65 = scmp.ne.s32.totalorder %s57, %s59
    %p66 = scmp.eq.s32.totalorder %s16, 1
    %p67 = por %p65, %p66
    %p68 = scmp.ne.s32.totalorder %s59, %s60
    %p69 = scmp.eq.s32.totalorder %s16, 0
    %p70 = por %p68, %p69
    %p71 = scmp.ne.s32.totalorder %s59, %s60
    %p72 = scmp.eq.s32.totalorder %s17, 1
    %p73 = por %p71, %p72
    %p75 = scmp.ne.s32.totalorder %s60, %s74
    %p76 = scmp.eq.s32.totalorder %s17, 0
    %p77 = por %p75, %p76
    %s78 = sadd.s32 %s18, %s19
    %s79 = sadd.s32 %s30, %s26
    %s80 = ssub.s32 %s78, %s79
    %p81 = scmp.eq.s32.totalorder %s80, 0
    %s83 = sadd.s32 %s82, 1
    %s84 = scalar_select %p81, %s82, %s83
    %p87 = pneg %p81
    %p88 = scmp.eq.s32.totalorder %s11, 1
    %p89 = por %p87, %p88
    %p90 = scmp.ne.s32.totalorder %s82, %s85
    %p91 = scmp.eq.s32.totalorder %s11, 0
    %p92 = por %p90, %p91
    %p93 = scmp.ne.s32.totalorder %s82, %s85
    %p94 = scmp.eq.s32.totalorder %s16, 1
    %p95 = por %p93, %p94
    %p96 = scmp.ne.s32.totalorder %s85, %s86
    %p97 = scmp.eq.s32.totalorder %s16, 0
    %p98 = por %p96, %p97
    %p99 = scmp.ne.s32.totalorder %s85, %s86
    %p100 = scmp.eq.s32.totalorder %s17, 1
    %p101 = por %p99, %p100
    %p103 = scmp.ne.s32.totalorder %s86, %s102
    %p104 = scmp.eq.s32.totalorder %s17, 0
    %p105 = por %p103, %p104
    %s107 = sadd.s32 %s106, 1
    %p110 = scmp.eq.s32.totalorder %s11, 1
    %p111 = scmp.ne.s32.totalorder %s106, %s108
    %p112 = scmp.eq.s32.totalorder %s11, 0
    %p113 = por %p111, %p112
    %p114 = scmp.ne.s32.totalorder %s106, %s108
    %p115 = scmp.eq.s32.totalorder %s16, 1
    %p116 = por %p114, %p115
    %p117 = scmp.ne.s32.totalorder %s108, %s109
    %p118 = scmp.eq.s32.totalorder %s16, 0
    %p119 = por %p117, %p118
    %p120 = scmp.ne.s32.totalorder %s108, %s109
    %p121 = scmp.eq.s32.totalorder %s17, 1
    %p122 = por %p120, %p121
    %p124 = scmp.ne.s32.totalorder %s109, %s123
    %p125 = scmp.eq.s32.totalorder %s17, 0
    %p126 = por %p124, %p125
    %s128 = sadd.s32 %s127, 1
    %p131 = scmp.eq.s32.totalorder %s11, 1
    %p132 = scmp.ne.s32.totalorder %s127, %s129
    %p133 = scmp.eq.s32.totalorder %s11, 0
    %p134 = por %p132, %p133
    %p135 = scmp.ne.s32.totalorder %s127, %s129
    %p136 = scmp.eq.s32.totalorder %s16, 1
    %p137 = por %p135, %p136
    %p138 = scmp.ne.s32.totalorder %s129, %s130
    %p139 = scmp.eq.s32.totalorder %s16, 0
    %p140 = por %p138, %p139
    %p141 = scmp.ne.s32.totalorder %s129, %s130
    %p142 = scmp.eq.s32.totalorder %s17, 1
    %p143 = por %p141, %p142
    %p145 = scmp.ne.s32.totalorder %s130, %s144
    %p146 = scmp.eq.s32.totalorder %s17, 0
    %p147 = por %p145, %p146
    %p148 = scmp.le.s32.totalorder 1, %s11
    %p149 = scmp.lt.s32.totalorder %s11, 3
    %p150 = pnand %p148, %p149
    %p151 = pneg %p150
    // Predicated region
    $region9: #{residual_block_forward.12} parent=5 // pred_check
      _
    $region10: #{residual_block_forward.12} parent=5 // pred_check_branch
      %153 = sbr.rel (%p150) target = $region12
    $region11: #{residual_block_forward.12} parent=5 // pred_region
      %s154 = ssub.s32 %s11, 1
      // Predicated region
      $region13: #{residual_block_forward.12} parent=11 // pred_check
        %p155 = pneg %p70
      $region14: #{residual_block_forward.12} parent=11 // pred_check_branch
        %157 = sbr.rel (%p155) target = $region16
      $region15: #{residual_block_forward.12} parent=11 // pred_region
        _
      $region16: #{residual_block_forward.12} parent=11 // pred_fallthru
        _
    $region12: #{residual_block_forward.12} parent=5 // pred_fallthru
      _
    %p158 = scmp.lt.s32.totalorder %s11, 2
    // Predicated region
    $region17: #{residual_block_forward.12} parent=5 // pred_check
      %p159 = pneg %p158
    $region18: #{residual_block_forward.12} parent=5 // pred_check_branch
      %161 = sbr.rel (%p159) target = $region20
    $region19: #{residual_block_forward.12} parent=5 // pred_region
      // Predicated region
      $region21: #{residual_block_forward.12} parent=19 // pred_check
        %p162 = pneg %p43
      $region22: #{residual_block_forward.12} parent=19 // pred_check_branch
        %164 = sbr.rel (%p162) target = $region24
      $region23: #{residual_block_forward.12} parent=19 // pred_region
        %p165 = scmp.lt.s32.totalorder %s18, 1
        %s166 = scalar_select %p165, %s18, 1
        %s167 = smul.addr %s166, 8
        %s168 = smul.addr %s167, 4
        %s169 = scalar_lea.vmem %s0, %s168
      $region24: #{residual_block_forward.12} parent=19 // pred_fallthru
        _
    $region20: #{residual_block_forward.12} parent=5 // pred_fallthru
      _
    %p170 = scmp.le.s32.totalorder 1, %s11
    %p171 = scmp.lt.s32.totalorder %s11, 3
    %p172 = pnand %p170, %p171
    %p173 = pneg %p172
    // Predicated region
    $region25: #{residual_block_forward.12} parent=5 // pred_check
      _
    $region26: #{residual_block_forward.12} parent=5 // pred_check_branch
      %175 = sbr.rel (%p172) target = $region28
    $region27: #{residual_block_forward.12} parent=5 // pred_region
      %s176 = ssub.s32 %s11, 1
      %p177 = scmp.lt.s32.totalorder %s20, 1
      %s178 = scalar_select %p177, %s20, 1
      %s179 = smul.addr %s178, 8
      %s180 = smul.addr %s179, 4
      %s181 = scalar_lea.vmem %s0, %s180
      %p182 = pneg %p49
      %p183 = pneg %p46
      %p184 = pneg %p70
      %p185 = pneg %p67
      %p186 = pneg %p98
      %p187 = pneg %p95
      %s188 = sadd.s32 %s20, %s21
      %s189 = smul.u32 8, %s188
      %p190 = scmp.lt.s32.totalorder %s189, 15
      %s191 = scalar_select %p190, %s189, 15
      %s192 = smul.addr %s191, 8
      %s193 = scalar_lea.vmem %s2, %s192
      %p194 = pneg %p119
      %p195 = pneg %p116
      %p196 = pneg %p140
      %p197 = pneg %p137
      %p198 = scmp.lt.s32.totalorder %s20, 1
      %s199 = scalar_select %p198, %s20, 1
      %s200 = smul.addr %s199, 8
      %s201 = smul.addr %s200, 4
      %s202 = scalar_lea.vmem %s0, %s201
      %s203 = sadd.s32 %s20, %s21
      %s204 = smul.u32 8, %s203
      %p205 = scmp.lt.s32.totalorder %s204, 15
      %s206 = scalar_select %p205, %s204, 15
      %s207 = smul.addr %s206, 8
      %s208 = scalar_lea.vmem %s2, %s207
      %s209 = sadd.s32 %s20, %s21
      %s210 = smul.u32 8, %s209
      %s212 = smul.u32 %s21, 8
      %s213 = smul.addr %s212, 4
      %s214 = scalar_lea.vmem %s202, %s213
      %v215 = vld [vmem:[%s214] sm:$0xf]
      %v216 = vld [vmem:[%s214 + $0x4] sm:$0xf]
      %v217 = vld [vmem:[%s214 + $0x8] sm:$0xf]
      %v218 = vld [vmem:[%s214 + $0xc] sm:$0xf]
      %v219 = vld [vmem:[%s214 + $0x10] sm:$0xf]
      %v220 = vld [vmem:[%s214 + $0x14] sm:$0xf]
      %v221 = vld [vmem:[%s214 + $0x18] sm:$0xf]
      %v222 = vld [vmem:[%s214 + $0x1c] sm:$0xf]
      %v223 = vunpack.c.l.bf16 %v215
      %v224 = vunpack.c.l.bf16 %v216
      %v225 = vunpack.c.l.bf16 %v217
      %v226 = vunpack.c.l.bf16 %v218
      %v227 = vunpack.c.l.bf16 %v219
      %v228 = vunpack.c.l.bf16 %v220
      %v229 = vunpack.c.l.bf16 %v221
      %v230 = vunpack.c.l.bf16 %v222
      %v231 = vpack.c.bf16 %v224, %v223
      %v232 = vpack.c.bf16 %v226, %v225
      %v233 = vpack.c.bf16 %v228, %v227
      %v234 = vpack.c.bf16 %v230, %v229
      %v235 = vld [vmem:[%s1] sm:$0xf]
      %v236 = vld [vmem:[%s1 + $0x4] sm:$0xf]
      %v237 = vld [vmem:[%s1 + $0x8] sm:$0xf]
      %v238 = vld [vmem:[%s1 + $0xc] sm:$0xf]
      %v239 = vld [vmem:[%s1 + $0x10] sm:$0xf]
      %v240 = vld [vmem:[%s1 + $0x14] sm:$0xf]
      %v241 = vld [vmem:[%s1 + $0x18] sm:$0xf]
      %v242 = vld [vmem:[%s1 + $0x1c] sm:$0xf]
      %v243 = vld [vmem:[%s1 + $0x20] sm:$0xf]
      %v244 = vld [vmem:[%s1 + $0x24] sm:$0xf]
      %v245 = vld [vmem:[%s1 + $0x28] sm:$0xf]
      %v246 = vld [vmem:[%s1 + $0x2c] sm:$0xf]
      %v247 = vld [vmem:[%s1 + $0x30] sm:$0xf]
      %v248 = vld [vmem:[%s1 + $0x34] sm:$0xf]
      %v249 = vld [vmem:[%s1 + $0x38] sm:$0xf]
      %v250 = vld [vmem:[%s1 + $0x3c] sm:$0xf]
      %v267 = vunpack.c.l.b16 %v235
      %v268 = vunpack.c.l.b16 %v236
      %v269 = vunpack.c.l.b16 %v237
      %v270 = vunpack.c.l.b16 %v238
      %v271 = vunpack.c.l.b16 %v239
      %v272 = vunpack.c.l.b16 %v240
      %v273 = vunpack.c.l.b16 %v241
      %v274 = vunpack.c.l.b16 %v242
      %v275 = vunpack.c.l.b16 %v243
      %v276 = vunpack.c.l.b16 %v244
      %v277 = vunpack.c.l.b16 %v245
      %v278 = vunpack.c.l.b16 %v246
      %v279 = vunpack.c.l.b16 %v247
      %v280 = vunpack.c.l.b16 %v248
      %v281 = vunpack.c.l.b16 %v249
      %v282 = vunpack.c.l.b16 %v250
      %v283 = vpack.c.b16 %v268, %v267
      %v284 = vpack.c.b16 %v270, %v269
      %v285 = vpack.c.b16 %v272, %v271
      %v286 = vpack.c.b16 %v274, %v273
      %v287 = vpack.c.b16 %v276, %v275
      %v288 = vpack.c.b16 %v278, %v277
      %v289 = vpack.c.b16 %v280, %v279
      %v290 = vpack.c.b16 %v282, %v281
      %299 = vmatprep.subr.bf16.mxu0 0
      %300 = vmatpush1.bf16.msra.mxu0 %v283
      %301 = vmatprep.subr.bf16.mxu0 0
      %302 = vmatpush1.bf16.msra.mxu0 %v284
      %303 = vmatprep.subr.bf16.mxu0 0
      %304 = vmatpush1.bf16.msra.mxu0 %v285
      %305 = vmatprep.subr.bf16.mxu0 0
      %306 = vmatpush1.bf16.msra.mxu0 %v286
      %307 = vmatprep.subr.bf16.mxu0 0
      %308 = vmatpush1.bf16.msra.mxu0 %v287
      %309 = vmatprep.subr.bf16.mxu0 0
      %310 = vmatpush1.bf16.msra.mxu0 %v288
      %311 = vmatprep.subr.bf16.mxu0 0
      %312 = vmatpush1.bf16.msra.mxu0 %v289
      %313 = vmatprep.subr.bf16.mxu0 0
      %314 = vmatpush1.bf16.msra.mxu0 %v290
      %315 = vmatprep.subr.bf16.mxu0 0
      %316 = vmatpush1.bf16.msra.mxu0 0
      %317 = vmatprep.subr.bf16.mxu0 0
      %318 = vmatpush1.bf16.msra.mxu0 0
      %319 = vmatprep.subr.bf16.mxu0 0
      %320 = vmatpush1.bf16.msra.mxu0 0
      %321 = vmatprep.subr.bf16.mxu0 0
      %322 = vmatpush1.bf16.msra.mxu0 0
      %323 = vmatprep.subr.bf16.mxu0 0
      %324 = vmatpush1.bf16.msra.mxu0 0
      %325 = vmatprep.subr.bf16.mxu0 0
      %326 = vmatpush1.bf16.msra.mxu0 0
      %327 = vmatprep.subr.bf16.mxu0 0
      %328 = vmatpush1.bf16.msra.mxu0 0
      %329 = vmatprep.subr.bf16.mxu0 0
      %330 = vmatpush1.bf16.msra.mxu0 0
      %331 = vmatprep.mubr.bf16.mxu0 0
      %332 = vmatmul.mubr.bf16.gmra.mrb[0].mxu0 %v231
      %v333 = vpop.f32.mrb[0].mxu0
      %v334 = vadd.f32 0.0, %v333
      %v335 = vpop.f32.mrb[0].mxu0
      %v336 = vpop.f32.mrb[0].mxu0
      %v337 = vadd.f32 0.0, %v336
      %v338 = vpop.f32.mrb[0].mxu0
      %339 = vmatprep.mubr.bf16.mxu0 0
      %340 = vmatmul.mubr.bf16.gmra.mrb[0].mxu0 %v232
      %v341 = vpop.f32.mrb[0].mxu0
      %v342 = vadd.f32 0.0, %v341
      %v343 = vpop.f32.mrb[0].mxu0
      %v344 = vpop.f32.mrb[0].mxu0
      %v345 = vadd.f32 0.0, %v344
      %v346 = vpop.f32.mrb[0].mxu0
      %347 = vmatprep.mubr.bf16.mxu0 0
      %348 = vmatmul.mubr.bf16.gmra.mrb[0].mxu0 %v233
      %v349 = vpop.f32.mrb[0].mxu0
      %v350 = vadd.f32 0.0, %v349
      %v351 = vpop.f32.mrb[0].mxu0
      %v352 = vpop.f32.mrb[0].mxu0
      %v353 = vadd.f32 0.0, %v352
      %v354 = vpop.f32.mrb[0].mxu0
      %355 = vmatprep.mubr.bf16.mxu0 0
      %356 = vmatmul.mubr.bf16.gmra.mrb[0].mxu0 %v234
      %v357 = vpop.f32.mrb[0].mxu0
      %v358 = vadd.f32 0.0, %v357
      %v359 = vpop.f32.mrb[0].mxu0
      %v360 = vpop.f32.mrb[0].mxu0
      %v361 = vadd.f32 0.0, %v360
      %v362 = vpop.f32.mrb[0].mxu0
      %363 = vdwg.mxu0
      %364 = vst [vmem:[%s208] sm:$0xff] %v334
      %365 = vst [vmem:[%s208 + $0x8] sm:$0xff] %v337
      %366 = vst [vmem:[%s208 + $0x10] sm:$0xff] %v342
      %367 = vst [vmem:[%s208 + $0x18] sm:$0xff] %v345
      %368 = vst [vmem:[%s208 + $0x20] sm:$0xff] %v350
      %369 = vst [vmem:[%s208 + $0x28] sm:$0xff] %v353
      %370 = vst [vmem:[%s208 + $0x30] sm:$0xff] %v358
      %371 = vst [vmem:[%s208 + $0x38] sm:$0xff] %v361
      %p372 = scmp.eq.s32.totalorder %s20, 0
      %p373 = scmp.eq.s32.totalorder %s21, 0
      %p374 = pnand %p372, %p373
      %p375 = pneg %p374
      // Predicated region
      $region29: #{residual_block_forward.12} parent=27 // pred_check
        _
      $region30: #{residual_block_forward.12} parent=27 // pred_check_branch
        %377 = sbr.rel (%p374) target = $region32
      $region31: #{residual_block_forward.12} parent=27 // pred_region
        %378 = vst [vmem:[#allocation2] sm:$0x1] 0.0
        %379 = vst [vmem:[#allocation3] sm:$0x1] 0.0
      $region32: #{residual_block_forward.12} parent=27 // pred_fallthru
        _
      %v380 = vld [vmem:[#allocation2] sm:$0x1]
      %v381 = vadd.f32 %v334, %v337
      %v382 = vadd.f32 %v381, %v342
      %v383 = vadd.f32 %v382, %v345
      %v384 = vadd.f32 %v383, %v350
      %v385 = vadd.f32 %v384, %v353
      %v386 = vadd.f32 %v385, %v358
      %v387 = vadd.f32 %v386, %v361
      %v388 = vrot.slane %v387, 4
      %v389 = vadd.f32 %v387, %v388
      %v390 = vrot.slane %v389, 2
      %v391 = vadd.f32 %v389, %v390
      %v392 = vrot.slane %v391, 1
      %v393 = vadd.f32 %v391, %v392
      %v394 = vadd.f32 %v380, %v393
      %395 = vst [vmem:[#allocation2] sm:$0x1] %v394
      %v396 = vld [vmem:[#allocation3] sm:$0x1]
      %v397 = vmul.f32 %v334, %v334
      %v398 = vmul.f32 %v337, %v337
      %v399 = vmul.f32 %v342, %v342
      %v400 = vmul.f32 %v345, %v345
      %v401 = vmul.f32 %v350, %v350
      %v402 = vmul.f32 %v353, %v353
      %v403 = vmul.f32 %v358, %v358
      %v404 = vmul.f32 %v361, %v361
      %v405 = vadd.f32 %v397, %v398
      %v406 = vadd.f32 %v405, %v399
      %v407 = vadd.f32 %v406, %v400
      %v408 = vadd.f32 %v407, %v401
      %v409 = vadd.f32 %v408, %v402
      %v410 = vadd.f32 %v409, %v403
      %v411 = vadd.f32 %v410, %v404
      %v412 = vrot.slane %v411, 4
      %v413 = vadd.f32 %v411, %v412
      %v414 = vrot.slane %v413, 2
      %v415 = vadd.f32 %v413, %v414
      %v416 = vrot.slane %v415, 1
      %v417 = vadd.f32 %v415, %v416
      %v418 = vadd.f32 %v396, %v417
      %419 = vst [vmem:[#allocation3] sm:$0x1] %v418
      %v420 = vld [vmem:[#allocation2] sm:$0x1]
      %421 = vst [vmem:[%s3] sm:$0x1] %v420
      %v422 = vld [vmem:[#allocation3] sm:$0x1]
      %423 = vst [vmem:[%s4] sm:$0x1] %v422
      %s424 = sadd.s32 %s20, %s21
      %s425 = smul.u32 8, %s424
      %p426 = scmp.lt.s32.totalorder %s425, 15
      %s427 = scalar_select %p426, %s425, 15
      %s428 = smul.addr %s427, 8
      %s429 = scalar_lea.vmem %s2, %s428
      // Predicated region
      $region33: #{residual_block_forward.12} parent=27 // pred_check
        %p430 = pneg %p95
      $region34: #{residual_block_forward.12} parent=27 // pred_check_branch
        %432 = sbr.rel (%p430) target = $region36
      $region35: #{residual_block_forward.12} parent=27 // pred_region
        %s433 = sadd.s32 %s20, %s21
        %s434 = smul.u32 8, %s433
      $region36: #{residual_block_forward.12} parent=27 // pred_fallthru
        _
      // Predicated region
      $region37: #{residual_block_forward.12} parent=27 // pred_check
        %p435 = pneg %p116
      $region38: #{residual_block_forward.12} parent=27 // pred_check_branch
        %437 = sbr.rel (%p435) target = $region40
      $region39: #{residual_block_forward.12} parent=27 // pred_region
        _
      $region40: #{residual_block_forward.12} parent=27 // pred_fallthru
        _
      // Predicated region
      $region41: #{residual_block_forward.12} parent=27 // pred_check
        %p438 = pneg %p137
      $region42: #{residual_block_forward.12} parent=27 // pred_check_branch
        %440 = sbr.rel (%p438) target = $region44
      $region43: #{residual_block_forward.12} parent=27 // pred_region
        _
      $region44: #{residual_block_forward.12} parent=27 // pred_fallthru
        _
      // Predicated region
      $region45: #{residual_block_forward.12} parent=27 // pred_check
        %p441 = pneg %p116
      $region46: #{residual_block_forward.12} parent=27 // pred_check_branch
        %443 = sbr.rel (%p441) target = $region48
      $region47: #{residual_block_forward.12} parent=27 // pred_region
        _
      $region48: #{residual_block_forward.12} parent=27 // pred_fallthru
        _
      // Predicated region
      $region49: #{residual_block_forward.12} parent=27 // pred_check
        %p444 = pneg %p137
      $region50: #{residual_block_forward.12} parent=27 // pred_check_branch
        %446 = sbr.rel (%p444) target = $region52
      $region51: #{residual_block_forward.12} parent=27 // pred_region
        _
      $region52: #{residual_block_forward.12} parent=27 // pred_fallthru
        _
    $region28: #{residual_block_forward.12} parent=5 // pred_fallthru
      _
    %p447 = scmp.le.s32.totalorder 2, %s11
    // Predicated region
    $region53: #{residual_block_forward.12} parent=5 // pred_check
      %p448 = pneg %p447
    $region54: #{residual_block_forward.12} parent=5 // pred_check_branch
      %450 = sbr.rel (%p448) target = $region56
    $region55: #{residual_block_forward.12} parent=5 // pred_region
      %s451 = ssub.s32 %s11, 2
      // Predicated region
      $region57: #{residual_block_forward.12} parent=55 // pred_check
        %p452 = pneg %p101
      $region58: #{residual_block_forward.12} parent=55 // pred_check_branch
        %454 = sbr.rel (%p452) target = $region60
      $region59: #{residual_block_forward.12} parent=55 // pred_region
        %s455 = sadd.s32 %s22, %s23
        %s456 = smul.u32 8, %s455
        %p457 = scmp.lt.s32.totalorder %s456, 15
        %s458 = scalar_select %p457, %s456, 15
        %s459 = smul.addr %s458, 8
        %s460 = scalar_lea.vmem %s2, %s459
      $region60: #{residual_block_forward.12} parent=55 // pred_fallthru
        _
    $region56: #{residual_block_forward.12} parent=5 // pred_fallthru
      _
  $region6: #{residual_block_forward.12} parent=0 // loop_footer
    %s15 = sadd.s32 1, %s11
  $region7: #{residual_block_forward.12} parent=0 // loop_footer_branch
    %10 = sbr.rel target = $region3
  $region8: #{residual_block_forward.12} parent=0 // loop_exit
    _

// kernel: residual_block_forward.15
$region0: #{residual_block_forward.15}
  #allocation0 [shape = 'u32[]', space=smem, size = 0x4, offset = 0x4, fixed_abs, tag = 'smem constant byte address 0x4 - core index']
  #allocation1 [shape = 'u32[144,128]{1,0:T(1,128)}', space=vmem, size = 0x12000, scoped, tag = 'internal scratch']
  %s0 = inlined_call_operand.vmem [shape: f32[128,128], index: 0, kind: input, shape index: {}]
  %s1 = inlined_call_operand.vmem [shape: f32[1,128], index: 1, kind: input, shape index: {}]
  %s2 = inlined_call_operand.vmem [shape: f32[1,128], index: 2, kind: input, shape index: {}]
  %s3 = inlined_call_operand.vmem [shape: f32[128,128], index: 3, kind: input, shape index: {}]
  %s4 = inlined_call_operand.vmem [shape: f32[128,128], index: 4, kind: output, shape index: {}]
  %s5 = sld [smem:[#allocation0]]
  $region26: #{residual_block_forward.15} parent=0
    _
  %s7 = ssub.s32 1, %s5
  %s8 = scalar_select 0, %s7, %s5
  // Predicated region
  $region2: #{residual_block_forward.15} parent=0 // pred_check
    _
  $region3: #{residual_block_forward.15} parent=0 // pred_check_branch
    %10 = sbr.rel (0) target = $region5
  $region4: #{residual_block_forward.15} parent=0 // pred_region
    _
  $region5: #{residual_block_forward.15} parent=0 // pred_fallthru
    _
  // Predicated region
  $region6: #{residual_block_forward.15} parent=0 // pred_check
    _
  $region7: #{residual_block_forward.15} parent=0 // pred_check_branch
    %12 = sbr.rel (0) target = $region9
  $region8: #{residual_block_forward.15} parent=0 // pred_region
    _
  $region9: #{residual_block_forward.15} parent=0 // pred_fallthru
    _
  // Predicated region
  $region10: #{residual_block_forward.15} parent=0 // pred_check
    _
  $region11: #{residual_block_forward.15} parent=0 // pred_check_branch
    %14 = sbr.rel (0) target = $region13
  $region12: #{residual_block_forward.15} parent=0 // pred_region
    _
  $region13: #{residual_block_forward.15} parent=0 // pred_fallthru
    _
  // Predicated region
  $region14: #{residual_block_forward.15} parent=0 // pred_check
    _
  $region15: #{residual_block_forward.15} parent=0 // pred_check_branch
    %16 = sbr.rel (0) target = $region17
  $region16: #{residual_block_forward.15} parent=0 // pred_region
    _
  $region17: #{residual_block_forward.15} parent=0 // pred_fallthru
    _
  %v17 = vld [vmem:[%s0] sm:$0xff]
  %v18 = vld [vmem:[%s0 + $0x8] sm:$0xff]
  %v19 = vld [vmem:[%s0 + $0x10] sm:$0xff]
  %v20 = vld [vmem:[%s0 + $0x18] sm:$0xff]
  %v21 = vld [vmem:[%s0 + $0x20] sm:$0xff]
  %v22 = vld [vmem:[%s0 + $0x28] sm:$0xff]
  %v23 = vld [vmem:[%s0 + $0x30] sm:$0xff]
  %v24 = vld [vmem:[%s0 + $0x38] sm:$0xff]
  %v25 = vld [vmem:[%s0 + $0x40] sm:$0xff]
  %v26 = vld [vmem:[%s0 + $0x48] sm:$0xff]
  %v27 = vld [vmem:[%s0 + $0x50] sm:$0xff]
  %v28 = vld [vmem:[%s0 + $0x58] sm:$0xff]
  %v29 = vld [vmem:[%s0 + $0x60] sm:$0xff]
  %v30 = vld [vmem:[%s0 + $0x68] sm:$0xff]
  %v31 = vld [vmem:[%s0 + $0x70] sm:$0xff]
  %v32 = vld [vmem:[%s0 + $0x78] sm:$0xff]
  %v33 = vld [vmem:[%s1] sm:$0x1]
  %v35 = vlaneseq
  %v36 = vshrl.u32 %v35, 7
  %v37 = vsub.s32 0, %v36
  %v38 = vrot.slane %v33, %v37
  %v40 = vmul.f32 %v17, %v38
  %v41 = vmul.f32 %v18, %v38
  %v42 = vmul.f32 %v19, %v38
  %v43 = vmul.f32 %v20, %v38
  %v44 = vmul.f32 %v21, %v38
  %v45 = vmul.f32 %v22, %v38
  %v46 = vmul.f32 %v23, %v38
  %v47 = vmul.f32 %v24, %v38
  %v48 = vmul.f32 %v25, %v38
  %v49 = vmul.f32 %v26, %v38
  %v50 = vmul.f32 %v27, %v38
  %v51 = vmul.f32 %v28, %v38
  %v52 = vmul.f32 %v29, %v38
  %v53 = vmul.f32 %v30, %v38
  %v54 = vmul.f32 %v31, %v38
  %v55 = vmul.f32 %v32, %v38
  %v56 = vld [vmem:[%s2] sm:$0x1]
  %v58 = vlaneseq
  %v59 = vshrl.u32 %v58, 7
  %v60 = vsub.s32 0, %v59
  %v61 = vrot.slane %v56, %v60
  %v63 = vadd.f32 %v40, %v61
  %v64 = vadd.f32 %v41, %v61
  %v65 = vadd.f32 %v42, %v61
  %v66 = vadd.f32 %v43, %v61
  %v67 = vadd.f32 %v44, %v61
  %v68 = vadd.f32 %v45, %v61
  %v69 = vadd.f32 %v46, %v61
  %v70 = vadd.f32 %v47, %v61
  %v71 = vadd.f32 %v48, %v61
  %v72 = vadd.f32 %v49, %v61
  %v73 = vadd.f32 %v50, %v61
  %v74 = vadd.f32 %v51, %v61
  %v75 = vadd.f32 %v52, %v61
  %v76 = vadd.f32 %v53, %v61
  %v77 = vadd.f32 %v54, %v61
  %v78 = vadd.f32 %v55, %v61
  %v79 = vld [vmem:[%s3] sm:$0xff]
  %v80 = vld [vmem:[%s3 + $0x8] sm:$0xff]
  %v81 = vld [vmem:[%s3 + $0x10] sm:$0xff]
  %v82 = vld [vmem:[%s3 + $0x18] sm:$0xff]
  %v83 = vld [vmem:[%s3 + $0x20] sm:$0xff]
  %v84 = vld [vmem:[%s3 + $0x28] sm:$0xff]
  %v85 = vld [vmem:[%s3 + $0x30] sm:$0xff]
  %v86 = vld [vmem:[%s3 + $0x38] sm:$0xff]
  %v87 = vld [vmem:[%s3 + $0x40] sm:$0xff]
  %v88 = vld [vmem:[%s3 + $0x48] sm:$0xff]
  %v89 = vld [vmem:[%s3 + $0x50] sm:$0xff]
  %v90 = vld [vmem:[%s3 + $0x58] sm:$0xff]
  %v91 = vld [vmem:[%s3 + $0x60] sm:$0xff]
  %v92 = vld [vmem:[%s3 + $0x68] sm:$0xff]
  %v93 = vld [vmem:[%s3 + $0x70] sm:$0xff]
  %v94 = vld [vmem:[%s3 + $0x78] sm:$0xff]
  %vm95 = vcmp.ge.f32.partialorder %v63, 0.0
  %vm96 = vcmp.ge.f32.partialorder %v64, 0.0
  %vm97 = vcmp.ge.f32.partialorder %v65, 0.0
  %vm98 = vcmp.ge.f32.partialorder %v66, 0.0
  %vm99 = vcmp.ge.f32.partialorder %v67, 0.0
  %vm100 = vcmp.ge.f32.partialorder %v68, 0.0
  %vm101 = vcmp.ge.f32.partialorder %v69, 0.0
  %vm102 = vcmp.ge.f32.partialorder %v70, 0.0
  %vm103 = vcmp.ge.f32.partialorder %v71, 0.0
  %vm104 = vcmp.ge.f32.partialorder %v72, 0.0
  %vm105 = vcmp.ge.f32.partialorder %v73, 0.0
  %vm106 = vcmp.ge.f32.partialorder %v74, 0.0
  %vm107 = vcmp.ge.f32.partialorder %v75, 0.0
  %vm108 = vcmp.ge.f32.partialorder %v76, 0.0
  %vm109 = vcmp.ge.f32.partialorder %v77, 0.0
  %vm110 = vcmp.ge.f32.partialorder %v78, 0.0
  %v111 = vmul.f32 %v63, 0.1
  %v112 = vmul.f32 %v64, 0.1
  %v113 = vmul.f32 %v65, 0.1
  %v114 = vmul.f32 %v66, 0.1
  %v115 = vmul.f32 %v67, 0.1
  %v116 = vmul.f32 %v68, 0.1
  %v117 = vmul.f32 %v69, 0.1
  %v118 = vmul.f32 %v70, 0.1
  %v119 = vmul.f32 %v71, 0.1
  %v120 = vmul.f32 %v72, 0.1
  %v121 = vmul.f32 %v73, 0.1
  %v122 = vmul.f32 %v74, 0.1
  %v123 = vmul.f32 %v75, 0.1
  %v124 = vmul.f32 %v76, 0.1
  %v125 = vmul.f32 %v77, 0.1
  %v126 = vmul.f32 %v78, 0.1
  %v127 = vsel %vm95, %v63, %v111
  %v128 = vsel %vm96, %v64, %v112
  %v129 = vsel %vm97, %v65, %v113
  %v130 = vsel %vm98, %v66, %v114
  %v131 = vsel %vm99, %v67, %v115
  %v132 = vsel %vm100, %v68, %v116
  %v133 = vsel %vm101, %v69, %v117
  %v134 = vsel %vm102, %v70, %v118
  %v135 = vsel %vm103, %v71, %v119
  %v136 = vsel %vm104, %v72, %v120
  %v137 = vsel %vm105, %v73, %v121
  %v138 = vsel %vm106, %v74, %v122
  %v139 = vsel %vm107, %v75, %v123
  %v140 = vsel %vm108, %v76, %v124
  %v141 = vsel %vm109, %v77, %v125
  %v142 = vsel %vm110, %v78, %v126
  %v143 = vadd.f32 %v79, %v127
  %v144 = vadd.f32 %v80, %v128
  %v145 = vadd.f32 %v81, %v129
  %v146 = vadd.f32 %v82, %v130
  %v147 = vadd.f32 %v83, %v131
  %v148 = vadd.f32 %v84, %v132
  %v149 = vadd.f32 %v85, %v133
  %v150 = vadd.f32 %v86, %v134
  %v151 = vadd.f32 %v87, %v135
  %v152 = vadd.f32 %v88, %v136
  %v153 = vadd.f32 %v89, %v137
  %v154 = vadd.f32 %v90, %v138
  %v155 = vadd.f32 %v91, %v139
  %v156 = vadd.f32 %v92, %v140
  %v157 = vadd.f32 %v93, %v141
  %v158 = vadd.f32 %v94, %v142
  %159 = vst [vmem:[%s4] sm:$0xff] %v143
  %160 = vst [vmem:[%s4 + $0x8] sm:$0xff] %v144
  %161 = vst [vmem:[%s4 + $0x10] sm:$0xff] %v145
  %162 = vst [vmem:[%s4 + $0x18] sm:$0xff] %v146
  %163 = vst [vmem:[%s4 + $0x20] sm:$0xff] %v147
  %164 = vst [vmem:[%s4 + $0x28] sm:$0xff] %v148
  %165 = vst [vmem:[%s4 + $0x30] sm:$0xff] %v149
  %166 = vst [vmem:[%s4 + $0x38] sm:$0xff] %v150
  %167 = vst [vmem:[%s4 + $0x40] sm:$0xff] %v151
  %168 = vst [vmem:[%s4 + $0x48] sm:$0xff] %v152
  %169 = vst [vmem:[%s4 + $0x50] sm:$0xff] %v153
  %170 = vst [vmem:[%s4 + $0x58] sm:$0xff] %v154
  %171 = vst [vmem:[%s4 + $0x60] sm:$0xff] %v155
  %172 = vst [vmem:[%s4 + $0x68] sm:$0xff] %v156
  %173 = vst [vmem:[%s4 + $0x70] sm:$0xff] %v157
  %174 = vst [vmem:[%s4 + $0x78] sm:$0xff] %v158
  // Predicated region
  $region18: #{residual_block_forward.15} parent=0 // pred_check
    _
  $region19: #{residual_block_forward.15} parent=0 // pred_check_branch
    %176 = sbr.rel (0) target = $region21
  $region20: #{residual_block_forward.15} parent=0 // pred_region
    _
  $region21: #{residual_block_forward.15} parent=0 // pred_fallthru
    _
  // Predicated region
  $region22: #{residual_block_forward.15} parent=0 // pred_check
    _
  $region23: #{residual_block_forward.15} parent=0 // pred_check_branch
    %178 = sbr.rel (0) target = $region25
  $region24: #{residual_block_forward.15} parent=0 // pred_region
    _
  $region25: #{residual_block_forward.15} parent=0 // pred_fallthru
    _

// kernel: residual_block_forward.10
$region0: #{residual_block_forward.10}
  #allocation0 [shape = 'u32[]', space=smem, size = 0x4, offset = 0x4, fixed_abs, tag = 'smem constant byte address 0x4 - core index']
  #allocation1 [shape = 'u32[144,128]{1,0:T(1,128)}', space=vmem, size = 0x12000, scoped, tag = 'internal scratch']
  #allocation2 [shape = 'f32[1,128]{1,0:T(1,128)}', space=vmem, size = 0x200, scoped, tag = 'scratch operand']
  #allocation3 [shape = 'f32[1,128]{1,0:T(1,128)}', space=vmem, size = 0x200, scoped, tag = 'scratch operand']
  %s0 = inlined_call_operand.vmem [shape: bf16[2,9,9,128], index: 0, kind: input, shape index: {}]
  %s1 = inlined_call_operand.vmem [shape: bf16[2,9,9,128], index: 1, kind: input, shape index: {}]
  %s2 = inlined_call_operand.vmem [shape: bf16[2,9,9,128], index: 2, kind: input, shape index: {}]
  %s3 = inlined_call_operand.vmem [shape: bf16[2,9,9,128], index: 3, kind: input, shape index: {}]
  %s4 = inlined_call_operand.vmem [shape: bf16[9,128,128], index: 4, kind: input, shape index: {}]
  %s5 = inlined_call_operand.vmem [shape: f32[128,128], index: 5, kind: output, shape index: {0}]
  %s6 = inlined_call_operand.vmem [shape: f32[1,128], index: 6, kind: output, shape index: {1}]
  %s7 = inlined_call_operand.vmem [shape: f32[1,128], index: 7, kind: output, shape index: {2}]
  %8 = xla_tuple %s5, %s6, %s7
  %s9 = sld [smem:[#allocation0]]
  $region73: #{residual_block_forward.10} parent=0
    _
  %s11 = ssub.s32 1, %s9
  %s12 = scalar_select 0, %s11, %s9
  loop: start=0, step=1, limit=4
  $region2: #{residual_block_forward.10} parent=0 // loop_pre_header
    _
  $region3: #{residual_block_forward.10} parent=0 // loop_header
    %s14 = sphi 0, %s18
    %p15 = scmp.ge.s32.totalorder %s14, 4
    %s21 = sphi 0, %s33
    %s22 = sphi 0, %s29
    %s23 = sphi 0, %s21
    %s24 = sphi 0, %s22
    %s25 = sphi 0, %s23
    %s26 = sphi 0, %s24
    %s36 = sphi 0, %s38
    %s39 = sphi 0, %s36
    %s40 = sphi 0, %s39
    %s56 = sphi 0, %s40
    %s62 = sphi 0, %s64
    %s65 = sphi 0, %s62
    %s66 = sphi 0, %s65
    %s82 = sphi 0, %s66
    %s88 = sphi 0, %s90
    %s91 = sphi 0, %s88
    %s92 = sphi 0, %s91
    %s108 = sphi 0, %s92
    %s114 = sphi 0, %s116
    %s117 = sphi 0, %s114
    %s118 = sphi 0, %s117
    %s134 = sphi 0, %s118
    %s138 = sphi 0, %s138
    %s140 = sphi 0, %s138
    %s141 = sphi 0, %s140
    %s155 = sphi 0, %s141
    %s163 = sphi 0, %s165
    %s166 = sphi 0, %s163
    %s167 = sphi 0, %s166
    %s183 = sphi 0, %s167
    %s187 = sphi 0, %s187
    %s189 = sphi 0, %s187
    %s190 = sphi 0, %s189
    %s204 = sphi 0, %s190
    %s208 = sphi 0, %s208
    %s210 = sphi 0, %s208
    %s211 = sphi 0, %s210
    %s225 = sphi 0, %s211
  $region4: #{residual_block_forward.10} parent=0 // loop_header_branch
    %17 = sbr.rel (%p15) target = $region8
  $region5: #{residual_block_forward.10} parent=0 // loop_body
    %s19 = ssub.s32 %s14, 1
    %s20 = ssub.s32 %s14, 2
    %s27 = sadd.s32 1, %s22
    %p28 = scmp.ge.s32.totalorder %s27, 1
    %s29 = scalar_select %p28, 0, %s27
    %s30 = sadd.s32 1, %s21
    %s31 = scalar_select %p28, %s30, %s21
    %p32 = scmp.ge.s32.totalorder %s31, 2
    %s33 = scalar_select %p32, 0, %s31
    %s34 = ssub.s32 %s21, %s33
    %p35 = scmp.eq.s32.totalorder %s34, 0
    %s37 = sadd.s32 %s36, 1
    %s38 = scalar_select %p35, %s36, %s37
    %p41 = pneg %p35
    %p42 = scmp.eq.s32.totalorder %s14, 1
    %p43 = por %p41, %p42
    %p44 = scmp.ne.s32.totalorder %s36, %s39
    %p45 = scmp.eq.s32.totalorder %s14, 0
    %p46 = por %p44, %p45
    %p47 = scmp.ne.s32.totalorder %s36, %s39
    %p48 = scmp.eq.s32.totalorder %s19, 1
    %p49 = por %p47, %p48
    %p50 = scmp.ne.s32.totalorder %s39, %s40
    %p51 = scmp.eq.s32.totalorder %s19, 0
    %p52 = por %p50, %p51
    %p53 = scmp.ne.s32.totalorder %s39, %s40
    %p54 = scmp.eq.s32.totalorder %s20, 1
    %p55 = por %p53, %p54
    %p57 = scmp.ne.s32.totalorder %s40, %s56
    %p58 = scmp.eq.s32.totalorder %s20, 0
    %p59 = por %p57, %p58
    %s60 = ssub.s32 %s21, %s33
    %p61 = scmp.eq.s32.totalorder %s60, 0
    %s63 = sadd.s32 %s62, 1
    %s64 = scalar_select %p61, %s62, %s63
    %p67 = pneg %p61
    %p68 = scmp.eq.s32.totalorder %s14, 1
    %p69 = por %p67, %p68
    %p70 = scmp.ne.s32.totalorder %s62, %s65
    %p71 = scmp.eq.s32.totalorder %s14, 0
    %p72 = por %p70, %p71
    %p73 = scmp.ne.s32.totalorder %s62, %s65
    %p74 = scmp.eq.s32.totalorder %s19, 1
    %p75 = por %p73, %p74
    %p76 = scmp.ne.s32.totalorder %s65, %s66
    %p77 = scmp.eq.s32.totalorder %s19, 0
    %p78 = por %p76, %p77
    %p79 = scmp.ne.s32.totalorder %s65, %s66
    %p80 = scmp.eq.s32.totalorder %s20, 1
    %p81 = por %p79, %p80
    %p83 = scmp.ne.s32.totalorder %s66, %s82
    %p84 = scmp.eq.s32.totalorder %s20, 0
    %p85 = por %p83, %p84
    %s86 = ssub.s32 %s21, %s33
    %p87 = scmp.eq.s32.totalorder %s86, 0
    %s89 = sadd.s32 %s88, 1
    %s90 = scalar_select %p87, %s88, %s89
    %p93 = pneg %p87
    %p94 = scmp.eq.s32.totalorder %s14, 1
    %p95 = por %p93, %p94
    %p96 = scmp.ne.s32.totalorder %s88, %s91
    %p97 = scmp.eq.s32.totalorder %s14, 0
    %p98 = por %p96, %p97
    %p99 = scmp.ne.s32.totalorder %s88, %s91
    %p100 = scmp.eq.s32.totalorder %s19, 1
    %p101 = por %p99, %p100
    %p102 = scmp.ne.s32.totalorder %s91, %s92
    %p103 = scmp.eq.s32.totalorder %s19, 0
    %p104 = por %p102, %p103
    %p105 = scmp.ne.s32.totalorder %s91, %s92
    %p106 = scmp.eq.s32.totalorder %s20, 1
    %p107 = por %p105, %p106
    %p109 = scmp.ne.s32.totalorder %s92, %s108
    %p110 = scmp.eq.s32.totalorder %s20, 0
    %p111 = por %p109, %p110
    %s112 = ssub.s32 %s21, %s33
    %p113 = scmp.eq.s32.totalorder %s112, 0
    %s115 = sadd.s32 %s114, 1
    %s116 = scalar_select %p113, %s114, %s115
    %p119 = pneg %p113
    %p120 = scmp.eq.s32.totalorder %s14, 1
    %p121 = por %p119, %p120
    %p122 = scmp.ne.s32.totalorder %s114, %s117
    %p123 = scmp.eq.s32.totalorder %s14, 0
    %p124 = por %p122, %p123
    %p125 = scmp.ne.s32.totalorder %s114, %s117
    %p126 = scmp.eq.s32.totalorder %s19, 1
    %p127 = por %p125, %p126
    %p128 = scmp.ne.s32.totalorder %s117, %s118
    %p129 = scmp.eq.s32.totalorder %s19, 0
    %p130 = por %p128, %p129
    %p131 = scmp.ne.s32.totalorder %s117, %s118
    %p132 = scmp.eq.s32.totalorder %s20, 1
    %p133 = por %p131, %p132
    %p135 = scmp.ne.s32.totalorder %s118, %s134
    %p136 = scmp.eq.s32.totalorder %s20, 0
    %p137 = por %p135, %p136
    %s139 = sadd.s32 %s138, 1
    %p142 = scmp.eq.s32.totalorder %s14, 1
    %p143 = scmp.ne.s32.totalorder %s138, %s140
    %p144 = scmp.eq.s32.totalorder %s14, 0
    %p145 = por %p143, %p144
    %p146 = scmp.ne.s32.totalorder %s138, %s140
    %p147 = scmp.eq.s32.totalorder %s19, 1
    %p148 = por %p146, %p147
    %p149 = scmp.ne.s32.totalorder %s140, %s141
    %p150 = scmp.eq.s32.totalorder %s19, 0
    %p151 = por %p149, %p150
    %p152 = scmp.ne.s32.totalorder %s140, %s141
    %p153 = scmp.eq.s32.totalorder %s20, 1
    %p154 = por %p152, %p153
    %p156 = scmp.ne.s32.totalorder %s141, %s155
    %p157 = scmp.eq.s32.totalorder %s20, 0
    %p158 = por %p156, %p157
    %s159 = sadd.s32 %s21, %s22
    %s160 = sadd.s32 %s33, %s29
    %s161 = ssub.s32 %s159, %s160
    %p162 = scmp.eq.s32.totalorder %s161, 0
    %s164 = sadd.s32 %s163, 1
    %s165 = scalar_select %p162, %s163, %s164
    %p168 = pneg %p162
    %p169 = scmp.eq.s32.totalorder %s14, 1
    %p170 = por %p168, %p169
    %p171 = scmp.ne.s32.totalorder %s163, %s166
    %p172 = scmp.eq.s32.totalorder %s14, 0
    %p173 = por %p171, %p172
    %p174 = scmp.ne.s32.totalorder %s163, %s166
    %p175 = scmp.eq.s32.totalorder %s19, 1
    %p176 = por %p174, %p175
    %p177 = scmp.ne.s32.totalorder %s166, %s167
    %p178 = scmp.eq.s32.totalorder %s19, 0
    %p179 = por %p177, %p178
    %p180 = scmp.ne.s32.totalorder %s166, %s167
    %p181 = scmp.eq.s32.totalorder %s20, 1
    %p182 = por %p180, %p181
    %p184 = scmp.ne.s32.totalorder %s167, %s183
    %p185 = scmp.eq.s32.totalorder %s20, 0
    %p186 = por %p184, %p185
    %s188 = sadd.s32 %s187, 1
    %p191 = scmp.eq.s32.totalorder %s14, 1
    %p192 = scmp.ne.s32.totalorder %s187, %s189
    %p193 = scmp.eq.s32.totalorder %s14, 0
    %p194 = por %p192, %p193
    %p195 = scmp.ne.s32.totalorder %s187, %s189
    %p196 = scmp.eq.s32.totalorder %s19, 1
    %p197 = por %p195, %p196
    %p198 = scmp.ne.s32.totalorder %s189, %s190
    %p199 = scmp.eq.s32.totalorder %s19, 0
    %p200 = por %p198, %p199
    %p201 = scmp.ne.s32.totalorder %s189, %s190
    %p202 = scmp.eq.s32.totalorder %s20, 1
    %p203 = por %p201, %p202
    %p205 = scmp.ne.s32.totalorder %s190, %s204
    %p206 = scmp.eq.s32.totalorder %s20, 0
    %p207 = por %p205, %p206
    %s209 = sadd.s32 %s208, 1
    %p212 = scmp.eq.s32.totalorder %s14, 1
    %p213 = scmp.ne.s32.totalorder %s208, %s210
    %p214 = scmp.eq.s32.totalorder %s14, 0
    %p215 = por %p213, %p214
    %p216 = scmp.ne.s32.totalorder %s208, %s210
    %p217 = scmp.eq.s32.totalorder %s19, 1
    %p218 = por %p216, %p217
    %p219 = scmp.ne.s32.totalorder %s210, %s211
    %p220 = scmp.eq.s32.totalorder %s19, 0
    %p221 = por %p219, %p220
    %p222 = scmp.ne.s32.totalorder %s210, %s211
    %p223 = scmp.eq.s32.totalorder %s20, 1
    %p224 = por %p222, %p223
    %p226 = scmp.ne.s32.totalorder %s211, %s225
    %p227 = scmp.eq.s32.totalorder %s20, 0
    %p228 = por %p226, %p227
    %p229 = scmp.le.s32.totalorder 1, %s14
    %p230 = scmp.lt.s32.totalorder %s14, 3
    %p231 = pnand %p229, %p230
    %p232 = pneg %p231
    // Predicated region
    $region9: #{residual_block_forward.10} parent=5 // pred_check
      _
    $region10: #{residual_block_forward.10} parent=5 // pred_check_branch
      %234 = sbr.rel (%p231) target = $region12
    $region11: #{residual_block_forward.10} parent=5 // pred_region
      %s235 = ssub.s32 %s14, 1
      // Predicated region
      $region13: #{residual_block_forward.10} parent=11 // pred_check
        %p236 = pneg %p151
      $region14: #{residual_block_forward.10} parent=11 // pred_check_branch
        %238 = sbr.rel (%p236) target = $region16
      $region15: #{residual_block_forward.10} parent=11 // pred_region
        _
      $region16: #{residual_block_forward.10} parent=11 // pred_fallthru
        _
    $region12: #{residual_block_forward.10} parent=5 // pred_fallthru
      _
    %p239 = scmp.lt.s32.totalorder %s14, 2
    // Predicated region
    $region17: #{residual_block_forward.10} parent=5 // pred_check
      %p240 = pneg %p239
    $region18: #{residual_block_forward.10} parent=5 // pred_check_branch
      %242 = sbr.rel (%p240) target = $region20
    $region19: #{residual_block_forward.10} parent=5 // pred_region
      // Predicated region
      $region21: #{residual_block_forward.10} parent=19 // pred_check
        %p243 = pneg %p46
      $region22: #{residual_block_forward.10} parent=19 // pred_check_branch
        %245 = sbr.rel (%p243) target = $region24
      $region23: #{residual_block_forward.10} parent=19 // pred_region
        %p246 = scmp.lt.s32.totalorder %s21, 1
        %s247 = scalar_select %p246, %s21, 1
        %s248 = smul.addr %s247, 18
        %s249 = smul.addr %s248, 4
        %s250 = scalar_lea.vmem %s0, %s249
      $region24: #{residual_block_forward.10} parent=19 // pred_fallthru
        _
      // Predicated region
      $region25: #{residual_block_forward.10} parent=19 // pred_check
        %p251 = pneg %p72
      $region26: #{residual_block_forward.10} parent=19 // pred_check_branch
        %253 = sbr.rel (%p251) target = $region28
      $region27: #{residual_block_forward.10} parent=19 // pred_region
        %p254 = scmp.lt.s32.totalorder %s21, 1
        %s255 = scalar_select %p254, %s21, 1
        %s256 = smul.addr %s255, 18
        %s257 = smul.addr %s256, 4
        %s258 = scalar_lea.vmem %s1, %s257
      $region28: #{residual_block_forward.10} parent=19 // pred_fallthru
        _
      // Predicated region
      $region29: #{residual_block_forward.10} parent=19 // pred_check
        %p259 = pneg %p98
      $region30: #{residual_block_forward.10} parent=19 // pred_check_branch
        %261 = sbr.rel (%p259) target = $region32
      $region31: #{residual_block_forward.10} parent=19 // pred_region
        %p262 = scmp.lt.s32.totalorder %s21, 1
        %s263 = scalar_select %p262, %s21, 1
        %s264 = smul.addr %s263, 18
        %s265 = smul.addr %s264, 4
        %s266 = scalar_lea.vmem %s2, %s265
      $region32: #{residual_block_forward.10} parent=19 // pred_fallthru
        _
      // Predicated region
      $region33: #{residual_block_forward.10} parent=19 // pred_check
        %p267 = pneg %p124
      $region34: #{residual_block_forward.10} parent=19 // pred_check_branch
        %269 = sbr.rel (%p267) target = $region36
      $region35: #{residual_block_forward.10} parent=19 // pred_region
        %p270 = scmp.lt.s32.totalorder %s21, 1
        %s271 = scalar_select %p270, %s21, 1
        %s272 = smul.addr %s271, 18
        %s273 = smul.addr %s272, 4
        %s274 = scalar_lea.vmem %s3, %s273
      $region36: #{residual_block_forward.10} parent=19 // pred_fallthru
        _
    $region20: #{residual_block_forward.10} parent=5 // pred_fallthru
      _
    %p275 = scmp.le.s32.totalorder 1, %s14
    %p276 = scmp.lt.s32.totalorder %s14, 3
    %p277 = pnand %p275, %p276
    %p278 = pneg %p277
    // Predicated region
    $region37: #{residual_block_forward.10} parent=5 // pred_check
      _
    $region38: #{residual_block_forward.10} parent=5 // pred_check_branch
      %280 = sbr.rel (%p277) target = $region40
    $region39: #{residual_block_forward.10} parent=5 // pred_region
      %s281 = ssub.s32 %s14, 1
      %p282 = scmp.lt.s32.totalorder %s23, 1
      %s283 = scalar_select %p282, %s23, 1
      %s284 = smul.addr %s283, 18
      %s285 = smul.addr %s284, 4
      %s286 = scalar_lea.vmem %s0, %s285
      %p287 = pneg %p52
      %p288 = pneg %p49
      %p289 = scmp.lt.s32.totalorder %s23, 1
      %s290 = scalar_select %p289, %s23, 1
      %s291 = smul.addr %s290, 18
      %s292 = smul.addr %s291, 4
      %s293 = scalar_lea.vmem %s1, %s292
      %p294 = pneg %p78
      %p295 = pneg %p75
      %p296 = scmp.lt.s32.totalorder %s23, 1
      %s297 = scalar_select %p296, %s23, 1
      %s298 = smul.addr %s297, 18
      %s299 = smul.addr %s298, 4
      %s300 = scalar_lea.vmem %s2, %s299
      %p301 = pneg %p104
      %p302 = pneg %p101
      %p303 = scmp.lt.s32.totalorder %s23, 1
      %s304 = scalar_select %p303, %s23, 1
      %s305 = smul.addr %s304, 18
      %s306 = smul.addr %s305, 4
      %s307 = scalar_lea.vmem %s3, %s306
      %p308 = pneg %p130
      %p309 = pneg %p127
      %p310 = pneg %p151
      %p311 = pneg %p148
      %p312 = pneg %p179
      %p313 = pneg %p176
      %s314 = sadd.s32 %s23, %s24
      %s315 = smul.u32 8, %s314
      %p316 = scmp.lt.s32.totalorder %s315, 15
      %s317 = scalar_select %p316, %s315, 15
      %s318 = smul.addr %s317, 8
      %s319 = scalar_lea.vmem %s5, %s318
      %p320 = pneg %p200
      %p321 = pneg %p197
      %p322 = pneg %p221
      %p323 = pneg %p218
      %p324 = scmp.lt.s32.totalorder %s23, 1
      %s325 = scalar_select %p324, %s23, 1
      %s326 = smul.addr %s325, 18
      %s327 = smul.addr %s326, 4
      %s328 = scalar_lea.vmem %s0, %s327
      %p329 = scmp.lt.s32.totalorder %s23, 1
      %s330 = scalar_select %p329, %s23, 1
      %s331 = smul.addr %s330, 18
      %s332 = smul.addr %s331, 4
      %s333 = scalar_lea.vmem %s1, %s332
      %p334 = scmp.lt.s32.totalorder %s23, 1
      %s335 = scalar_select %p334, %s23, 1
      %s336 = smul.addr %s335, 18
      %s337 = smul.addr %s336, 4
      %s338 = scalar_lea.vmem %s2, %s337
      %p339 = scmp.lt.s32.totalorder %s23, 1
      %s340 = scalar_select %p339, %s23, 1
      %s341 = smul.addr %s340, 18
      %s342 = smul.addr %s341, 4
      %s343 = scalar_lea.vmem %s3, %s342
      %s344 = sadd.s32 %s23, %s24
      %s345 = smul.u32 8, %s344
      %p346 = scmp.lt.s32.totalorder %s345, 15
      %s347 = scalar_select %p346, %s345, 15
      %s348 = smul.addr %s347, 8
      %s349 = scalar_lea.vmem %s5, %s348
      %s350 = sadd.s32 %s23, %s24
      %s351 = smul.u32 8, %s350
      %s353 = smul.u32 %s24, 8
      %s354 = smul.u32 %s353, 2
      %s355 = smul.addr %s354, 4
      %s356 = scalar_lea.vmem %s328, %s355
      %v357 = vld [vmem:[%s356] sm:$0xf]
      %v358 = vld [vmem:[%s356 + $0x8] sm:$0xf]
      %v359 = vld [vmem:[%s356 + $0x10] sm:$0xf]
      %v360 = vld [vmem:[%s356 + $0x18] sm:$0xf]
      %v361 = vld [vmem:[%s356 + $0x20] sm:$0xf]
      %v362 = vld [vmem:[%s356 + $0x28] sm:$0xf]
      %v363 = vld [vmem:[%s356 + $0x30] sm:$0xf]
      %v364 = vld [vmem:[%s356 + $0x38] sm:$0xf]
      %v365 = vunpack.c.l.bf16 %v357
      %v366 = vunpack.c.l.bf16 %v358
      %v367 = vunpack.c.l.bf16 %v359
      %v368 = vunpack.c.l.bf16 %v360
      %v369 = vunpack.c.l.bf16 %v361
      %v370 = vunpack.c.l.bf16 %v362
      %v371 = vunpack.c.l.bf16 %v363
      %v372 = vunpack.c.l.bf16 %v364
      %v373 = vpack.c.bf16 %v366, %v365
      %v374 = vpack.c.bf16 %v368, %v367
      %v375 = vpack.c.bf16 %v370, %v369
      %v376 = vpack.c.bf16 %v372, %v371
      %v377 = vld [vmem:[%s4] sm:$0xf]
      %v378 = vld [vmem:[%s4 + $0x4] sm:$0xf]
      %v379 = vld [vmem:[%s4 + $0x8] sm:$0xf]
      %v380 = vld [vmem:[%s4 + $0xc] sm:$0xf]
      %v381 = vld [vmem:[%s4 + $0x10] sm:$0xf]
      %v382 = vld [vmem:[%s4 + $0x14] sm:$0xf]
      %v383 = vld [vmem:[%s4 + $0x18] sm:$0xf]
      %v384 = vld [vmem:[%s4 + $0x1c] sm:$0xf]
      %v385 = vld [vmem:[%s4 + $0x20] sm:$0xf]
      %v386 = vld [vmem:[%s4 + $0x24] sm:$0xf]
      %v387 = vld [vmem:[%s4 + $0x28] sm:$0xf]
      %v388 = vld [vmem:[%s4 + $0x2c] sm:$0xf]
      %v389 = vld [vmem:[%s4 + $0x30] sm:$0xf]
      %v390 = vld [vmem:[%s4 + $0x34] sm:$0xf]
      %v391 = vld [vmem:[%s4 + $0x38] sm:$0xf]
      %v392 = vld [vmem:[%s4 + $0x3c] sm:$0xf]
      %s393 = smul.addr %s354, 4
      %s394 = scalar_lea.vmem %s333, %s393
      %v395 = vld [vmem:[%s394] sm:$0xf]
      %v396 = vld [vmem:[%s394 + $0x8] sm:$0xf]
      %v397 = vld [vmem:[%s394 + $0x10] sm:$0xf]
      %v398 = vld [vmem:[%s394 + $0x18] sm:$0xf]
      %v399 = vld [vmem:[%s394 + $0x20] sm:$0xf]
      %v400 = vld [vmem:[%s394 + $0x28] sm:$0xf]
      %v401 = vld [vmem:[%s394 + $0x30] sm:$0xf]
      %v402 = vld [vmem:[%s394 + $0x38] sm:$0xf]
      %v403 = vunpack.c.l.bf16 %v395
      %v404 = vunpack.c.l.bf16 %v396
      %v405 = vunpack.c.l.bf16 %v397
      %v406 = vunpack.c.l.bf16 %v398
      %v407 = vunpack.c.l.bf16 %v399
      %v408 = vunpack.c.l.bf16 %v400
      %v409 = vunpack.c.l.bf16 %v401
      %v410 = vunpack.c.l.bf16 %v402
      %v411 = vpack.c.bf16 %v404, %v403
      %v412 = vpack.c.bf16 %v406, %v405
      %v413 = vpack.c.bf16 %v408, %v407
      %v414 = vpack.c.bf16 %v410, %v409
      %s415 = scalar_lea.vmem %s4, 64
      %v416 = vld [vmem:[%s415] sm:$0xf]
      %v417 = vld [vmem:[%s415 + $0x4] sm:$0xf]
      %v418 = vld [vmem:[%s415 + $0x8] sm:$0xf]
      %v419 = vld [vmem:[%s415 + $0xc] sm:$0xf]
      %v420 = vld [vmem:[%s415 + $0x10] sm:$0xf]
      %v421 = vld [vmem:[%s415 + $0x14] sm:$0xf]
      %v422 = vld [vmem:[%s415 + $0x18] sm:$0xf]
      %v423 = vld [vmem:[%s415 + $0x1c] sm:$0xf]
      %v424 = vld [vmem:[%s415 + $0x20] sm:$0xf]
      %v425 = vld [vmem:[%s415 + $0x24] sm:$0xf]
      %v426 = vld [vmem:[%s415 + $0x28] sm:$0xf]
      %v427 = vld [vmem:[%s415 + $0x2c] sm:$0xf]
      %v428 = vld [vmem:[%s415 + $0x30] sm:$0xf]
      %v429 = vld [vmem:[%s415 + $0x34] sm:$0xf]
      %v430 = vld [vmem:[%s415 + $0x38] sm:$0xf]
      %v431 = vld [vmem:[%s415 + $0x3c] sm:$0xf]
      %v448 = vunpack.c.l.b16 %v416
      %v449 = vunpack.c.l.b16 %v417
      %v450 = vunpack.c.l.b16 %v418
      %v451 = vunpack.c.l.b16 %v419
      %v452 = vunpack.c.l.b16 %v420
      %v453 = vunpack.c.l.b16 %v421
      %v454 = vunpack.c.l.b16 %v422
      %v455 = vunpack.c.l.b16 %v423
      %v456 = vunpack.c.l.b16 %v424
      %v457 = vunpack.c.l.b16 %v425
      %v458 = vunpack.c.l.b16 %v426
      %v459 = vunpack.c.l.b16 %v427
      %v460 = vunpack.c.l.b16 %v428
      %v461 = vunpack.c.l.b16 %v429
      %v462 = vunpack.c.l.b16 %v430
      %v463 = vunpack.c.l.b16 %v431
      %v464 = vpack.c.b16 %v449, %v448
      %v465 = vpack.c.b16 %v451, %v450
      %v466 = vpack.c.b16 %v453, %v452
      %v467 = vpack.c.b16 %v455, %v454
      %v468 = vpack.c.b16 %v457, %v456
      %v469 = vpack.c.b16 %v459, %v458
      %v470 = vpack.c.b16 %v461, %v460
      %v471 = vpack.c.b16 %v463, %v462
      %480 = vmatprep.subr.bf16.mxu0 0
      %481 = vmatpush1.bf16.msra.mxu0 %v464
      %482 = vmatprep.subr.bf16.mxu0 0
      %483 = vmatpush1.bf16.msra.mxu0 %v465
      %484 = vmatprep.subr.bf16.mxu0 0
      %485 = vmatpush1.bf16.msra.mxu0 %v466
      %486 = vmatprep.subr.bf16.mxu0 0
      %487 = vmatpush1.bf16.msra.mxu0 %v467
      %488 = vmatprep.subr.bf16.mxu0 0
      %489 = vmatpush1.bf16.msra.mxu0 %v468
      %490 = vmatprep.subr.bf16.mxu0 0
      %491 = vmatpush1.bf16.msra.mxu0 %v469
      %492 = vmatprep.subr.bf16.mxu0 0
      %493 = vmatpush1.bf16.msra.mxu0 %v470
      %494 = vmatprep.subr.bf16.mxu0 0
      %495 = vmatpush1.bf16.msra.mxu0 %v471
      %496 = vmatprep.subr.bf16.mxu0 0
      %497 = vmatpush1.bf16.msra.mxu0 0
      %498 = vmatprep.subr.bf16.mxu0 0
      %499 = vmatpush1.bf16.msra.mxu0 0
      %500 = vmatprep.subr.bf16.mxu0 0
      %501 = vmatpush1.bf16.msra.mxu0 0
      %502 = vmatprep.subr.bf16.mxu0 0
      %503 = vmatpush1.bf16.msra.mxu0 0
      %504 = vmatprep.subr.bf16.mxu0 0
      %505 = vmatpush1.bf16.msra.mxu0 0
      %506 = vmatprep.subr.bf16.mxu0 0
      %507 = vmatpush1.bf16.msra.mxu0 0
      %508 = vmatprep.subr.bf16.mxu0 0
      %509 = vmatpush1.bf16.msra.mxu0 0
      %510 = vmatprep.subr.bf16.mxu0 0
      %511 = vmatpush1.bf16.msra.mxu0 0
      %512 = vmatprep.mubr.bf16.mxu0 0
      %513 = vmatmul.mubr.bf16.gmra.mrb[0].mxu0 %v411
      %v514 = vpop.f32.mrb[0].mxu0
      %v515 = vadd.f32 0.0, %v514
      %v516 = vpop.f32.mrb[0].mxu0
      %v517 = vpop.f32.mrb[0].mxu0
      %v518 = vadd.f32 0.0, %v517
      %v519 = vpop.f32.mrb[0].mxu0
      %520 = vmatprep.mubr.bf16.mxu0 0
      %521 = vmatmul.mubr.bf16.gmra.mrb[0].mxu0 %v412
      %v522 = vpop.f32.mrb[0].mxu0
      %v523 = vadd.f32 0.0, %v522
      %v524 = vpop.f32.mrb[0].mxu0
      %v525 = vpop.f32.mrb[0].mxu0
      %v526 = vadd.f32 0.0, %v525
      %v527 = vpop.f32.mrb[0].mxu0
      %528 = vmatprep.mubr.bf16.mxu0 0
      %529 = vmatmul.mubr.bf16.gmra.mrb[0].mxu0 %v413
      %v530 = vpop.f32.mrb[0].mxu0
      %v531 = vadd.f32 0.0, %v530
      %v532 = vpop.f32.mrb[0].mxu0
      %v533 = vpop.f32.mrb[0].mxu0
      %v534 = vadd.f32 0.0, %v533
      %v535 = vpop.f32.mrb[0].mxu0
      %536 = vmatprep.mubr.bf16.mxu0 0
      %537 = vmatmul.mubr.bf16.gmra.mrb[0].mxu0 %v414
      %v538 = vpop.f32.mrb[0].mxu0
      %v539 = vadd.f32 0.0, %v538
      %v540 = vpop.f32.mrb[0].mxu0
      %v541 = vpop.f32.mrb[0].mxu0
      %v542 = vadd.f32 0.0, %v541
      %v543 = vpop.f32.mrb[0].mxu0
      %544 = vdwg.mxu0
      %v561 = vunpack.c.l.b16 %v377
      %v562 = vunpack.c.l.b16 %v378
      %v563 = vunpack.c.l.b16 %v379
      %v564 = vunpack.c.l.b16 %v380
      %v565 = vunpack.c.l.b16 %v381
      %v566 = vunpack.c.l.b16 %v382
      %v567 = vunpack.c.l.b16 %v383
      %v568 = vunpack.c.l.b16 %v384
      %v569 = vunpack.c.l.b16 %v385
      %v570 = vunpack.c.l.b16 %v386
      %v571 = vunpack.c.l.b16 %v387
      %v572 = vunpack.c.l.b16 %v388
      %v573 = vunpack.c.l.b16 %v389
      %v574 = vunpack.c.l.b16 %v390
      %v575 = vunpack.c.l.b16 %v391
      %v576 = vunpack.c.l.b16 %v392
      %v577 = vpack.c.b16 %v562, %v561
      %v578 = vpack.c.b16 %v564, %v563
      %v579 = vpack.c.b16 %v566, %v565
      %v580 = vpack.c.b16 %v568, %v567
      %v581 = vpack.c.b16 %v570, %v569
      %v582 = vpack.c.b16 %v572, %v571
      %v583 = vpack.c.b16 %v574, %v573
      %v584 = vpack.c.b16 %v576, %v575
      %593 = vmatprep.subr.bf16.mxu0 0
      %594 = vmatpush1.bf16.msra.mxu0 %v577
      %595 = vmatprep.subr.bf16.mxu0 0
      %596 = vmatpush1.bf16.msra.mxu0 %v578
      %597 = vmatprep.subr.bf16.mxu0 0
      %598 = vmatpush1.bf16.msra.mxu0 %v579
      %599 = vmatprep.subr.bf16.mxu0 0
      %600 = vmatpush1.bf16.msra.mxu0 %v580
      %601 = vmatprep.subr.bf16.mxu0 0
      %602 = vmatpush1.bf16.msra.mxu0 %v581
      %603 = vmatprep.subr.bf16.mxu0 0
      %604 = vmatpush1.bf16.msra.mxu0 %v582
      %605 = vmatprep.subr.bf16.mxu0 0
      %606 = vmatpush1.bf16.msra.mxu0 %v583
      %607 = vmatprep.subr.bf16.mxu0 0
      %608 = vmatpush1.bf16.msra.mxu0 %v584
      %609 = vmatprep.subr.bf16.mxu0 0
      %610 = vmatpush1.bf16.msra.mxu0 0
      %611 = vmatprep.subr.bf16.mxu0 0
      %612 = vmatpush1.bf16.msra.mxu0 0
      %613 = vmatprep.subr.bf16.mxu0 0
      %614 = vmatpush1.bf16.msra.mxu0 0
      %615 = vmatprep.subr.bf16.mxu0 0
      %616 = vmatpush1.bf16.msra.mxu0 0
      %617 = vmatprep.subr.bf16.mxu0 0
      %618 = vmatpush1.bf16.msra.mxu0 0
      %619 = vmatprep.subr.bf16.mxu0 0
      %620 = vmatpush1.bf16.msra.mxu0 0
      %621 = vmatprep.subr.bf16.mxu0 0
      %622 = vmatpush1.bf16.msra.mxu0 0
      %623 = vmatprep.subr.bf16.mxu0 0
      %624 = vmatpush1.bf16.msra.mxu0 0
      %625 = vmatprep.mubr.bf16.mxu0 0
      %626 = vmatmul.mubr.bf16.gmra.mrb[0].mxu0 %v373
      %v627 = vpop.f32.mrb[0].mxu0
      %v628 = vadd.f32 %v515, %v627
      %v629 = vpop.f32.mrb[0].mxu0
      %v630 = vpop.f32.mrb[0].mxu0
      %v631 = vadd.f32 %v518, %v630
      %v632 = vpop.f32.mrb[0].mxu0
      %633 = vmatprep.mubr.bf16.mxu0 0
      %634 = vmatmul.mubr.bf16.gmra.mrb[0].mxu0 %v374
      %v635 = vpop.f32.mrb[0].mxu0
      %v636 = vadd.f32 %v523, %v635
      %v637 = vpop.f32.mrb[0].mxu0
      %v638 = vpop.f32.mrb[0].mxu0
      %v639 = vadd.f32 %v526, %v638
      %v640 = vpop.f32.mrb[0].mxu0
      %641 = vmatprep.mubr.bf16.mxu0 0
      %642 = vmatmul.mubr.bf16.gmra.mrb[0].mxu0 %v375
      %v643 = vpop.f32.mrb[0].mxu0
      %v644 = vadd.f32 %v531, %v643
      %v645 = vpop.f32.mrb[0].mxu0
      %v646 = vpop.f32.mrb[0].mxu0
      %v647 = vadd.f32 %v534, %v646
      %v648 = vpop.f32.mrb[0].mxu0
      %649 = vmatprep.mubr.bf16.mxu0 0
      %650 = vmatmul.mubr.bf16.gmra.mrb[0].mxu0 %v376
      %v651 = vpop.f32.mrb[0].mxu0
      %v652 = vadd.f32 %v539, %v651
      %v653 = vpop.f32.mrb[0].mxu0
      %v654 = vpop.f32.mrb[0].mxu0
      %v655 = vadd.f32 %v542, %v654
      %v656 = vpop.f32.mrb[0].mxu0
      %657 = vdwg.mxu0
      %v658 = vld [vmem:[%s356] sm:$0xf]
      %v659 = vld [vmem:[%s356 + $0x4] sm:$0x1]
      %v660 = vld [vmem:[%s356 + $0x8] sm:$0xf]
      %v661 = vld [vmem:[%s356 + $0xc] sm:$0x1]
      %v662 = vld [vmem:[%s356 + $0x10] sm:$0xf]
      %v663 = vld [vmem:[%s356 + $0x14] sm:$0x1]
      %v664 = vld [vmem:[%s356 + $0x18] sm:$0xf]
      %v665 = vld [vmem:[%s356 + $0x1c] sm:$0x1]
      %v666 = vld [vmem:[%s356 + $0x20] sm:$0xf]
      %v667 = vld [vmem:[%s356 + $0x24] sm:$0x1]
      %v668 = vld [vmem:[%s356 + $0x28] sm:$0xf]
      %v669 = vld [vmem:[%s356 + $0x2c] sm:$0x1]
      %v670 = vld [vmem:[%s356 + $0x30] sm:$0xf]
      %v671 = vld [vmem:[%s356 + $0x34] sm:$0x1]
      %v672 = vld [vmem:[%s356 + $0x38] sm:$0xf]
      %v673 = vld [vmem:[%s356 + $0x3c] sm:$0x1]
      %v674 = vunpack.c.l.bf16 %v658
      %v675 = vunpack.c.l.bf16 %v659
      %v676 = vunpack.c.l.bf16 %v660
      %v677 = vunpack.c.l.bf16 %v661
      %v678 = vunpack.c.l.bf16 %v662
      %v679 = vunpack.c.l.bf16 %v663
      %v680 = vunpack.c.l.bf16 %v664
      %v681 = vunpack.c.l.bf16 %v665
      %v682 = vunpack.c.l.bf16 %v666
      %v683 = vunpack.c.l.bf16 %v667
      %v684 = vunpack.c.l.bf16 %v668
      %v685 = vunpack.c.l.bf16 %v669
      %v686 = vunpack.c.l.bf16 %v670
      %v687 = vunpack.c.l.bf16 %v671
      %v688 = vunpack.c.l.bf16 %v672
      %v689 = vunpack.c.l.bf16 %v673
      %vm706 = vcmask 1046528
      %v707 = vrot.slane %v674, 1
      %v708 = vrot.slane %v675, 1
      %v709 = vsel %vm706, %v707, %v708
      %v710 = vrot.slane %v676, 1
      %v711 = vrot.slane %v677, 1
      %v712 = vsel %vm706, %v710, %v711
      %v713 = vrot.slane %v678, 1
      %v714 = vrot.slane %v679, 1
      %v715 = vsel %vm706, %v713, %v714
      %v716 = vrot.slane %v680, 1
      %v717 = vrot.slane %v681, 1
      %v718 = vsel %vm706, %v716, %v717
      %v719 = vrot.slane %v682, 1
      %v720 = vrot.slane %v683, 1
      %v721 = vsel %vm706, %v719, %v720
      %v722 = vrot.slane %v684, 1
      %v723 = vrot.slane %v685, 1
      %v724 = vsel %vm706, %v722, %v723
      %v725 = vrot.slane %v686, 1
      %v726 = vrot.slane %v687, 1
      %v727 = vsel %vm706, %v725, %v726
      %v728 = vrot.slane %v688, 1
      %v729 = vrot.slane %v689, 1
      %v730 = vsel %vm706, %v728, %v729
      %v739 = vpack.c.bf16 %v712, %v709
      %v740 = vpack.c.bf16 %v718, %v715
      %v741 = vpack.c.bf16 %v724, %v721
      %v742 = vpack.c.bf16 %v730, %v727
      %s743 = scalar_lea.vmem %s4, 128
      %v744 = vld [vmem:[%s743] sm:$0xf]
      %v745 = vld [vmem:[%s743 + $0x4] sm:$0xf]
      %v746 = vld [vmem:[%s743 + $0x8] sm:$0xf]
      %v747 = vld [vmem:[%s743 + $0xc] sm:$0xf]
      %v748 = vld [vmem:[%s743 + $0x10] sm:$0xf]
      %v749 = vld [vmem:[%s743 + $0x14] sm:$0xf]
      %v750 = vld [vmem:[%s743 + $0x18] sm:$0xf]
      %v751 = vld [vmem:[%s743 + $0x1c] sm:$0xf]
      %v752 = vld [vmem:[%s743 + $0x20] sm:$0xf]
      %v753 = vld [vmem:[%s743 + $0x24] sm:$0xf]
      %v754 = vld [vmem:[%s743 + $0x28] sm:$0xf]
      %v755 = vld [vmem:[%s743 + $0x2c] sm:$0xf]
      %v756 = vld [vmem:[%s743 + $0x30] sm:$0xf]
      %v757 = vld [vmem:[%s743 + $0x34] sm:$0xf]
      %v758 = vld [vmem:[%s743 + $0x38] sm:$0xf]
      %v759 = vld [vmem:[%s743 + $0x3c] sm:$0xf]
      %v776 = vunpack.c.l.b16 %v744
      %v777 = vunpack.c.l.b16 %v745
      %v778 = vunpack.c.l.b16 %v746
      %v779 = vunpack.c.l.b16 %v747
      %v780 = vunpack.c.l.b16 %v748
      %v781 = vunpack.c.l.b16 %v749
      %v782 = vunpack.c.l.b16 %v750
      %v783 = vunpack.c.l.b16 %v751
      %v784 = vunpack.c.l.b16 %v752
      %v785 = vunpack.c.l.b16 %v753
      %v786 = vunpack.c.l.b16 %v754
      %v787 = vunpack.c.l.b16 %v755
      %v788 = vunpack.c.l.b16 %v756
      %v789 = vunpack.c.l.b16 %v757
      %v790 = vunpack.c.l.b16 %v758
      %v791 = vunpack.c.l.b16 %v759
      %v792 = vpack.c.b16 %v777, %v776
      %v793 = vpack.c.b16 %v779, %v778
      %v794 = vpack.c.b16 %v781, %v780
      %v795 = vpack.c.b16 %v783, %v782
      %v796 = vpack.c.b16 %v785, %v784
      %v797 = vpack.c.b16 %v787, %v786
      %v798 = vpack.c.b16 %v789, %v788
      %v799 = vpack.c.b16 %v791, %v790
      %808 = vmatprep.subr.bf16.mxu0 0
      %809 = vmatpush1.bf16.msra.mxu0 %v792
      %810 = vmatprep.subr.bf16.mxu0 0
      %811 = vmatpush1.bf16.msra.mxu0 %v793
      %812 = vmatprep.subr.bf16.mxu0 0
      %813 = vmatpush1.bf16.msra.mxu0 %v794
      %814 = vmatprep.subr.bf16.mxu0 0
      %815 = vmatpush1.bf16.msra.mxu0 %v795
      %816 = vmatprep.subr.bf16.mxu0 0
      %817 = vmatpush1.bf16.msra.mxu0 %v796
      %818 = vmatprep.subr.bf16.mxu0 0
      %819 = vmatpush1.bf16.msra.mxu0 %v797
      %820 = vmatprep.subr.bf16.mxu0 0
      %821 = vmatpush1.bf16.msra.mxu0 %v798
      %822 = vmatprep.subr.bf16.mxu0 0
      %823 = vmatpush1.bf16.msra.mxu0 %v799
      %824 = vmatprep.subr.bf16.mxu0 0
      %825 = vmatpush1.bf16.msra.mxu0 0
      %826 = vmatprep.subr.bf16.mxu0 0
      %827 = vmatpush1.bf16.msra.mxu0 0
      %828 = vmatprep.subr.bf16.mxu0 0
      %829 = vmatpush1.bf16.msra.mxu0 0
      %830 = vmatprep.subr.bf16.mxu0 0
      %831 = vmatpush1.bf16.msra.mxu0 0
      %832 = vmatprep.subr.bf16.mxu0 0
      %833 = vmatpush1.bf16.msra.mxu0 0
      %834 = vmatprep.subr.bf16.mxu0 0
      %835 = vmatpush1.bf16.msra.mxu0 0
      %836 = vmatprep.subr.bf16.mxu0 0
      %837 = vmatpush1.bf16.msra.mxu0 0
      %838 = vmatprep.subr.bf16.mxu0 0
      %839 = vmatpush1.bf16.msra.mxu0 0
      %840 = vmatprep.mubr.bf16.mxu0 0
      %841 = vmatmul.mubr.bf16.gmra.mrb[0].mxu0 %v739
      %v842 = vpop.f32.mrb[0].mxu0
      %v843 = vadd.f32 0.0, %v842
      %v844 = vpop.f32.mrb[0].mxu0
      %v845 = vpop.f32.mrb[0].mxu0
      %v846 = vadd.f32 0.0, %v845
      %v847 = vpop.f32.mrb[0].mxu0
      %848 = vmatprep.mubr.bf16.mxu0 0
      %849 = vmatmul.mubr.bf16.gmra.mrb[0].mxu0 %v740
      %v850 = vpop.f32.mrb[0].mxu0
      %v851 = vadd.f32 0.0, %v850
      %v852 = vpop.f32.mrb[0].mxu0
      %v853 = vpop.f32.mrb[0].mxu0
      %v854 = vadd.f32 0.0, %v853
      %v855 = vpop.f32.mrb[0].mxu0
      %856 = vmatprep.mubr.bf16.mxu0 0
      %857 = vmatmul.mubr.bf16.gmra.mrb[0].mxu0 %v741
      %v858 = vpop.f32.mrb[0].mxu0
      %v859 = vadd.f32 0.0, %v858
      %v860 = vpop.f32.mrb[0].mxu0
      %v861 = vpop.f32.mrb[0].mxu0
      %v862 = vadd.f32 0.0, %v861
      %v863 = vpop.f32.mrb[0].mxu0
      %864 = vmatprep.mubr.bf16.mxu0 0
      %865 = vmatmul.mubr.bf16.gmra.mrb[0].mxu0 %v742
      %v866 = vpop.f32.mrb[0].mxu0
      %v867 = vadd.f32 0.0, %v866
      %v868 = vpop.f32.mrb[0].mxu0
      %v869 = vpop.f32.mrb[0].mxu0
      %v870 = vadd.f32 0.0, %v869
      %v871 = vpop.f32.mrb[0].mxu0
      %872 = vdwg.mxu0
      %v873 = vadd.f32 %v628, %v843
      %v874 = vadd.f32 %v631, %v846
      %v875 = vadd.f32 %v636, %v851
      %v876 = vadd.f32 %v639, %v854
      %v877 = vadd.f32 %v644, %v859
      %v878 = vadd.f32 %v647, %v862
      %v879 = vadd.f32 %v652, %v867
      %v880 = vadd.f32 %v655, %v870
      %s881 = smul.addr %s354, 4
      %s882 = scalar_lea.vmem %s338, %s881
      %v883 = vld [vmem:[%s882] sm:$0xf]
      %v884 = vld [vmem:[%s882 + $0x8] sm:$0xf]
      %v885 = vld [vmem:[%s882 + $0x10] sm:$0xf]
      %v886 = vld [vmem:[%s882 + $0x18] sm:$0xf]
      %v887 = vld [vmem:[%s882 + $0x20] sm:$0xf]
      %v888 = vld [vmem:[%s882 + $0x28] sm:$0xf]
      %v889 = vld [vmem:[%s882 + $0x30] sm:$0xf]
      %v890 = vld [vmem:[%s882 + $0x38] sm:$0xf]
      %v891 = vunpack.c.l.bf16 %v883
      %v892 = vunpack.c.l.bf16 %v884
      %v893 = vunpack.c.l.bf16 %v885
      %v894 = vunpack.c.l.bf16 %v886
      %v895 = vunpack.c.l.bf16 %v887
      %v896 = vunpack.c.l.bf16 %v888
      %v897 = vunpack.c.l.bf16 %v889
      %v898 = vunpack.c.l.bf16 %v890
      %v899 = vpack.c.bf16 %v892, %v891
      %v900 = vpack.c.bf16 %v894, %v893
      %v901 = vpack.c.bf16 %v896, %v895
      %v902 = vpack.c.bf16 %v898, %v897
      %s903 = scalar_lea.vmem %s4, 192
      %v904 = vld [vmem:[%s903] sm:$0xf]
      %v905 = vld [vmem:[%s903 + $0x4] sm:$0xf]
      %v906 = vld [vmem:[%s903 + $0x8] sm:$0xf]
      %v907 = vld [vmem:[%s903 + $0xc] sm:$0xf]
      %v908 = vld [vmem:[%s903 + $0x10] sm:$0xf]
      %v909 = vld [vmem:[%s903 + $0x14] sm:$0xf]
      %v910 = vld [vmem:[%s903 + $0x18] sm:$0xf]
      %v911 = vld [vmem:[%s903 + $0x1c] sm:$0xf]
      %v912 = vld [vmem:[%s903 + $0x20] sm:$0xf]
      %v913 = vld [vmem:[%s903 + $0x24] sm:$0xf]
      %v914 = vld [vmem:[%s903 + $0x28] sm:$0xf]
      %v915 = vld [vmem:[%s903 + $0x2c] sm:$0xf]
      %v916 = vld [vmem:[%s903 + $0x30] sm:$0xf]
      %v917 = vld [vmem:[%s903 + $0x34] sm:$0xf]
      %v918 = vld [vmem:[%s903 + $0x38] sm:$0xf]
      %v919 = vld [vmem:[%s903 + $0x3c] sm:$0xf]
      %v936 = vunpack.c.l.b16 %v904
      %v937 = vunpack.c.l.b16 %v905
      %v938 = vunpack.c.l.b16 %v906
      %v939 = vunpack.c.l.b16 %v907
      %v940 = vunpack.c.l.b16 %v908
      %v941 = vunpack.c.l.b16 %v909
      %v942 = vunpack.c.l.b16 %v910
      %v943 = vunpack.c.l.b16 %v911
      %v944 = vunpack.c.l.b16 %v912
      %v945 = vunpack.c.l.b16 %v913
      %v946 = vunpack.c.l.b16 %v914
      %v947 = vunpack.c.l.b16 %v915
      %v948 = vunpack.c.l.b16 %v916
      %v949 = vunpack.c.l.b16 %v917
      %v950 = vunpack.c.l.b16 %v918
      %v951 = vunpack.c.l.b16 %v919
      %v952 = vpack.c.b16 %v937, %v936
      %v953 = vpack.c.b16 %v939, %v938
      %v954 = vpack.c.b16 %v941, %v940
      %v955 = vpack.c.b16 %v943, %v942
      %v956 = vpack.c.b16 %v945, %v944
      %v957 = vpack.c.b16 %v947, %v946
      %v958 = vpack.c.b16 %v949, %v948
      %v959 = vpack.c.b16 %v951, %v950
      %968 = vmatprep.subr.bf16.mxu0 0
      %969 = vmatpush1.bf16.msra.mxu0 %v952
      %970 = vmatprep.subr.bf16.mxu0 0
      %971 = vmatpush1.bf16.msra.mxu0 %v953
      %972 = vmatprep.subr.bf16.mxu0 0
      %973 = vmatpush1.bf16.msra.mxu0 %v954
      %974 = vmatprep.subr.bf16.mxu0 0
      %975 = vmatpush1.bf16.msra.mxu0 %v955
      %976 = vmatprep.subr.bf16.mxu0 0
      %977 = vmatpush1.bf16.msra.mxu0 %v956
      %978 = vmatprep.subr.bf16.mxu0 0
      %979 = vmatpush1.bf16.msra.mxu0 %v957
      %980 = vmatprep.subr.bf16.mxu0 0
      %981 = vmatpush1.bf16.msra.mxu0 %v958
      %982 = vmatprep.subr.bf16.mxu0 0
      %983 = vmatpush1.bf16.msra.mxu0 %v959
      %984 = vmatprep.subr.bf16.mxu0 0
      %985 = vmatpush1.bf16.msra.mxu0 0
      %986 = vmatprep.subr.bf16.mxu0 0
      %987 = vmatpush1.bf16.msra.mxu0 0
      %988 = vmatprep.subr.bf16.mxu0 0
      %989 = vmatpush1.bf16.msra.mxu0 0
      %990 = vmatprep.subr.bf16.mxu0 0
      %991 = vmatpush1.bf16.msra.mxu0 0
      %992 = vmatprep.subr.bf16.mxu0 0
      %993 = vmatpush1.bf16.msra.mxu0 0
      %994 = vmatprep.subr.bf16.mxu0 0
      %995 = vmatpush1.bf16.msra.mxu0 0
      %996 = vmatprep.subr.bf16.mxu0 0
      %997 = vmatpush1.bf16.msra.mxu0 0
      %998 = vmatprep.subr.bf16.mxu0 0
      %999 = vmatpush1.bf16.msra.mxu0 0
      %1000 = vmatprep.mubr.bf16.mxu0 0
      %1001 = vmatmul.mubr.bf16.gmra.mrb[0].mxu0 %v899
      %v1002 = vpop.f32.mrb[0].mxu0
      %v1003 = vadd.f32 0.0, %v1002
      %v1004 = vpop.f32.mrb[0].mxu0
      %v1005 = vpop.f32.mrb[0].mxu0
      %v1006 = vadd.f32 0.0, %v1005
      %v1007 = vpop.f32.mrb[0].mxu0
      %1008 = vmatprep.mubr.bf16.mxu0 0
      %1009 = vmatmul.mubr.bf16.gmra.mrb[0].mxu0 %v900
      %v1010 = vpop.f32.mrb[0].mxu0
      %v1011 = vadd.f32 0.0, %v1010
      %v1012 = vpop.f32.mrb[0].mxu0
      %v1013 = vpop.f32.mrb[0].mxu0
      %v1014 = vadd.f32 0.0, %v1013
      %v1015 = vpop.f32.mrb[0].mxu0
      %1016 = vmatprep.mubr.bf16.mxu0 0
      %1017 = vmatmul.mubr.bf16.gmra.mrb[0].mxu0 %v901
      %v1018 = vpop.f32.mrb[0].mxu0
      %v1019 = vadd.f32 0.0, %v1018
      %v1020 = vpop.f32.mrb[0].mxu0
      %v1021 = vpop.f32.mrb[0].mxu0
      %v1022 = vadd.f32 0.0, %v1021
      %v1023 = vpop.f32.mrb[0].mxu0
      %1024 = vmatprep.mubr.bf16.mxu0 0
      %1025 = vmatmul.mubr.bf16.gmra.mrb[0].mxu0 %v902
      %v1026 = vpop.f32.mrb[0].mxu0
      %v1027 = vadd.f32 0.0, %v1026
      %v1028 = vpop.f32.mrb[0].mxu0
      %v1029 = vpop.f32.mrb[0].mxu0
      %v1030 = vadd.f32 0.0, %v1029
      %v1031 = vpop.f32.mrb[0].mxu0
      %1032 = vdwg.mxu0
      %v1033 = vadd.f32 %v873, %v1003
      %v1034 = vadd.f32 %v874, %v1006
      %v1035 = vadd.f32 %v875, %v1011
      %v1036 = vadd.f32 %v876, %v1014
      %v1037 = vadd.f32 %v877, %v1019
      %v1038 = vadd.f32 %v878, %v1022
      %v1039 = vadd.f32 %v879, %v1027
      %v1040 = vadd.f32 %v880, %v1030
      %s1041 = smul.addr %s354, 4
      %s1042 = scalar_lea.vmem %s343, %s1041
      %v1043 = vld [vmem:[%s1042] sm:$0xf]
      %v1044 = vld [vmem:[%s1042 + $0x8] sm:$0xf]
      %v1045 = vld [vmem:[%s1042 + $0x10] sm:$0xf]
      %v1046 = vld [vmem:[%s1042 + $0x18] sm:$0xf]
      %v1047 = vld [vmem:[%s1042 + $0x20] sm:$0xf]
      %v1048 = vld [vmem:[%s1042 + $0x28] sm:$0xf]
      %v1049 = vld [vmem:[%s1042 + $0x30] sm:$0xf]
      %v1050 = vld [vmem:[%s1042 + $0x38] sm:$0xf]
      %v1051 = vunpack.c.l.bf16 %v1043
      %v1052 = vunpack.c.l.bf16 %v1044
      %v1053 = vunpack.c.l.bf16 %v1045
      %v1054 = vunpack.c.l.bf16 %v1046
      %v1055 = vunpack.c.l.bf16 %v1047
      %v1056 = vunpack.c.l.bf16 %v1048
      %v1057 = vunpack.c.l.bf16 %v1049
      %v1058 = vunpack.c.l.bf16 %v1050
      %v1059 = vpack.c.bf16 %v1052, %v1051
      %v1060 = vpack.c.bf16 %v1054, %v1053
      %v1061 = vpack.c.bf16 %v1056, %v1055
      %v1062 = vpack.c.bf16 %v1058, %v1057
      %s1063 = scalar_lea.vmem %s4, 256
      %v1064 = vld [vmem:[%s1063] sm:$0xf]
      %v1065 = vld [vmem:[%s1063 + $0x4] sm:$0xf]
      %v1066 = vld [vmem:[%s1063 + $0x8] sm:$0xf]
      %v1067 = vld [vmem:[%s1063 + $0xc] sm:$0xf]
      %v1068 = vld [vmem:[%s1063 + $0x10] sm:$0xf]
      %v1069 = vld [vmem:[%s1063 + $0x14] sm:$0xf]
      %v1070 = vld [vmem:[%s1063 + $0x18] sm:$0xf]
      %v1071 = vld [vmem:[%s1063 + $0x1c] sm:$0xf]
      %v1072 = vld [vmem:[%s1063 + $0x20] sm:$0xf]
      %v1073 = vld [vmem:[%s1063 + $0x24] sm:$0xf]
      %v1074 = vld [vmem:[%s1063 + $0x28] sm:$0xf]
      %v1075 = vld [vmem:[%s1063 + $0x2c] sm:$0xf]
      %v1076 = vld [vmem:[%s1063 + $0x30] sm:$0xf]
      %v1077 = vld [vmem:[%s1063 + $0x34] sm:$0xf]
      %v1078 = vld [vmem:[%s1063 + $0x38] sm:$0xf]
      %v1079 = vld [vmem:[%s1063 + $0x3c] sm:$0xf]
      %v1096 = vunpack.c.l.b16 %v1064
      %v1097 = vunpack.c.l.b16 %v1065
      %v1098 = vunpack.c.l.b16 %v1066
      %v1099 = vunpack.c.l.b16 %v1067
      %v1100 = vunpack.c.l.b16 %v1068
      %v1101 = vunpack.c.l.b16 %v1069
      %v1102 = vunpack.c.l.b16 %v1070
      %v1103 = vunpack.c.l.b16 %v1071
      %v1104 = vunpack.c.l.b16 %v1072
      %v1105 = vunpack.c.l.b16 %v1073
      %v1106 = vunpack.c.l.b16 %v1074
      %v1107 = vunpack.c.l.b16 %v1075
      %v1108 = vunpack.c.l.b16 %v1076
      %v1109 = vunpack.c.l.b16 %v1077
      %v1110 = vunpack.c.l.b16 %v1078
      %v1111 = vunpack.c.l.b16 %v1079
      %v1112 = vpack.c.b16 %v1097, %v1096
      %v1113 = vpack.c.b16 %v1099, %v1098
      %v1114 = vpack.c.b16 %v1101, %v1100
      %v1115 = vpack.c.b16 %v1103, %v1102
      %v1116 = vpack.c.b16 %v1105, %v1104
      %v1117 = vpack.c.b16 %v1107, %v1106
      %v1118 = vpack.c.b16 %v1109, %v1108
      %v1119 = vpack.c.b16 %v1111, %v1110
      %1128 = vmatprep.subr.bf16.mxu0 0
      %1129 = vmatpush1.bf16.msra.mxu0 %v1112
      %1130 = vmatprep.subr.bf16.mxu0 0
      %1131 = vmatpush1.bf16.msra.mxu0 %v1113
      %1132 = vmatprep.subr.bf16.mxu0 0
      %1133 = vmatpush1.bf16.msra.mxu0 %v1114
      %1134 = vmatprep.subr.bf16.mxu0 0
      %1135 = vmatpush1.bf16.msra.mxu0 %v1115
      %1136 = vmatprep.subr.bf16.mxu0 0
      %1137 = vmatpush1.bf16.msra.mxu0 %v1116
      %1138 = vmatprep.subr.bf16.mxu0 0
      %1139 = vmatpush1.bf16.msra.mxu0 %v1117
      %1140 = vmatprep.subr.bf16.mxu0 0
      %1141 = vmatpush1.bf16.msra.mxu0 %v1118
      %1142 = vmatprep.subr.bf16.mxu0 0
      %1143 = vmatpush1.bf16.msra.mxu0 %v1119
      %1144 = vmatprep.subr.bf16.mxu0 0
      %1145 = vmatpush1.bf16.msra.mxu0 0
      %1146 = vmatprep.subr.bf16.mxu0 0
      %1147 = vmatpush1.bf16.msra.mxu0 0
      %1148 = vmatprep.subr.bf16.mxu0 0
      %1149 = vmatpush1.bf16.msra.mxu0 0
      %1150 = vmatprep.subr.bf16.mxu0 0
      %1151 = vmatpush1.bf16.msra.mxu0 0
      %1152 = vmatprep.subr.bf16.mxu0 0
      %1153 = vmatpush1.bf16.msra.mxu0 0
      %1154 = vmatprep.subr.bf16.mxu0 0
      %1155 = vmatpush1.bf16.msra.mxu0 0
      %1156 = vmatprep.subr.bf16.mxu0 0
      %1157 = vmatpush1.bf16.msra.mxu0 0
      %1158 = vmatprep.subr.bf16.mxu0 0
      %1159 = vmatpush1.bf16.msra.mxu0 0
      %1160 = vmatprep.mubr.bf16.mxu0 0
      %1161 = vmatmul.mubr.bf16.gmra.mrb[0].mxu0 %v1059
      %v1162 = vpop.f32.mrb[0].mxu0
      %v1163 = vadd.f32 0.0, %v1162
      %v1164 = vpop.f32.mrb[0].mxu0
      %v1165 = vpop.f32.mrb[0].mxu0
      %v1166 = vadd.f32 0.0, %v1165
      %v1167 = vpop.f32.mrb[0].mxu0
      %1168 = vmatprep.mubr.bf16.mxu0 0
      %1169 = vmatmul.mubr.bf16.gmra.mrb[0].mxu0 %v1060
      %v1170 = vpop.f32.mrb[0].mxu0
      %v1171 = vadd.f32 0.0, %v1170
      %v1172 = vpop.f32.mrb[0].mxu0
      %v1173 = vpop.f32.mrb[0].mxu0
      %v1174 = vadd.f32 0.0, %v1173
      %v1175 = vpop.f32.mrb[0].mxu0
      %1176 = vmatprep.mubr.bf16.mxu0 0
      %1177 = vmatmul.mubr.bf16.gmra.mrb[0].mxu0 %v1061
      %v1178 = vpop.f32.mrb[0].mxu0
      %v1179 = vadd.f32 0.0, %v1178
      %v1180 = vpop.f32.mrb[0].mxu0
      %v1181 = vpop.f32.mrb[0].mxu0
      %v1182 = vadd.f32 0.0, %v1181
      %v1183 = vpop.f32.mrb[0].mxu0
      %1184 = vmatprep.mubr.bf16.mxu0 0
      %1185 = vmatmul.mubr.bf16.gmra.mrb[0].mxu0 %v1062
      %v1186 = vpop.f32.mrb[0].mxu0
      %v1187 = vadd.f32 0.0, %v1186
      %v1188 = vpop.f32.mrb[0].mxu0
      %v1189 = vpop.f32.mrb[0].mxu0
      %v1190 = vadd.f32 0.0, %v1189
      %v1191 = vpop.f32.mrb[0].mxu0
      %1192 = vdwg.mxu0
      %v1193 = vadd.f32 %v1033, %v1163
      %v1194 = vadd.f32 %v1034, %v1166
      %v1195 = vadd.f32 %v1035, %v1171
      %v1196 = vadd.f32 %v1036, %v1174
      %v1197 = vadd.f32 %v1037, %v1179
      %v1198 = vadd.f32 %v1038, %v1182
      %v1199 = vadd.f32 %v1039, %v1187
      %v1200 = vadd.f32 %v1040, %v1190
      %v1201 = vld [vmem:[%s882] sm:$0xf]
      %v1202 = vld [vmem:[%s882 + $0x4] sm:$0x1]
      %v1203 = vld [vmem:[%s882 + $0x8] sm:$0xf]
      %v1204 = vld [vmem:[%s882 + $0xc] sm:$0x1]
      %v1205 = vld [vmem:[%s882 + $0x10] sm:$0xf]
      %v1206 = vld [vmem:[%s882 + $0x14] sm:$0x1]
      %v1207 = vld [vmem:[%s882 + $0x18] sm:$0xf]
      %v1208 = vld [vmem:[%s882 + $0x1c] sm:$0x1]
      %v1209 = vld [vmem:[%s882 + $0x20] sm:$0xf]
      %v1210 = vld [vmem:[%s882 + $0x24] sm:$0x1]
      %v1211 = vld [vmem:[%s882 + $0x28] sm:$0xf]
      %v1212 = vld [vmem:[%s882 + $0x2c] sm:$0x1]
      %v1213 = vld [vmem:[%s882 + $0x30] sm:$0xf]
      %v1214 = vld [vmem:[%s882 + $0x34] sm:$0x1]
      %v1215 = vld [vmem:[%s882 + $0x38] sm:$0xf]
      %v1216 = vld [vmem:[%s882 + $0x3c] sm:$0x1]
      %v1217 = vunpack.c.l.bf16 %v1201
      %v1218 = vunpack.c.l.bf16 %v1202
      %v1219 = vunpack.c.l.bf16 %v1203
      %v1220 = vunpack.c.l.bf16 %v1204
      %v1221 = vunpack.c.l.bf16 %v1205
      %v1222 = vunpack.c.l.bf16 %v1206
      %v1223 = vunpack.c.l.bf16 %v1207
      %v1224 = vunpack.c.l.bf16 %v1208
      %v1225 = vunpack.c.l.bf16 %v1209
      %v1226 = vunpack.c.l.bf16 %v1210
      %v1227 = vunpack.c.l.bf16 %v1211
      %v1228 = vunpack.c.l.bf16 %v1212
      %v1229 = vunpack.c.l.bf16 %v1213
      %v1230 = vunpack.c.l.bf16 %v1214
      %v1231 = vunpack.c.l.bf16 %v1215
      %v1232 = vunpack.c.l.bf16 %v1216
      %v1249 = vrot.slane %v1217, 1
      %v1250 = vrot.slane %v1218, 1
      %v1251 = vsel %vm706, %v1249, %v1250
      %v1252 = vrot.slane %v1219, 1
      %v1253 = vrot.slane %v1220, 1
      %v1254 = vsel %vm706, %v1252, %v1253
      %v1255 = vrot.slane %v1221, 1
      %v1256 = vrot.slane %v1222, 1
      %v1257 = vsel %vm706, %v1255, %v1256
      %v1258 = vrot.slane %v1223, 1
      %v1259 = vrot.slane %v1224, 1
      %v1260 = vsel %vm706, %v1258, %v1259
      %v1261 = vrot.slane %v1225, 1
      %v1262 = vrot.slane %v1226, 1
      %v1263 = vsel %vm706, %v1261, %v1262
      %v1264 = vrot.slane %v1227, 1
      %v1265 = vrot.slane %v1228, 1
      %v1266 = vsel %vm706, %v1264, %v1265
      %v1267 = vrot.slane %v1229, 1
      %v1268 = vrot.slane %v1230, 1
      %v1269 = vsel %vm706, %v1267, %v1268
      %v1270 = vrot.slane %v1231, 1
      %v1271 = vrot.slane %v1232, 1
      %v1272 = vsel %vm706, %v1270, %v1271
      %v1281 = vpack.c.bf16 %v1254, %v1251
      %v1282 = vpack.c.bf16 %v1260, %v1257
      %v1283 = vpack.c.bf16 %v1266, %v1263
      %v1284 = vpack.c.bf16 %v1272, %v1269
      %s1285 = scalar_lea.vmem %s4, 320
      %v1286 = vld [vmem:[%s1285] sm:$0xf]
      %v1287 = vld [vmem:[%s1285 + $0x4] sm:$0xf]
      %v1288 = vld [vmem:[%s1285 + $0x8] sm:$0xf]
      %v1289 = vld [vmem:[%s1285 + $0xc] sm:$0xf]
      %v1290 = vld [vmem:[%s1285 + $0x10] sm:$0xf]
      %v1291 = vld [vmem:[%s1285 + $0x14] sm:$0xf]
      %v1292 = vld [vmem:[%s1285 + $0x18] sm:$0xf]
      %v1293 = vld [vmem:[%s1285 + $0x1c] sm:$0xf]
      %v1294 = vld [vmem:[%s1285 + $0x20] sm:$0xf]
      %v1295 = vld [vmem:[%s1285 + $0x24] sm:$0xf]
      %v1296 = vld [vmem:[%s1285 + $0x28] sm:$0xf]
      %v1297 = vld [vmem:[%s1285 + $0x2c] sm:$0xf]
      %v1298 = vld [vmem:[%s1285 + $0x30] sm:$0xf]
      %v1299 = vld [vmem:[%s1285 + $0x34] sm:$0xf]
      %v1300 = vld [vmem:[%s1285 + $0x38] sm:$0xf]
      %v1301 = vld [vmem:[%s1285 + $0x3c] sm:$0xf]
      %v1318 = vunpack.c.l.b16 %v1286
      %v1319 = vunpack.c.l.b16 %v1287
      %v1320 = vunpack.c.l.b16 %v1288
      %v1321 = vunpack.c.l.b16 %v1289
      %v1322 = vunpack.c.l.b16 %v1290
      %v1323 = vunpack.c.l.b16 %v1291
      %v1324 = vunpack.c.l.b16 %v1292
      %v1325 = vunpack.c.l.b16 %v1293
      %v1326 = vunpack.c.l.b16 %v1294
      %v1327 = vunpack.c.l.b16 %v1295
      %v1328 = vunpack.c.l.b16 %v1296
      %v1329 = vunpack.c.l.b16 %v1297
      %v1330 = vunpack.c.l.b16 %v1298
      %v1331 = vunpack.c.l.b16 %v1299
      %v1332 = vunpack.c.l.b16 %v1300
      %v1333 = vunpack.c.l.b16 %v1301
      %v1334 = vpack.c.b16 %v1319, %v1318
      %v1335 = vpack.c.b16 %v1321, %v1320
      %v1336 = vpack.c.b16 %v1323, %v1322
      %v1337 = vpack.c.b16 %v1325, %v1324
      %v1338 = vpack.c.b16 %v1327, %v1326
      %v1339 = vpack.c.b16 %v1329, %v1328
      %v1340 = vpack.c.b16 %v1331, %v1330
      %v1341 = vpack.c.b16 %v1333, %v1332
      %1350 = vmatprep.subr.bf16.mxu0 0
      %1351 = vmatpush1.bf16.msra.mxu0 %v1334
      %1352 = vmatprep.subr.bf16.mxu0 0
      %1353 = vmatpush1.bf16.msra.mxu0 %v1335
      %1354 = vmatprep.subr.bf16.mxu0 0
      %1355 = vmatpush1.bf16.msra.mxu0 %v1336
      %1356 = vmatprep.subr.bf16.mxu0 0
      %1357 = vmatpush1.bf16.msra.mxu0 %v1337
      %1358 = vmatprep.subr.bf16.mxu0 0
      %1359 = vmatpush1.bf16.msra.mxu0 %v1338
      %1360 = vmatprep.subr.bf16.mxu0 0
      %1361 = vmatpush1.bf16.msra.mxu0 %v1339
      %1362 = vmatprep.subr.bf16.mxu0 0
      %1363 = vmatpush1.bf16.msra.mxu0 %v1340
      %1364 = vmatprep.subr.bf16.mxu0 0
      %1365 = vmatpush1.bf16.msra.mxu0 %v1341
      %1366 = vmatprep.subr.bf16.mxu0 0
      %1367 = vmatpush1.bf16.msra.mxu0 0
      %1368 = vmatprep.subr.bf16.mxu0 0
      %1369 = vmatpush1.bf16.msra.mxu0 0
      %1370 = vmatprep.subr.bf16.mxu0 0
      %1371 = vmatpush1.bf16.msra.mxu0 0
      %1372 = vmatprep.subr.bf16.mxu0 0
      %1373 = vmatpush1.bf16.msra.mxu0 0
      %1374 = vmatprep.subr.bf16.mxu0 0
      %1375 = vmatpush1.bf16.msra.mxu0 0
      %1376 = vmatprep.subr.bf16.mxu0 0
      %1377 = vmatpush1.bf16.msra.mxu0 0
      %1378 = vmatprep.subr.bf16.mxu0 0
      %1379 = vmatpush1.bf16.msra.mxu0 0
      %1380 = vmatprep.subr.bf16.mxu0 0
      %1381 = vmatpush1.bf16.msra.mxu0 0
      %1382 = vmatprep.mubr.bf16.mxu0 0
      %1383 = vmatmul.mubr.bf16.gmra.mrb[0].mxu0 %v1281
      %v1384 = vpop.f32.mrb[0].mxu0
      %v1385 = vadd.f32 0.0, %v1384
      %v1386 = vpop.f32.mrb[0].mxu0
      %v1387 = vpop.f32.mrb[0].mxu0
      %v1388 = vadd.f32 0.0, %v1387
      %v1389 = vpop.f32.mrb[0].mxu0
      %1390 = vmatprep.mubr.bf16.mxu0 0
      %1391 = vmatmul.mubr.bf16.gmra.mrb[0].mxu0 %v1282
      %v1392 = vpop.f32.mrb[0].mxu0
      %v1393 = vadd.f32 0.0, %v1392
      %v1394 = vpop.f32.mrb[0].mxu0
      %v1395 = vpop.f32.mrb[0].mxu0
      %v1396 = vadd.f32 0.0, %v1395
      %v1397 = vpop.f32.mrb[0].mxu0
      %1398 = vmatprep.mubr.bf16.mxu0 0
      %1399 = vmatmul.mubr.bf16.gmra.mrb[0].mxu0 %v1283
      %v1400 = vpop.f32.mrb[0].mxu0
      %v1401 = vadd.f32 0.0, %v1400
      %v1402 = vpop.f32.mrb[0].mxu0
      %v1403 = vpop.f32.mrb[0].mxu0
      %v1404 = vadd.f32 0.0, %v1403
      %v1405 = vpop.f32.mrb[0].mxu0
      %1406 = vmatprep.mubr.bf16.mxu0 0
      %1407 = vmatmul.mubr.bf16.gmra.mrb[0].mxu0 %v1284
      %v1408 = vpop.f32.mrb[0].mxu0
      %v1409 = vadd.f32 0.0, %v1408
      %v1410 = vpop.f32.mrb[0].mxu0
      %v1411 = vpop.f32.mrb[0].mxu0
      %v1412 = vadd.f32 0.0, %v1411
      %v1413 = vpop.f32.mrb[0].mxu0
      %1414 = vdwg.mxu0
      %v1415 = vadd.f32 %v1193, %v1385
      %v1416 = vadd.f32 %v1194, %v1388
      %v1417 = vadd.f32 %v1195, %v1393
      %v1418 = vadd.f32 %v1196, %v1396
      %v1419 = vadd.f32 %v1197, %v1401
      %v1420 = vadd.f32 %v1198, %v1404
      %v1421 = vadd.f32 %v1199, %v1409
      %v1422 = vadd.f32 %v1200, %v1412
      %s1423 = sadd.s32 %s353, 1
      %s1424 = smul.u32 %s1423, 2
      %s1425 = smul.addr %s1424, 4
      %s1426 = scalar_lea.vmem %s328, %s1425
      %v1427 = vld [vmem:[%s1426] sm:$0xf]
      %v1428 = vld [vmem:[%s1426 + $0x8] sm:$0xf]
      %v1429 = vld [vmem:[%s1426 + $0x10] sm:$0xf]
      %v1430 = vld [vmem:[%s1426 + $0x18] sm:$0xf]
      %v1431 = vld [vmem:[%s1426 + $0x20] sm:$0xf]
      %v1432 = vld [vmem:[%s1426 + $0x28] sm:$0xf]
      %v1433 = vld [vmem:[%s1426 + $0x30] sm:$0xf]
      %v1434 = vld [vmem:[%s1426 + $0x38] sm:$0xf]
      %v1435 = vunpack.c.l.bf16 %v1427
      %v1436 = vunpack.c.l.bf16 %v1428
      %v1437 = vunpack.c.l.bf16 %v1429
      %v1438 = vunpack.c.l.bf16 %v1430
      %v1439 = vunpack.c.l.bf16 %v1431
      %v1440 = vunpack.c.l.bf16 %v1432
      %v1441 = vunpack.c.l.bf16 %v1433
      %v1442 = vunpack.c.l.bf16 %v1434
      %v1443 = vpack.c.bf16 %v1436, %v1435
      %v1444 = vpack.c.bf16 %v1438, %v1437
      %v1445 = vpack.c.bf16 %v1440, %v1439
      %v1446 = vpack.c.bf16 %v1442, %v1441
      %s1447 = scalar_lea.vmem %s4, 384
      %v1448 = vld [vmem:[%s1447] sm:$0xf]
      %v1449 = vld [vmem:[%s1447 + $0x4] sm:$0xf]
      %v1450 = vld [vmem:[%s1447 + $0x8] sm:$0xf]
      %v1451 = vld [vmem:[%s1447 + $0xc] sm:$0xf]
      %v1452 = vld [vmem:[%s1447 + $0x10] sm:$0xf]
      %v1453 = vld [vmem:[%s1447 + $0x14] sm:$0xf]
      %v1454 = vld [vmem:[%s1447 + $0x18] sm:$0xf]
      %v1455 = vld [vmem:[%s1447 + $0x1c] sm:$0xf]
      %v1456 = vld [vmem:[%s1447 + $0x20] sm:$0xf]
      %v1457 = vld [vmem:[%s1447 + $0x24] sm:$0xf]
      %v1458 = vld [vmem:[%s1447 + $0x28] sm:$0xf]
      %v1459 = vld [vmem:[%s1447 + $0x2c] sm:$0xf]
      %v1460 = vld [vmem:[%s1447 + $0x30] sm:$0xf]
      %v1461 = vld [vmem:[%s1447 + $0x34] sm:$0xf]
      %v1462 = vld [vmem:[%s1447 + $0x38] sm:$0xf]
      %v1463 = vld [vmem:[%s1447 + $0x3c] sm:$0xf]
      %v1480 = vunpack.c.l.b16 %v1448
      %v1481 = vunpack.c.l.b16 %v1449
      %v1482 = vunpack.c.l.b16 %v1450
      %v1483 = vunpack.c.l.b16 %v1451
      %v1484 = vunpack.c.l.b16 %v1452
      %v1485 = vunpack.c.l.b16 %v1453
      %v1486 = vunpack.c.l.b16 %v1454
      %v1487 = vunpack.c.l.b16 %v1455
      %v1488 = vunpack.c.l.b16 %v1456
      %v1489 = vunpack.c.l.b16 %v1457
      %v1490 = vunpack.c.l.b16 %v1458
      %v1491 = vunpack.c.l.b16 %v1459
      %v1492 = vunpack.c.l.b16 %v1460
      %v1493 = vunpack.c.l.b16 %v1461
      %v1494 = vunpack.c.l.b16 %v1462
      %v1495 = vunpack.c.l.b16 %v1463
      %v1496 = vpack.c.b16 %v1481, %v1480
      %v1497 = vpack.c.b16 %v1483, %v1482
      %v1498 = vpack.c.b16 %v1485, %v1484
      %v1499 = vpack.c.b16 %v1487, %v1486
      %v1500 = vpack.c.b16 %v1489, %v1488
      %v1501 = vpack.c.b16 %v1491, %v1490
      %v1502 = vpack.c.b16 %v1493, %v1492
      %v1503 = vpack.c.b16 %v1495, %v1494
      %1512 = vmatprep.subr.bf16.mxu0 0
      %1513 = vmatpush1.bf16.msra.mxu0 %v1496
      %1514 = vmatprep.subr.bf16.mxu0 0
      %1515 = vmatpush1.bf16.msra.mxu0 %v1497
      %1516 = vmatprep.subr.bf16.mxu0 0
      %1517 = vmatpush1.bf16.msra.mxu0 %v1498
      %1518 = vmatprep.subr.bf16.mxu0 0
      %1519 = vmatpush1.bf16.msra.mxu0 %v1499
      %1520 = vmatprep.subr.bf16.mxu0 0
      %1521 = vmatpush1.bf16.msra.mxu0 %v1500
      %1522 = vmatprep.subr.bf16.mxu0 0
      %1523 = vmatpush1.bf16.msra.mxu0 %v1501
      %1524 = vmatprep.subr.bf16.mxu0 0
      %1525 = vmatpush1.bf16.msra.mxu0 %v1502
      %1526 = vmatprep.subr.bf16.mxu0 0
      %1527 = vmatpush1.bf16.msra.mxu0 %v1503
      %1528 = vmatprep.subr.bf16.mxu0 0
      %1529 = vmatpush1.bf16.msra.mxu0 0
      %1530 = vmatprep.subr.bf16.mxu0 0
      %1531 = vmatpush1.bf16.msra.mxu0 0
      %1532 = vmatprep.subr.bf16.mxu0 0
      %1533 = vmatpush1.bf16.msra.mxu0 0
      %1534 = vmatprep.subr.bf16.mxu0 0
      %1535 = vmatpush1.bf16.msra.mxu0 0
      %1536 = vmatprep.subr.bf16.mxu0 0
      %1537 = vmatpush1.bf16.msra.mxu0 0
      %1538 = vmatprep.subr.bf16.mxu0 0
      %1539 = vmatpush1.bf16.msra.mxu0 0
      %1540 = vmatprep.subr.bf16.mxu0 0
      %1541 = vmatpush1.bf16.msra.mxu0 0
      %1542 = vmatprep.subr.bf16.mxu0 0
      %1543 = vmatpush1.bf16.msra.mxu0 0
      %1544 = vmatprep.mubr.bf16.mxu0 0
      %1545 = vmatmul.mubr.bf16.gmra.mrb[0].mxu0 %v1443
      %v1546 = vpop.f32.mrb[0].mxu0
      %v1547 = vadd.f32 0.0, %v1546
      %v1548 = vpop.f32.mrb[0].mxu0
      %v1549 = vpop.f32.mrb[0].mxu0
      %v1550 = vadd.f32 0.0, %v1549
      %v1551 = vpop.f32.mrb[0].mxu0
      %1552 = vmatprep.mubr.bf16.mxu0 0
      %1553 = vmatmul.mubr.bf16.gmra.mrb[0].mxu0 %v1444
      %v1554 = vpop.f32.mrb[0].mxu0
      %v1555 = vadd.f32 0.0, %v1554
      %v1556 = vpop.f32.mrb[0].mxu0
      %v1557 = vpop.f32.mrb[0].mxu0
      %v1558 = vadd.f32 0.0, %v1557
      %v1559 = vpop.f32.mrb[0].mxu0
      %1560 = vmatprep.mubr.bf16.mxu0 0
      %1561 = vmatmul.mubr.bf16.gmra.mrb[0].mxu0 %v1445
      %v1562 = vpop.f32.mrb[0].mxu0
      %v1563 = vadd.f32 0.0, %v1562
      %v1564 = vpop.f32.mrb[0].mxu0
      %v1565 = vpop.f32.mrb[0].mxu0
      %v1566 = vadd.f32 0.0, %v1565
      %v1567 = vpop.f32.mrb[0].mxu0
      %1568 = vmatprep.mubr.bf16.mxu0 0
      %1569 = vmatmul.mubr.bf16.gmra.mrb[0].mxu0 %v1446
      %v1570 = vpop.f32.mrb[0].mxu0
      %v1571 = vadd.f32 0.0, %v1570
      %v1572 = vpop.f32.mrb[0].mxu0
      %v1573 = vpop.f32.mrb[0].mxu0
      %v1574 = vadd.f32 0.0, %v1573
      %v1575 = vpop.f32.mrb[0].mxu0
      %1576 = vdwg.mxu0
      %v1577 = vadd.f32 %v1415, %v1547
      %v1578 = vadd.f32 %v1416, %v1550
      %v1579 = vadd.f32 %v1417, %v1555
      %v1580 = vadd.f32 %v1418, %v1558
      %v1581 = vadd.f32 %v1419, %v1563
      %v1582 = vadd.f32 %v1420, %v1566
      %v1583 = vadd.f32 %v1421, %v1571
      %v1584 = vadd.f32 %v1422, %v1574
      %s1585 = smul.addr %s1424, 4
      %s1586 = scalar_lea.vmem %s333, %s1585
      %v1587 = vld [vmem:[%s1586] sm:$0xf]
      %v1588 = vld [vmem:[%s1586 + $0x8] sm:$0xf]
      %v1589 = vld [vmem:[%s1586 + $0x10] sm:$0xf]
      %v1590 = vld [vmem:[%s1586 + $0x18] sm:$0xf]
      %v1591 = vld [vmem:[%s1586 + $0x20] sm:$0xf]
      %v1592 = vld [vmem:[%s1586 + $0x28] sm:$0xf]
      %v1593 = vld [vmem:[%s1586 + $0x30] sm:$0xf]
      %v1594 = vld [vmem:[%s1586 + $0x38] sm:$0xf]
      %v1595 = vunpack.c.l.bf16 %v1587
      %v1596 = vunpack.c.l.bf16 %v1588
      %v1597 = vunpack.c.l.bf16 %v1589
      %v1598 = vunpack.c.l.bf16 %v1590
      %v1599 = vunpack.c.l.bf16 %v1591
      %v1600 = vunpack.c.l.bf16 %v1592
      %v1601 = vunpack.c.l.bf16 %v1593
      %v1602 = vunpack.c.l.bf16 %v1594
      %v1603 = vpack.c.bf16 %v1596, %v1595
      %v1604 = vpack.c.bf16 %v1598, %v1597
      %v1605 = vpack.c.bf16 %v1600, %v1599
      %v1606 = vpack.c.bf16 %v1602, %v1601
      %s1607 = scalar_lea.vmem %s4, 448
      %v1608 = vld [vmem:[%s1607] sm:$0xf]
      %v1609 = vld [vmem:[%s1607 + $0x4] sm:$0xf]
      %v1610 = vld [vmem:[%s1607 + $0x8] sm:$0xf]
      %v1611 = vld [vmem:[%s1607 + $0xc] sm:$0xf]
      %v1612 = vld [vmem:[%s1607 + $0x10] sm:$0xf]
      %v1613 = vld [vmem:[%s1607 + $0x14] sm:$0xf]
      %v1614 = vld [vmem:[%s1607 + $0x18] sm:$0xf]
      %v1615 = vld [vmem:[%s1607 + $0x1c] sm:$0xf]
      %v1616 = vld [vmem:[%s1607 + $0x20] sm:$0xf]
      %v1617 = vld [vmem:[%s1607 + $0x24] sm:$0xf]
      %v1618 = vld [vmem:[%s1607 + $0x28] sm:$0xf]
      %v1619 = vld [vmem:[%s1607 + $0x2c] sm:$0xf]
      %v1620 = vld [vmem:[%s1607 + $0x30] sm:$0xf]
      %v1621 = vld [vmem:[%s1607 + $0x34] sm:$0xf]
      %v1622 = vld [vmem:[%s1607 + $0x38] sm:$0xf]
      %v1623 = vld [vmem:[%s1607 + $0x3c] sm:$0xf]
      %v1640 = vunpack.c.l.b16 %v1608
      %v1641 = vunpack.c.l.b16 %v1609
      %v1642 = vunpack.c.l.b16 %v1610
      %v1643 = vunpack.c.l.b16 %v1611
      %v1644 = vunpack.c.l.b16 %v1612
      %v1645 = vunpack.c.l.b16 %v1613
      %v1646 = vunpack.c.l.b16 %v1614
      %v1647 = vunpack.c.l.b16 %v1615
      %v1648 = vunpack.c.l.b16 %v1616
      %v1649 = vunpack.c.l.b16 %v1617
      %v1650 = vunpack.c.l.b16 %v1618
      %v1651 = vunpack.c.l.b16 %v1619
      %v1652 = vunpack.c.l.b16 %v1620
      %v1653 = vunpack.c.l.b16 %v1621
      %v1654 = vunpack.c.l.b16 %v1622
      %v1655 = vunpack.c.l.b16 %v1623
      %v1656 = vpack.c.b16 %v1641, %v1640
      %v1657 = vpack.c.b16 %v1643, %v1642
      %v1658 = vpack.c.b16 %v1645, %v1644
      %v1659 = vpack.c.b16 %v1647, %v1646
      %v1660 = vpack.c.b16 %v1649, %v1648
      %v1661 = vpack.c.b16 %v1651, %v1650
      %v1662 = vpack.c.b16 %v1653, %v1652
      %v1663 = vpack.c.b16 %v1655, %v1654
      %1672 = vmatprep.subr.bf16.mxu0 0
      %1673 = vmatpush1.bf16.msra.mxu0 %v1656
      %1674 = vmatprep.subr.bf16.mxu0 0
      %1675 = vmatpush1.bf16.msra.mxu0 %v1657
      %1676 = vmatprep.subr.bf16.mxu0 0
      %1677 = vmatpush1.bf16.msra.mxu0 %v1658
      %1678 = vmatprep.subr.bf16.mxu0 0
      %1679 = vmatpush1.bf16.msra.mxu0 %v1659
      %1680 = vmatprep.subr.bf16.mxu0 0
      %1681 = vmatpush1.bf16.msra.mxu0 %v1660
      %1682 = vmatprep.subr.bf16.mxu0 0
      %1683 = vmatpush1.bf16.msra.mxu0 %v1661
      %1684 = vmatprep.subr.bf16.mxu0 0
      %1685 = vmatpush1.bf16.msra.mxu0 %v1662
      %1686 = vmatprep.subr.bf16.mxu0 0
      %1687 = vmatpush1.bf16.msra.mxu0 %v1663
      %1688 = vmatprep.subr.bf16.mxu0 0
      %1689 = vmatpush1.bf16.msra.mxu0 0
      %1690 = vmatprep.subr.bf16.mxu0 0
      %1691 = vmatpush1.bf16.msra.mxu0 0
      %1692 = vmatprep.subr.bf16.mxu0 0
      %1693 = vmatpush1.bf16.msra.mxu0 0
      %1694 = vmatprep.subr.bf16.mxu0 0
      %1695 = vmatpush1.bf16.msra.mxu0 0
      %1696 = vmatprep.subr.bf16.mxu0 0
      %1697 = vmatpush1.bf16.msra.mxu0 0
      %1698 = vmatprep.subr.bf16.mxu0 0
      %1699 = vmatpush1.bf16.msra.mxu0 0
      %1700 = vmatprep.subr.bf16.mxu0 0
      %1701 = vmatpush1.bf16.msra.mxu0 0
      %1702 = vmatprep.subr.bf16.mxu0 0
      %1703 = vmatpush1.bf16.msra.mxu0 0
      %1704 = vmatprep.mubr.bf16.mxu0 0
      %1705 = vmatmul.mubr.bf16.gmra.mrb[0].mxu0 %v1603
      %v1706 = vpop.f32.mrb[0].mxu0
      %v1707 = vadd.f32 0.0, %v1706
      %v1708 = vpop.f32.mrb[0].mxu0
      %v1709 = vpop.f32.mrb[0].mxu0
      %v1710 = vadd.f32 0.0, %v1709
      %v1711 = vpop.f32.mrb[0].mxu0
      %1712 = vmatprep.mubr.bf16.mxu0 0
      %1713 = vmatmul.mubr.bf16.gmra.mrb[0].mxu0 %v1604
      %v1714 = vpop.f32.mrb[0].mxu0
      %v1715 = vadd.f32 0.0, %v1714
      %v1716 = vpop.f32.mrb[0].mxu0
      %v1717 = vpop.f32.mrb[0].mxu0
      %v1718 = vadd.f32 0.0, %v1717
      %v1719 = vpop.f32.mrb[0].mxu0
      %1720 = vmatprep.mubr.bf16.mxu0 0
      %1721 = vmatmul.mubr.bf16.gmra.mrb[0].mxu0 %v1605
      %v1722 = vpop.f32.mrb[0].mxu0
      %v1723 = vadd.f32 0.0, %v1722
      %v1724 = vpop.f32.mrb[0].mxu0
      %v1725 = vpop.f32.mrb[0].mxu0
      %v1726 = vadd.f32 0.0, %v1725
      %v1727 = vpop.f32.mrb[0].mxu0
      %1728 = vmatprep.mubr.bf16.mxu0 0
      %1729 = vmatmul.mubr.bf16.gmra.mrb[0].mxu0 %v1606
      %v1730 = vpop.f32.mrb[0].mxu0
      %v1731 = vadd.f32 0.0, %v1730
      %v1732 = vpop.f32.mrb[0].mxu0
      %v1733 = vpop.f32.mrb[0].mxu0
      %v1734 = vadd.f32 0.0, %v1733
      %v1735 = vpop.f32.mrb[0].mxu0
      %1736 = vdwg.mxu0
      %v1737 = vadd.f32 %v1577, %v1707
      %v1738 = vadd.f32 %v1578, %v1710
      %v1739 = vadd.f32 %v1579, %v1715
      %v1740 = vadd.f32 %v1580, %v1718
      %v1741 = vadd.f32 %v1581, %v1723
      %v1742 = vadd.f32 %v1582, %v1726
      %v1743 = vadd.f32 %v1583, %v1731
      %v1744 = vadd.f32 %v1584, %v1734
      %v1745 = vld [vmem:[%s1426] sm:$0xf]
      %v1746 = vld [vmem:[%s1426 + $0x4] sm:$0x1]
      %v1747 = vld [vmem:[%s1426 + $0x8] sm:$0xf]
      %v1748 = vld [vmem:[%s1426 + $0xc] sm:$0x1]
      %v1749 = vld [vmem:[%s1426 + $0x10] sm:$0xf]
      %v1750 = vld [vmem:[%s1426 + $0x14] sm:$0x1]
      %v1751 = vld [vmem:[%s1426 + $0x18] sm:$0xf]
      %v1752 = vld [vmem:[%s1426 + $0x1c] sm:$0x1]
      %v1753 = vld [vmem:[%s1426 + $0x20] sm:$0xf]
      %v1754 = vld [vmem:[%s1426 + $0x24] sm:$0x1]
      %v1755 = vld [vmem:[%s1426 + $0x28] sm:$0xf]
      %v1756 = vld [vmem:[%s1426 + $0x2c] sm:$0x1]
      %v1757 = vld [vmem:[%s1426 + $0x30] sm:$0xf]
      %v1758 = vld [vmem:[%s1426 + $0x34] sm:$0x1]
      %v1759 = vld [vmem:[%s1426 + $0x38] sm:$0xf]
      %v1760 = vld [vmem:[%s1426 + $0x3c] sm:$0x1]
      %v1761 = vunpack.c.l.bf16 %v1745
      %v1762 = vunpack.c.l.bf16 %v1746
      %v1763 = vunpack.c.l.bf16 %v1747
      %v1764 = vunpack.c.l.bf16 %v1748
      %v1765 = vunpack.c.l.bf16 %v1749
      %v1766 = vunpack.c.l.bf16 %v1750
      %v1767 = vunpack.c.l.bf16 %v1751
      %v1768 = vunpack.c.l.bf16 %v1752
      %v1769 = vunpack.c.l.bf16 %v1753
      %v1770 = vunpack.c.l.bf16 %v1754
      %v1771 = vunpack.c.l.bf16 %v1755
      %v1772 = vunpack.c.l.bf16 %v1756
      %v1773 = vunpack.c.l.bf16 %v1757
      %v1774 = vunpack.c.l.bf16 %v1758
      %v1775 = vunpack.c.l.bf16 %v1759
      %v1776 = vunpack.c.l.bf16 %v1760
      %v1793 = vrot.slane %v1761, 1
      %v1794 = vrot.slane %v1762, 1
      %v1795 = vsel %vm706, %v1793, %v1794
      %v1796 = vrot.slane %v1763, 1
      %v1797 = vrot.slane %v1764, 1
      %v1798 = vsel %vm706, %v1796, %v1797
      %v1799 = vrot.slane %v1765, 1
      %v1800 = vrot.slane %v1766, 1
      %v1801 = vsel %vm706, %v1799, %v1800
      %v1802 = vrot.slane %v1767, 1
      %v1803 = vrot.slane %v1768, 1
      %v1804 = vsel %vm706, %v1802, %v1803
      %v1805 = vrot.slane %v1769, 1
      %v1806 = vrot.slane %v1770, 1
      %v1807 = vsel %vm706, %v1805, %v1806
      %v1808 = vrot.slane %v1771, 1
      %v1809 = vrot.slane %v1772, 1
      %v1810 = vsel %vm706, %v1808, %v1809
      %v1811 = vrot.slane %v1773, 1
      %v1812 = vrot.slane %v1774, 1
      %v1813 = vsel %vm706, %v1811, %v1812
      %v1814 = vrot.slane %v1775, 1
      %v1815 = vrot.slane %v1776, 1
      %v1816 = vsel %vm706, %v1814, %v1815
      %v1825 = vpack.c.bf16 %v1798, %v1795
      %v1826 = vpack.c.bf16 %v1804, %v1801
      %v1827 = vpack.c.bf16 %v1810, %v1807
      %v1828 = vpack.c.bf16 %v1816, %v1813
      %s1829 = scalar_lea.vmem %s4, 512
      %v1830 = vld [vmem:[%s1829] sm:$0xf]
      %v1831 = vld [vmem:[%s1829 + $0x4] sm:$0xf]
      %v1832 = vld [vmem:[%s1829 + $0x8] sm:$0xf]
      %v1833 = vld [vmem:[%s1829 + $0xc] sm:$0xf]
      %v1834 = vld [vmem:[%s1829 + $0x10] sm:$0xf]
      %v1835 = vld [vmem:[%s1829 + $0x14] sm:$0xf]
      %v1836 = vld [vmem:[%s1829 + $0x18] sm:$0xf]
      %v1837 = vld [vmem:[%s1829 + $0x1c] sm:$0xf]
      %v1838 = vld [vmem:[%s1829 + $0x20] sm:$0xf]
      %v1839 = vld [vmem:[%s1829 + $0x24] sm:$0xf]
      %v1840 = vld [vmem:[%s1829 + $0x28] sm:$0xf]
      %v1841 = vld [vmem:[%s1829 + $0x2c] sm:$0xf]
      %v1842 = vld [vmem:[%s1829 + $0x30] sm:$0xf]
      %v1843 = vld [vmem:[%s1829 + $0x34] sm:$0xf]
      %v1844 = vld [vmem:[%s1829 + $0x38] sm:$0xf]
      %v1845 = vld [vmem:[%s1829 + $0x3c] sm:$0xf]
      %v1862 = vunpack.c.l.b16 %v1830
      %v1863 = vunpack.c.l.b16 %v1831
      %v1864 = vunpack.c.l.b16 %v1832
      %v1865 = vunpack.c.l.b16 %v1833
      %v1866 = vunpack.c.l.b16 %v1834
      %v1867 = vunpack.c.l.b16 %v1835
      %v1868 = vunpack.c.l.b16 %v1836
      %v1869 = vunpack.c.l.b16 %v1837
      %v1870 = vunpack.c.l.b16 %v1838
      %v1871 = vunpack.c.l.b16 %v1839
      %v1872 = vunpack.c.l.b16 %v1840
      %v1873 = vunpack.c.l.b16 %v1841
      %v1874 = vunpack.c.l.b16 %v1842
      %v1875 = vunpack.c.l.b16 %v1843
      %v1876 = vunpack.c.l.b16 %v1844
      %v1877 = vunpack.c.l.b16 %v1845
      %v1878 = vpack.c.b16 %v1863, %v1862
      %v1879 = vpack.c.b16 %v1865, %v1864
      %v1880 = vpack.c.b16 %v1867, %v1866
      %v1881 = vpack.c.b16 %v1869, %v1868
      %v1882 = vpack.c.b16 %v1871, %v1870
      %v1883 = vpack.c.b16 %v1873, %v1872
      %v1884 = vpack.c.b16 %v1875, %v1874
      %v1885 = vpack.c.b16 %v1877, %v1876
      %1894 = vmatprep.subr.bf16.mxu0 0
      %1895 = vmatpush1.bf16.msra.mxu0 %v1878
      %1896 = vmatprep.subr.bf16.mxu0 0
      %1897 = vmatpush1.bf16.msra.mxu0 %v1879
      %1898 = vmatprep.subr.bf16.mxu0 0
      %1899 = vmatpush1.bf16.msra.mxu0 %v1880
      %1900 = vmatprep.subr.bf16.mxu0 0
      %1901 = vmatpush1.bf16.msra.mxu0 %v1881
      %1902 = vmatprep.subr.bf16.mxu0 0
      %1903 = vmatpush1.bf16.msra.mxu0 %v1882
      %1904 = vmatprep.subr.bf16.mxu0 0
      %1905 = vmatpush1.bf16.msra.mxu0 %v1883
      %1906 = vmatprep.subr.bf16.mxu0 0
      %1907 = vmatpush1.bf16.msra.mxu0 %v1884
      %1908 = vmatprep.subr.bf16.mxu0 0
      %1909 = vmatpush1.bf16.msra.mxu0 %v1885
      %1910 = vmatprep.subr.bf16.mxu0 0
      %1911 = vmatpush1.bf16.msra.mxu0 0
      %1912 = vmatprep.subr.bf16.mxu0 0
      %1913 = vmatpush1.bf16.msra.mxu0 0
      %1914 = vmatprep.subr.bf16.mxu0 0
      %1915 = vmatpush1.bf16.msra.mxu0 0
      %1916 = vmatprep.subr.bf16.mxu0 0
      %1917 = vmatpush1.bf16.msra.mxu0 0
      %1918 = vmatprep.subr.bf16.mxu0 0
      %1919 = vmatpush1.bf16.msra.mxu0 0
      %1920 = vmatprep.subr.bf16.mxu0 0
      %1921 = vmatpush1.bf16.msra.mxu0 0
      %1922 = vmatprep.subr.bf16.mxu0 0
      %1923 = vmatpush1.bf16.msra.mxu0 0
      %1924 = vmatprep.subr.bf16.mxu0 0
      %1925 = vmatpush1.bf16.msra.mxu0 0
      %1926 = vmatprep.mubr.bf16.mxu0 0
      %1927 = vmatmul.mubr.bf16.gmra.mrb[0].mxu0 %v1825
      %v1928 = vpop.f32.mrb[0].mxu0
      %v1929 = vadd.f32 0.0, %v1928
      %v1930 = vpop.f32.mrb[0].mxu0
      %v1931 = vpop.f32.mrb[0].mxu0
      %v1932 = vadd.f32 0.0, %v1931
      %v1933 = vpop.f32.mrb[0].mxu0
      %1934 = vmatprep.mubr.bf16.mxu0 0
      %1935 = vmatmul.mubr.bf16.gmra.mrb[0].mxu0 %v1826
      %v1936 = vpop.f32.mrb[0].mxu0
      %v1937 = vadd.f32 0.0, %v1936
      %v1938 = vpop.f32.mrb[0].mxu0
      %v1939 = vpop.f32.mrb[0].mxu0
      %v1940 = vadd.f32 0.0, %v1939
      %v1941 = vpop.f32.mrb[0].mxu0
      %1942 = vmatprep.mubr.bf16.mxu0 0
      %1943 = vmatmul.mubr.bf16.gmra.mrb[0].mxu0 %v1827
      %v1944 = vpop.f32.mrb[0].mxu0
      %v1945 = vadd.f32 0.0, %v1944
      %v1946 = vpop.f32.mrb[0].mxu0
      %v1947 = vpop.f32.mrb[0].mxu0
      %v1948 = vadd.f32 0.0, %v1947
      %v1949 = vpop.f32.mrb[0].mxu0
      %1950 = vmatprep.mubr.bf16.mxu0 0
      %1951 = vmatmul.mubr.bf16.gmra.mrb[0].mxu0 %v1828
      %v1952 = vpop.f32.mrb[0].mxu0
      %v1953 = vadd.f32 0.0, %v1952
      %v1954 = vpop.f32.mrb[0].mxu0
      %v1955 = vpop.f32.mrb[0].mxu0
      %v1956 = vadd.f32 0.0, %v1955
      %v1957 = vpop.f32.mrb[0].mxu0
      %1958 = vdwg.mxu0
      %v1959 = vadd.f32 %v1737, %v1929
      %v1960 = vadd.f32 %v1738, %v1932
      %v1961 = vadd.f32 %v1739, %v1937
      %v1962 = vadd.f32 %v1740, %v1940
      %v1963 = vadd.f32 %v1741, %v1945
      %v1964 = vadd.f32 %v1742, %v1948
      %v1965 = vadd.f32 %v1743, %v1953
      %v1966 = vadd.f32 %v1744, %v1956
      %1967 = vst [vmem:[%s349] sm:$0xff] %v1959
      %1968 = vst [vmem:[%s349 + $0x8] sm:$0xff] %v1960
      %1969 = vst [vmem:[%s349 + $0x10] sm:$0xff] %v1961
      %1970 = vst [vmem:[%s349 + $0x18] sm:$0xff] %v1962
      %1971 = vst [vmem:[%s349 + $0x20] sm:$0xff] %v1963
      %1972 = vst [vmem:[%s349 + $0x28] sm:$0xff] %v1964
      %1973 = vst [vmem:[%s349 + $0x30] sm:$0xff] %v1965
      %1974 = vst [vmem:[%s349 + $0x38] sm:$0xff] %v1966
      %p1975 = scmp.eq.s32.totalorder %s23, 0
      %p1976 = scmp.eq.s32.totalorder %s24, 0
      %p1977 = pnand %p1975, %p1976
      %p1978 = pneg %p1977
      // Predicated region
      $region41: #{residual_block_forward.10} parent=39 // pred_check
        _
      $region42: #{residual_block_forward.10} parent=39 // pred_check_branch
        %1980 = sbr.rel (%p1977) target = $region44
      $region43: #{residual_block_forward.10} parent=39 // pred_region
        %1981 = vst [vmem:[#allocation2] sm:$0x1] 0.0
        %1982 = vst [vmem:[#allocation3] sm:$0x1] 0.0
      $region44: #{residual_block_forward.10} parent=39 // pred_fallthru
        _
      %v1983 = vld [vmem:[#allocation2] sm:$0x1]
      %v1984 = vadd.f32 %v1959, %v1960
      %v1985 = vadd.f32 %v1984, %v1961
      %v1986 = vadd.f32 %v1985, %v1962
      %v1987 = vadd.f32 %v1986, %v1963
      %v1988 = vadd.f32 %v1987, %v1964
      %v1989 = vadd.f32 %v1988, %v1965
      %v1990 = vadd.f32 %v1989, %v1966
      %v1991 = vrot.slane %v1990, 4
      %v1992 = vadd.f32 %v1990, %v1991
      %v1993 = vrot.slane %v1992, 2
      %v1994 = vadd.f32 %v1992, %v1993
      %v1995 = vrot.slane %v1994, 1
      %v1996 = vadd.f32 %v1994, %v1995
      %v1997 = vadd.f32 %v1983, %v1996
      %1998 = vst [vmem:[#allocation2] sm:$0x1] %v1997
      %v1999 = vld [vmem:[#allocation3] sm:$0x1]
      %v2000 = vmul.f32 %v1959, %v1959
      %v2001 = vmul.f32 %v1960, %v1960
      %v2002 = vmul.f32 %v1961, %v1961
      %v2003 = vmul.f32 %v1962, %v1962
      %v2004 = vmul.f32 %v1963, %v1963
      %v2005 = vmul.f32 %v1964, %v1964
      %v2006 = vmul.f32 %v1965, %v1965
      %v2007 = vmul.f32 %v1966, %v1966
      %v2008 = vadd.f32 %v2000, %v2001
      %v2009 = vadd.f32 %v2008, %v2002
      %v2010 = vadd.f32 %v2009, %v2003
      %v2011 = vadd.f32 %v2010, %v2004
      %v2012 = vadd.f32 %v2011, %v2005
      %v2013 = vadd.f32 %v2012, %v2006
      %v2014 = vadd.f32 %v2013, %v2007
      %v2015 = vrot.slane %v2014, 4
      %v2016 = vadd.f32 %v2014, %v2015
      %v2017 = vrot.slane %v2016, 2
      %v2018 = vadd.f32 %v2016, %v2017
      %v2019 = vrot.slane %v2018, 1
      %v2020 = vadd.f32 %v2018, %v2019
      %v2021 = vadd.f32 %v1999, %v2020
      %2022 = vst [vmem:[#allocation3] sm:$0x1] %v2021
      %v2023 = vld [vmem:[#allocation2] sm:$0x1]
      %2024 = vst [vmem:[%s6] sm:$0x1] %v2023
      %v2025 = vld [vmem:[#allocation3] sm:$0x1]
      %2026 = vst [vmem:[%s7] sm:$0x1] %v2025
      %s2027 = sadd.s32 %s23, %s24
      %s2028 = smul.u32 8, %s2027
      %p2029 = scmp.lt.s32.totalorder %s2028, 15
      %s2030 = scalar_select %p2029, %s2028, 15
      %s2031 = smul.addr %s2030, 8
      %s2032 = scalar_lea.vmem %s5, %s2031
      // Predicated region
      $region45: #{residual_block_forward.10} parent=39 // pred_check
        %p2033 = pneg %p176
      $region46: #{residual_block_forward.10} parent=39 // pred_check_branch
        %2035 = sbr.rel (%p2033) target = $region48
      $region47: #{residual_block_forward.10} parent=39 // pred_region
        %s2036 = sadd.s32 %s23, %s24
        %s2037 = smul.u32 8, %s2036
      $region48: #{residual_block_forward.10} parent=39 // pred_fallthru
        _
      // Predicated region
      $region49: #{residual_block_forward.10} parent=39 // pred_check
        %p2038 = pneg %p197
      $region50: #{residual_block_forward.10} parent=39 // pred_check_branch
        %2040 = sbr.rel (%p2038) target = $region52
      $region51: #{residual_block_forward.10} parent=39 // pred_region
        _
      $region52: #{residual_block_forward.10} parent=39 // pred_fallthru
        _
      // Predicated region
      $region53: #{residual_block_forward.10} parent=39 // pred_check
        %p2041 = pneg %p218
      $region54: #{residual_block_forward.10} parent=39 // pred_check_branch
        %2043 = sbr.rel (%p2041) target = $region56
      $region55: #{residual_block_forward.10} parent=39 // pred_region
        _
      $region56: #{residual_block_forward.10} parent=39 // pred_fallthru
        _
      // Predicated region
      $region57: #{residual_block_forward.10} parent=39 // pred_check
        %p2044 = pneg %p197
      $region58: #{residual_block_forward.10} parent=39 // pred_check_branch
        %2046 = sbr.rel (%p2044) target = $region60
      $region59: #{residual_block_forward.10} parent=39 // pred_region
        _
      $region60: #{residual_block_forward.10} parent=39 // pred_fallthru
        _
      // Predicated region
      $region61: #{residual_block_forward.10} parent=39 // pred_check
        %p2047 = pneg %p218
      $region62: #{residual_block_forward.10} parent=39 // pred_check_branch
        %2049 = sbr.rel (%p2047) target = $region64
      $region63: #{residual_block_forward.10} parent=39 // pred_region
        _
      $region64: #{residual_block_forward.10} parent=39 // pred_fallthru
        _
    $region40: #{residual_block_forward.10} parent=5 // pred_fallthru
      _
    %p2050 = scmp.le.s32.totalorder 2, %s14
    // Predicated region
    $region65: #{residual_block_forward.10} parent=5 // pred_check
      %p2051 = pneg %p2050
    $region66: #{residual_block_forward.10} parent=5 // pred_check_branch
      %2053 = sbr.rel (%p2051) target = $region68
    $region67: #{residual_block_forward.10} parent=5 // pred_region
      %s2054 = ssub.s32 %s14, 2
      // Predicated region
      $region69: #{residual_block_forward.10} parent=67 // pred_check
        %p2055 = pneg %p182
      $region70: #{residual_block_forward.10} parent=67 // pred_check_branch
        %2057 = sbr.rel (%p2055) target = $region72
      $region71: #{residual_block_forward.10} parent=67 // pred_region
        %s2058 = sadd.s32 %s25, %s26
        %s2059 = smul.u32 8, %s2058
        %p2060 = scmp.lt.s32.totalorder %s2059, 15
        %s2061 = scalar_select %p2060, %s2059, 15
        %s2062 = smul.addr %s2061, 8
        %s2063 = scalar_lea.vmem %s5, %s2062
      $region72: #{residual_block_forward.10} parent=67 // pred_fallthru
        _
    $region68: #{residual_block_forward.10} parent=5 // pred_fallthru
      _
  $region6: #{residual_block_forward.10} parent=0 // loop_footer
    %s18 = sadd.s32 1, %s14
  $region7: #{residual_block_forward.10} parent=0 // loop_footer_branch
    %13 = sbr.rel target = $region3
  $region8: #{residual_block_forward.10} parent=0 // loop_exit
    _

// kernel: residual_block_forward.14
$region0: #{residual_block_forward.14}
  #allocation0 [shape = 'u32[]', space=smem, size = 0x4, offset = 0x4, fixed_abs, tag = 'smem constant byte address 0x4 - core index']
  #allocation1 [shape = 'u32[144,128]{1,0:T(1,128)}', space=vmem, size = 0x12000, scoped, tag = 'internal scratch']
  #allocation2 [shape = 'f32[1,128]{1,0:T(1,128)}', space=vmem, size = 0x200, scoped, tag = 'scratch operand']
  #allocation3 [shape = 'f32[1,128]{1,0:T(1,128)}', space=vmem, size = 0x200, scoped, tag = 'scratch operand']
  %s0 = inlined_call_operand.vmem [shape: bf16[2,10,10,128], index: 0, kind: input, shape index: {}]
  %s1 = inlined_call_operand.vmem [shape: bf16[9,128,128], index: 1, kind: input, shape index: {}]
  %s2 = inlined_call_operand.vmem [shape: f32[128,128], index: 2, kind: output, shape index: {0}]
  %s3 = inlined_call_operand.vmem [shape: f32[1,128], index: 3, kind: output, shape index: {1}]
  %s4 = inlined_call_operand.vmem [shape: f32[1,128], index: 4, kind: output, shape index: {2}]
  %5 = xla_tuple %s2, %s3, %s4
  %s6 = sld [smem:[#allocation0]]
  $region61: #{residual_block_forward.14} parent=0
    _
  %s8 = ssub.s32 1, %s6
  %s9 = scalar_select 0, %s8, %s6
  loop: start=0, step=1, limit=4
  $region2: #{residual_block_forward.14} parent=0 // loop_pre_header
    _
  $region3: #{residual_block_forward.14} parent=0 // loop_header
    %s11 = sphi 0, %s15
    %p12 = scmp.ge.s32.totalorder %s11, 4
    %s18 = sphi 0, %s30
    %s19 = sphi 0, %s26
    %s20 = sphi 0, %s18
    %s21 = sphi 0, %s19
    %s22 = sphi 0, %s20
    %s23 = sphi 0, %s21
    %s33 = sphi 0, %s35
    %s36 = sphi 0, %s33
    %s37 = sphi 0, %s36
    %s53 = sphi 0, %s37
    %s57 = sphi 0, %s57
    %s59 = sphi 0, %s57
    %s60 = sphi 0, %s59
    %s74 = sphi 0, %s60
    %s82 = sphi 0, %s84
    %s85 = sphi 0, %s82
    %s86 = sphi 0, %s85
    %s102 = sphi 0, %s86
    %s106 = sphi 0, %s106
    %s108 = sphi 0, %s106
    %s109 = sphi 0, %s108
    %s123 = sphi 0, %s109
    %s127 = sphi 0, %s127
    %s129 = sphi 0, %s127
    %s130 = sphi 0, %s129
    %s144 = sphi 0, %s130
  $region4: #{residual_block_forward.14} parent=0 // loop_header_branch
    %14 = sbr.rel (%p12) target = $region8
  $region5: #{residual_block_forward.14} parent=0 // loop_body
    %s16 = ssub.s32 %s11, 1
    %s17 = ssub.s32 %s11, 2
    %s24 = sadd.s32 1, %s19
    %p25 = scmp.ge.s32.totalorder %s24, 1
    %s26 = scalar_select %p25, 0, %s24
    %s27 = sadd.s32 1, %s18
    %s28 = scalar_select %p25, %s27, %s18
    %p29 = scmp.ge.s32.totalorder %s28, 2
    %s30 = scalar_select %p29, 0, %s28
    %s31 = ssub.s32 %s18, %s30
    %p32 = scmp.eq.s32.totalorder %s31, 0
    %s34 = sadd.s32 %s33, 1
    %s35 = scalar_select %p32, %s33, %s34
    %p38 = pneg %p32
    %p39 = scmp.eq.s32.totalorder %s11, 1
    %p40 = por %p38, %p39
    %p41 = scmp.ne.s32.totalorder %s33, %s36
    %p42 = scmp.eq.s32.totalorder %s11, 0
    %p43 = por %p41, %p42
    %p44 = scmp.ne.s32.totalorder %s33, %s36
    %p45 = scmp.eq.s32.totalorder %s16, 1
    %p46 = por %p44, %p45
    %p47 = scmp.ne.s32.totalorder %s36, %s37
    %p48 = scmp.eq.s32.totalorder %s16, 0
    %p49 = por %p47, %p48
    %p50 = scmp.ne.s32.totalorder %s36, %s37
    %p51 = scmp.eq.s32.totalorder %s17, 1
    %p52 = por %p50, %p51
    %p54 = scmp.ne.s32.totalorder %s37, %s53
    %p55 = scmp.eq.s32.totalorder %s17, 0
    %p56 = por %p54, %p55
    %s58 = sadd.s32 %s57, 1
    %p61 = scmp.eq.s32.totalorder %s11, 1
    %p62 = scmp.ne.s32.totalorder %s57, %s59
    %p63 = scmp.eq.s32.totalorder %s11, 0
    %p64 = por %p62, %p63
    %p65 = scmp.ne.s32.totalorder %s57, %s59
    %p66 = scmp.eq.s32.totalorder %s16, 1
    %p67 = por %p65, %p66
    %p68 = scmp.ne.s32.totalorder %s59, %s60
    %p69 = scmp.eq.s32.totalorder %s16, 0
    %p70 = por %p68, %p69
    %p71 = scmp.ne.s32.totalorder %s59, %s60
    %p72 = scmp.eq.s32.totalorder %s17, 1
    %p73 = por %p71, %p72
    %p75 = scmp.ne.s32.totalorder %s60, %s74
    %p76 = scmp.eq.s32.totalorder %s17, 0
    %p77 = por %p75, %p76
    %s78 = sadd.s32 %s18, %s19
    %s79 = sadd.s32 %s30, %s26
    %s80 = ssub.s32 %s78, %s79
    %p81 = scmp.eq.s32.totalorder %s80, 0
    %s83 = sadd.s32 %s82, 1
    %s84 = scalar_select %p81, %s82, %s83
    %p87 = pneg %p81
    %p88 = scmp.eq.s32.totalorder %s11, 1
    %p89 = por %p87, %p88
    %p90 = scmp.ne.s32.totalorder %s82, %s85
    %p91 = scmp.eq.s32.totalorder %s11, 0
    %p92 = por %p90, %p91
    %p93 = scmp.ne.s32.totalorder %s82, %s85
    %p94 = scmp.eq.s32.totalorder %s16, 1
    %p95 = por %p93, %p94
    %p96 = scmp.ne.s32.totalorder %s85, %s86
    %p97 = scmp.eq.s32.totalorder %s16, 0
    %p98 = por %p96, %p97
    %p99 = scmp.ne.s32.totalorder %s85, %s86
    %p100 = scmp.eq.s32.totalorder %s17, 1
    %p101 = por %p99, %p100
    %p103 = scmp.ne.s32.totalorder %s86, %s102
    %p104 = scmp.eq.s32.totalorder %s17, 0
    %p105 = por %p103, %p104
    %s107 = sadd.s32 %s106, 1
    %p110 = scmp.eq.s32.totalorder %s11, 1
    %p111 = scmp.ne.s32.totalorder %s106, %s108
    %p112 = scmp.eq.s32.totalorder %s11, 0
    %p113 = por %p111, %p112
    %p114 = scmp.ne.s32.totalorder %s106, %s108
    %p115 = scmp.eq.s32.totalorder %s16, 1
    %p116 = por %p114, %p115
    %p117 = scmp.ne.s32.totalorder %s108, %s109
    %p118 = scmp.eq.s32.totalorder %s16, 0
    %p119 = por %p117, %p118
    %p120 = scmp.ne.s32.totalorder %s108, %s109
    %p121 = scmp.eq.s32.totalorder %s17, 1
    %p122 = por %p120, %p121
    %p124 = scmp.ne.s32.totalorder %s109, %s123
    %p125 = scmp.eq.s32.totalorder %s17, 0
    %p126 = por %p124, %p125
    %s128 = sadd.s32 %s127, 1
    %p131 = scmp.eq.s32.totalorder %s11, 1
    %p132 = scmp.ne.s32.totalorder %s127, %s129
    %p133 = scmp.eq.s32.totalorder %s11, 0
    %p134 = por %p132, %p133
    %p135 = scmp.ne.s32.totalorder %s127, %s129
    %p136 = scmp.eq.s32.totalorder %s16, 1
    %p137 = por %p135, %p136
    %p138 = scmp.ne.s32.totalorder %s129, %s130
    %p139 = scmp.eq.s32.totalorder %s16, 0
    %p140 = por %p138, %p139
    %p141 = scmp.ne.s32.totalorder %s129, %s130
    %p142 = scmp.eq.s32.totalorder %s17, 1
    %p143 = por %p141, %p142
    %p145 = scmp.ne.s32.totalorder %s130, %s144
    %p146 = scmp.eq.s32.totalorder %s17, 0
    %p147 = por %p145, %p146
    %p148 = scmp.le.s32.totalorder 1, %s11
    %p149 = scmp.lt.s32.totalorder %s11, 3
    %p150 = pnand %p148, %p149
    %p151 = pneg %p150
    // Predicated region
    $region9: #{residual_block_forward.14} parent=5 // pred_check
      _
    $region10: #{residual_block_forward.14} parent=5 // pred_check_branch
      %153 = sbr.rel (%p150) target = $region12
    $region11: #{residual_block_forward.14} parent=5 // pred_region
      %s154 = ssub.s32 %s11, 1
      // Predicated region
      $region13: #{residual_block_forward.14} parent=11 // pred_check
        %p155 = pneg %p70
      $region14: #{residual_block_forward.14} parent=11 // pred_check_branch
        %157 = sbr.rel (%p155) target = $region16
      $region15: #{residual_block_forward.14} parent=11 // pred_region
        _
      $region16: #{residual_block_forward.14} parent=11 // pred_fallthru
        _
    $region12: #{residual_block_forward.14} parent=5 // pred_fallthru
      _
    %p158 = scmp.lt.s32.totalorder %s11, 2
    // Predicated region
    $region17: #{residual_block_forward.14} parent=5 // pred_check
      %p159 = pneg %p158
    $region18: #{residual_block_forward.14} parent=5 // pred_check_branch
      %161 = sbr.rel (%p159) target = $region20
    $region19: #{residual_block_forward.14} parent=5 // pred_region
      // Predicated region
      $region21: #{residual_block_forward.14} parent=19 // pred_check
        %p162 = pneg %p43
      $region22: #{residual_block_forward.14} parent=19 // pred_check_branch
        %164 = sbr.rel (%p162) target = $region24
      $region23: #{residual_block_forward.14} parent=19 // pred_region
        %p165 = scmp.lt.s32.totalorder %s18, 1
        %s166 = scalar_select %p165, %s18, 1
        %s167 = smul.addr %s166, 20
        %s168 = smul.addr %s167, 4
        %s169 = scalar_lea.vmem %s0, %s168
      $region24: #{residual_block_forward.14} parent=19 // pred_fallthru
        _
    $region20: #{residual_block_forward.14} parent=5 // pred_fallthru
      _
    %p170 = scmp.le.s32.totalorder 1, %s11
    %p171 = scmp.lt.s32.totalorder %s11, 3
    %p172 = pnand %p170, %p171
    %p173 = pneg %p172
    // Predicated region
    $region25: #{residual_block_forward.14} parent=5 // pred_check
      _
    $region26: #{residual_block_forward.14} parent=5 // pred_check_branch
      %175 = sbr.rel (%p172) target = $region28
    $region27: #{residual_block_forward.14} parent=5 // pred_region
      %s176 = ssub.s32 %s11, 1
      %p177 = scmp.lt.s32.totalorder %s20, 1
      %s178 = scalar_select %p177, %s20, 1
      %s179 = smul.addr %s178, 20
      %s180 = smul.addr %s179, 4
      %s181 = scalar_lea.vmem %s0, %s180
      %p182 = pneg %p49
      %p183 = pneg %p46
      %p184 = pneg %p70
      %p185 = pneg %p67
      %p186 = pneg %p98
      %p187 = pneg %p95
      %s188 = sadd.s32 %s20, %s21
      %s189 = smul.u32 8, %s188
      %p190 = scmp.lt.s32.totalorder %s189, 15
      %s191 = scalar_select %p190, %s189, 15
      %s192 = smul.addr %s191, 8
      %s193 = scalar_lea.vmem %s2, %s192
      %p194 = pneg %p119
      %p195 = pneg %p116
      %p196 = pneg %p140
      %p197 = pneg %p137
      %p198 = scmp.lt.s32.totalorder %s20, 1
      %s199 = scalar_select %p198, %s20, 1
      %s200 = smul.addr %s199, 20
      %s201 = smul.addr %s200, 4
      %s202 = scalar_lea.vmem %s0, %s201
      %s203 = sadd.s32 %s20, %s21
      %s204 = smul.u32 8, %s203
      %p205 = scmp.lt.s32.totalorder %s204, 15
      %s206 = scalar_select %p205, %s204, 15
      %s207 = smul.addr %s206, 8
      %s208 = scalar_lea.vmem %s2, %s207
      %s209 = sadd.s32 %s20, %s21
      %s210 = smul.u32 8, %s209
      %s212 = smul.u32 %s21, 8
      %s213 = smul.u32 %s212, 2
      %s214 = smul.addr %s213, 4
      %s215 = scalar_lea.vmem %s202, %s214
      %v216 = vld [vmem:[%s215] sm:$0xf]
      %v217 = vld [vmem:[%s215 + $0x8] sm:$0xf]
      %v218 = vld [vmem:[%s215 + $0x10] sm:$0xf]
      %v219 = vld [vmem:[%s215 + $0x18] sm:$0xf]
      %v220 = vld [vmem:[%s215 + $0x20] sm:$0xf]
      %v221 = vld [vmem:[%s215 + $0x28] sm:$0xf]
      %v222 = vld [vmem:[%s215 + $0x30] sm:$0xf]
      %v223 = vld [vmem:[%s215 + $0x38] sm:$0xf]
      %v224 = vunpack.c.l.bf16 %v216
      %v225 = vunpack.c.l.bf16 %v217
      %v226 = vunpack.c.l.bf16 %v218
      %v227 = vunpack.c.l.bf16 %v219
      %v228 = vunpack.c.l.bf16 %v220
      %v229 = vunpack.c.l.bf16 %v221
      %v230 = vunpack.c.l.bf16 %v222
      %v231 = vunpack.c.l.bf16 %v223
      %v232 = vpack.c.bf16 %v225, %v224
      %v233 = vpack.c.bf16 %v227, %v226
      %v234 = vpack.c.bf16 %v229, %v228
      %v235 = vpack.c.bf16 %v231, %v230
      %v236 = vld [vmem:[%s1] sm:$0xf]
      %v237 = vld [vmem:[%s1 + $0x4] sm:$0xf]
      %v238 = vld [vmem:[%s1 + $0x8] sm:$0xf]
      %v239 = vld [vmem:[%s1 + $0xc] sm:$0xf]
      %v240 = vld [vmem:[%s1 + $0x10] sm:$0xf]
      %v241 = vld [vmem:[%s1 + $0x14] sm:$0xf]
      %v242 = vld [vmem:[%s1 + $0x18] sm:$0xf]
      %v243 = vld [vmem:[%s1 + $0x1c] sm:$0xf]
      %v244 = vld [vmem:[%s1 + $0x20] sm:$0xf]
      %v245 = vld [vmem:[%s1 + $0x24] sm:$0xf]
      %v246 = vld [vmem:[%s1 + $0x28] sm:$0xf]
      %v247 = vld [vmem:[%s1 + $0x2c] sm:$0xf]
      %v248 = vld [vmem:[%s1 + $0x30] sm:$0xf]
      %v249 = vld [vmem:[%s1 + $0x34] sm:$0xf]
      %v250 = vld [vmem:[%s1 + $0x38] sm:$0xf]
      %v251 = vld [vmem:[%s1 + $0x3c] sm:$0xf]
      %v252 = vld [vmem:[%s215 + $0x4] sm:$0x1]
      %v253 = vld [vmem:[%s215 + $0xc] sm:$0x1]
      %v254 = vld [vmem:[%s215 + $0x14] sm:$0x1]
      %v255 = vld [vmem:[%s215 + $0x1c] sm:$0x1]
      %v256 = vld [vmem:[%s215 + $0x24] sm:$0x1]
      %v257 = vld [vmem:[%s215 + $0x2c] sm:$0x1]
      %v258 = vld [vmem:[%s215 + $0x34] sm:$0x1]
      %v259 = vld [vmem:[%s215 + $0x3c] sm:$0x1]
      %v260 = vunpack.c.l.bf16 %v252
      %v261 = vunpack.c.l.bf16 %v253
      %v262 = vunpack.c.l.bf16 %v254
      %v263 = vunpack.c.l.bf16 %v255
      %v264 = vunpack.c.l.bf16 %v256
      %v265 = vunpack.c.l.bf16 %v257
      %v266 = vunpack.c.l.bf16 %v258
      %v267 = vunpack.c.l.bf16 %v259
      %vm284 = vcmask 1046528
      %v285 = vrot.slane %v224, 1
      %v286 = vrot.slane %v260, 1
      %v287 = vsel %vm284, %v285, %v286
      %v288 = vrot.slane %v225, 1
      %v289 = vrot.slane %v261, 1
      %v290 = vsel %vm284, %v288, %v289
      %v291 = vrot.slane %v226, 1
      %v292 = vrot.slane %v262, 1
      %v293 = vsel %vm284, %v291, %v292
      %v294 = vrot.slane %v227, 1
      %v295 = vrot.slane %v263, 1
      %v296 = vsel %vm284, %v294, %v295
      %v297 = vrot.slane %v228, 1
      %v298 = vrot.slane %v264, 1
      %v299 = vsel %vm284, %v297, %v298
      %v300 = vrot.slane %v229, 1
      %v301 = vrot.slane %v265, 1
      %v302 = vsel %vm284, %v300, %v301
      %v303 = vrot.slane %v230, 1
      %v304 = vrot.slane %v266, 1
      %v305 = vsel %vm284, %v303, %v304
      %v306 = vrot.slane %v231, 1
      %v307 = vrot.slane %v267, 1
      %v308 = vsel %vm284, %v306, %v307
      %v317 = vpack.c.bf16 %v290, %v287
      %v318 = vpack.c.bf16 %v296, %v293
      %v319 = vpack.c.bf16 %v302, %v299
      %v320 = vpack.c.bf16 %v308, %v305
      %s321 = scalar_lea.vmem %s1, 64
      %v322 = vld [vmem:[%s321] sm:$0xf]
      %v323 = vld [vmem:[%s321 + $0x4] sm:$0xf]
      %v324 = vld [vmem:[%s321 + $0x8] sm:$0xf]
      %v325 = vld [vmem:[%s321 + $0xc] sm:$0xf]
      %v326 = vld [vmem:[%s321 + $0x10] sm:$0xf]
      %v327 = vld [vmem:[%s321 + $0x14] sm:$0xf]
      %v328 = vld [vmem:[%s321 + $0x18] sm:$0xf]
      %v329 = vld [vmem:[%s321 + $0x1c] sm:$0xf]
      %v330 = vld [vmem:[%s321 + $0x20] sm:$0xf]
      %v331 = vld [vmem:[%s321 + $0x24] sm:$0xf]
      %v332 = vld [vmem:[%s321 + $0x28] sm:$0xf]
      %v333 = vld [vmem:[%s321 + $0x2c] sm:$0xf]
      %v334 = vld [vmem:[%s321 + $0x30] sm:$0xf]
      %v335 = vld [vmem:[%s321 + $0x34] sm:$0xf]
      %v336 = vld [vmem:[%s321 + $0x38] sm:$0xf]
      %v337 = vld [vmem:[%s321 + $0x3c] sm:$0xf]
      %v354 = vunpack.c.l.b16 %v322
      %v355 = vunpack.c.l.b16 %v323
      %v356 = vunpack.c.l.b16 %v324
      %v357 = vunpack.c.l.b16 %v325
      %v358 = vunpack.c.l.b16 %v326
      %v359 = vunpack.c.l.b16 %v327
      %v360 = vunpack.c.l.b16 %v328
      %v361 = vunpack.c.l.b16 %v329
      %v362 = vunpack.c.l.b16 %v330
      %v363 = vunpack.c.l.b16 %v331
      %v364 = vunpack.c.l.b16 %v332
      %v365 = vunpack.c.l.b16 %v333
      %v366 = vunpack.c.l.b16 %v334
      %v367 = vunpack.c.l.b16 %v335
      %v368 = vunpack.c.l.b16 %v336
      %v369 = vunpack.c.l.b16 %v337
      %v370 = vpack.c.b16 %v355, %v354
      %v371 = vpack.c.b16 %v357, %v356
      %v372 = vpack.c.b16 %v359, %v358
      %v373 = vpack.c.b16 %v361, %v360
      %v374 = vpack.c.b16 %v363, %v362
      %v375 = vpack.c.b16 %v365, %v364
      %v376 = vpack.c.b16 %v367, %v366
      %v377 = vpack.c.b16 %v369, %v368
      %386 = vmatprep.subr.bf16.mxu0 0
      %387 = vmatpush1.bf16.msra.mxu0 %v370
      %388 = vmatprep.subr.bf16.mxu0 0
      %389 = vmatpush1.bf16.msra.mxu0 %v371
      %390 = vmatprep.subr.bf16.mxu0 0
      %391 = vmatpush1.bf16.msra.mxu0 %v372
      %392 = vmatprep.subr.bf16.mxu0 0
      %393 = vmatpush1.bf16.msra.mxu0 %v373
      %394 = vmatprep.subr.bf16.mxu0 0
      %395 = vmatpush1.bf16.msra.mxu0 %v374
      %396 = vmatprep.subr.bf16.mxu0 0
      %397 = vmatpush1.bf16.msra.mxu0 %v375
      %398 = vmatprep.subr.bf16.mxu0 0
      %399 = vmatpush1.bf16.msra.mxu0 %v376
      %400 = vmatprep.subr.bf16.mxu0 0
      %401 = vmatpush1.bf16.msra.mxu0 %v377
      %402 = vmatprep.subr.bf16.mxu0 0
      %403 = vmatpush1.bf16.msra.mxu0 0
      %404 = vmatprep.subr.bf16.mxu0 0
      %405 = vmatpush1.bf16.msra.mxu0 0
      %406 = vmatprep.subr.bf16.mxu0 0
      %407 = vmatpush1.bf16.msra.mxu0 0
      %408 = vmatprep.subr.bf16.mxu0 0
      %409 = vmatpush1.bf16.msra.mxu0 0
      %410 = vmatprep.subr.bf16.mxu0 0
      %411 = vmatpush1.bf16.msra.mxu0 0
      %412 = vmatprep.subr.bf16.mxu0 0
      %413 = vmatpush1.bf16.msra.mxu0 0
      %414 = vmatprep.subr.bf16.mxu0 0
      %415 = vmatpush1.bf16.msra.mxu0 0
      %416 = vmatprep.subr.bf16.mxu0 0
      %417 = vmatpush1.bf16.msra.mxu0 0
      %418 = vmatprep.mubr.bf16.mxu0 0
      %419 = vmatmul.mubr.bf16.gmra.mrb[0].mxu0 %v317
      %v420 = vpop.f32.mrb[0].mxu0
      %v421 = vadd.f32 0.0, %v420
      %v422 = vpop.f32.mrb[0].mxu0
      %v423 = vpop.f32.mrb[0].mxu0
      %v424 = vadd.f32 0.0, %v423
      %v425 = vpop.f32.mrb[0].mxu0
      %426 = vmatprep.mubr.bf16.mxu0 0
      %427 = vmatmul.mubr.bf16.gmra.mrb[0].mxu0 %v318
      %v428 = vpop.f32.mrb[0].mxu0
      %v429 = vadd.f32 0.0, %v428
      %v430 = vpop.f32.mrb[0].mxu0
      %v431 = vpop.f32.mrb[0].mxu0
      %v432 = vadd.f32 0.0, %v431
      %v433 = vpop.f32.mrb[0].mxu0
      %434 = vmatprep.mubr.bf16.mxu0 0
      %435 = vmatmul.mubr.bf16.gmra.mrb[0].mxu0 %v319
      %v436 = vpop.f32.mrb[0].mxu0
      %v437 = vadd.f32 0.0, %v436
      %v438 = vpop.f32.mrb[0].mxu0
      %v439 = vpop.f32.mrb[0].mxu0
      %v440 = vadd.f32 0.0, %v439
      %v441 = vpop.f32.mrb[0].mxu0
      %442 = vmatprep.mubr.bf16.mxu0 0
      %443 = vmatmul.mubr.bf16.gmra.mrb[0].mxu0 %v320
      %v444 = vpop.f32.mrb[0].mxu0
      %v445 = vadd.f32 0.0, %v444
      %v446 = vpop.f32.mrb[0].mxu0
      %v447 = vpop.f32.mrb[0].mxu0
      %v448 = vadd.f32 0.0, %v447
      %v449 = vpop.f32.mrb[0].mxu0
      %450 = vdwg.mxu0
      %v467 = vunpack.c.l.b16 %v236
      %v468 = vunpack.c.l.b16 %v237
      %v469 = vunpack.c.l.b16 %v238
      %v470 = vunpack.c.l.b16 %v239
      %v471 = vunpack.c.l.b16 %v240
      %v472 = vunpack.c.l.b16 %v241
      %v473 = vunpack.c.l.b16 %v242
      %v474 = vunpack.c.l.b16 %v243
      %v475 = vunpack.c.l.b16 %v244
      %v476 = vunpack.c.l.b16 %v245
      %v477 = vunpack.c.l.b16 %v246
      %v478 = vunpack.c.l.b16 %v247
      %v479 = vunpack.c.l.b16 %v248
      %v480 = vunpack.c.l.b16 %v249
      %v481 = vunpack.c.l.b16 %v250
      %v482 = vunpack.c.l.b16 %v251
      %v483 = vpack.c.b16 %v468, %v467
      %v484 = vpack.c.b16 %v470, %v469
      %v485 = vpack.c.b16 %v472, %v471
      %v486 = vpack.c.b16 %v474, %v473
      %v487 = vpack.c.b16 %v476, %v475
      %v488 = vpack.c.b16 %v478, %v477
      %v489 = vpack.c.b16 %v480, %v479
      %v490 = vpack.c.b16 %v482, %v481
      %499 = vmatprep.subr.bf16.mxu0 0
      %500 = vmatpush1.bf16.msra.mxu0 %v483
      %501 = vmatprep.subr.bf16.mxu0 0
      %502 = vmatpush1.bf16.msra.mxu0 %v484
      %503 = vmatprep.subr.bf16.mxu0 0
      %504 = vmatpush1.bf16.msra.mxu0 %v485
      %505 = vmatprep.subr.bf16.mxu0 0
      %506 = vmatpush1.bf16.msra.mxu0 %v486
      %507 = vmatprep.subr.bf16.mxu0 0
      %508 = vmatpush1.bf16.msra.mxu0 %v487
      %509 = vmatprep.subr.bf16.mxu0 0
      %510 = vmatpush1.bf16.msra.mxu0 %v488
      %511 = vmatprep.subr.bf16.mxu0 0
      %512 = vmatpush1.bf16.msra.mxu0 %v489
      %513 = vmatprep.subr.bf16.mxu0 0
      %514 = vmatpush1.bf16.msra.mxu0 %v490
      %515 = vmatprep.subr.bf16.mxu0 0
      %516 = vmatpush1.bf16.msra.mxu0 0
      %517 = vmatprep.subr.bf16.mxu0 0
      %518 = vmatpush1.bf16.msra.mxu0 0
      %519 = vmatprep.subr.bf16.mxu0 0
      %520 = vmatpush1.bf16.msra.mxu0 0
      %521 = vmatprep.subr.bf16.mxu0 0
      %522 = vmatpush1.bf16.msra.mxu0 0
      %523 = vmatprep.subr.bf16.mxu0 0
      %524 = vmatpush1.bf16.msra.mxu0 0
      %525 = vmatprep.subr.bf16.mxu0 0
      %526 = vmatpush1.bf16.msra.mxu0 0
      %527 = vmatprep.subr.bf16.mxu0 0
      %528 = vmatpush1.bf16.msra.mxu0 0
      %529 = vmatprep.subr.bf16.mxu0 0
      %530 = vmatpush1.bf16.msra.mxu0 0
      %531 = vmatprep.mubr.bf16.mxu0 0
      %532 = vmatmul.mubr.bf16.gmra.mrb[0].mxu0 %v232
      %v533 = vpop.f32.mrb[0].mxu0
      %v534 = vadd.f32 %v421, %v533
      %v535 = vpop.f32.mrb[0].mxu0
      %v536 = vpop.f32.mrb[0].mxu0
      %v537 = vadd.f32 %v424, %v536
      %v538 = vpop.f32.mrb[0].mxu0
      %539 = vmatprep.mubr.bf16.mxu0 0
      %540 = vmatmul.mubr.bf16.gmra.mrb[0].mxu0 %v233
      %v541 = vpop.f32.mrb[0].mxu0
      %v542 = vadd.f32 %v429, %v541
      %v543 = vpop.f32.mrb[0].mxu0
      %v544 = vpop.f32.mrb[0].mxu0
      %v545 = vadd.f32 %v432, %v544
      %v546 = vpop.f32.mrb[0].mxu0
      %547 = vmatprep.mubr.bf16.mxu0 0
      %548 = vmatmul.mubr.bf16.gmra.mrb[0].mxu0 %v234
      %v549 = vpop.f32.mrb[0].mxu0
      %v550 = vadd.f32 %v437, %v549
      %v551 = vpop.f32.mrb[0].mxu0
      %v552 = vpop.f32.mrb[0].mxu0
      %v553 = vadd.f32 %v440, %v552
      %v554 = vpop.f32.mrb[0].mxu0
      %555 = vmatprep.mubr.bf16.mxu0 0
      %556 = vmatmul.mubr.bf16.gmra.mrb[0].mxu0 %v235
      %v557 = vpop.f32.mrb[0].mxu0
      %v558 = vadd.f32 %v445, %v557
      %v559 = vpop.f32.mrb[0].mxu0
      %v560 = vpop.f32.mrb[0].mxu0
      %v561 = vadd.f32 %v448, %v560
      %v562 = vpop.f32.mrb[0].mxu0
      %563 = vdwg.mxu0
      %v564 = vld [vmem:[%s215] sm:$0xe]
      %v565 = vld [vmem:[%s215 + $0x8] sm:$0xe]
      %v566 = vld [vmem:[%s215 + $0x10] sm:$0xe]
      %v567 = vld [vmem:[%s215 + $0x18] sm:$0xe]
      %v568 = vld [vmem:[%s215 + $0x20] sm:$0xe]
      %v569 = vld [vmem:[%s215 + $0x28] sm:$0xe]
      %v570 = vld [vmem:[%s215 + $0x30] sm:$0xe]
      %v571 = vld [vmem:[%s215 + $0x38] sm:$0xe]
      %v572 = vunpack.c.l.bf16 %v564
      %v573 = vunpack.c.l.bf16 %v565
      %v574 = vunpack.c.l.bf16 %v566
      %v575 = vunpack.c.l.bf16 %v567
      %v576 = vunpack.c.l.bf16 %v568
      %v577 = vunpack.c.l.bf16 %v569
      %v578 = vunpack.c.l.bf16 %v570
      %v579 = vunpack.c.l.bf16 %v571
      %vm588 = vcmask 1045504
      %v589 = vrot.slane %v572, 2
      %v590 = vrot.slane %v260, 2
      %v591 = vsel %vm588, %v589, %v590
      %v592 = vrot.slane %v573, 2
      %v593 = vrot.slane %v261, 2
      %v594 = vsel %vm588, %v592, %v593
      %v595 = vrot.slane %v574, 2
      %v596 = vrot.slane %v262, 2
      %v597 = vsel %vm588, %v595, %v596
      %v598 = vrot.slane %v575, 2
      %v599 = vrot.slane %v263, 2
      %v600 = vsel %vm588, %v598, %v599
      %v601 = vrot.slane %v576, 2
      %v602 = vrot.slane %v264, 2
      %v603 = vsel %vm588, %v601, %v602
      %v604 = vrot.slane %v577, 2
      %v605 = vrot.slane %v265, 2
      %v606 = vsel %vm588, %v604, %v605
      %v607 = vrot.slane %v578, 2
      %v608 = vrot.slane %v266, 2
      %v609 = vsel %vm588, %v607, %v608
      %v610 = vrot.slane %v579, 2
      %v611 = vrot.slane %v267, 2
      %v612 = vsel %vm588, %v610, %v611
      %v621 = vpack.c.bf16 %v594, %v591
      %v622 = vpack.c.bf16 %v600, %v597
      %v623 = vpack.c.bf16 %v606, %v603
      %v624 = vpack.c.bf16 %v612, %v609
      %s625 = scalar_lea.vmem %s1, 128
      %v626 = vld [vmem:[%s625] sm:$0xf]
      %v627 = vld [vmem:[%s625 + $0x4] sm:$0xf]
      %v628 = vld [vmem:[%s625 + $0x8] sm:$0xf]
      %v629 = vld [vmem:[%s625 + $0xc] sm:$0xf]
      %v630 = vld [vmem:[%s625 + $0x10] sm:$0xf]
      %v631 = vld [vmem:[%s625 + $0x14] sm:$0xf]
      %v632 = vld [vmem:[%s625 + $0x18] sm:$0xf]
      %v633 = vld [vmem:[%s625 + $0x1c] sm:$0xf]
      %v634 = vld [vmem:[%s625 + $0x20] sm:$0xf]
      %v635 = vld [vmem:[%s625 + $0x24] sm:$0xf]
      %v636 = vld [vmem:[%s625 + $0x28] sm:$0xf]
      %v637 = vld [vmem:[%s625 + $0x2c] sm:$0xf]
      %v638 = vld [vmem:[%s625 + $0x30] sm:$0xf]
      %v639 = vld [vmem:[%s625 + $0x34] sm:$0xf]
      %v640 = vld [vmem:[%s625 + $0x38] sm:$0xf]
      %v641 = vld [vmem:[%s625 + $0x3c] sm:$0xf]
      %v658 = vunpack.c.l.b16 %v626
      %v659 = vunpack.c.l.b16 %v627
      %v660 = vunpack.c.l.b16 %v628
      %v661 = vunpack.c.l.b16 %v629
      %v662 = vunpack.c.l.b16 %v630
      %v663 = vunpack.c.l.b16 %v631
      %v664 = vunpack.c.l.b16 %v632
      %v665 = vunpack.c.l.b16 %v633
      %v666 = vunpack.c.l.b16 %v634
      %v667 = vunpack.c.l.b16 %v635
      %v668 = vunpack.c.l.b16 %v636
      %v669 = vunpack.c.l.b16 %v637
      %v670 = vunpack.c.l.b16 %v638
      %v671 = vunpack.c.l.b16 %v639
      %v672 = vunpack.c.l.b16 %v640
      %v673 = vunpack.c.l.b16 %v641
      %v674 = vpack.c.b16 %v659, %v658
      %v675 = vpack.c.b16 %v661, %v660
      %v676 = vpack.c.b16 %v663, %v662
      %v677 = vpack.c.b16 %v665, %v664
      %v678 = vpack.c.b16 %v667, %v666
      %v679 = vpack.c.b16 %v669, %v668
      %v680 = vpack.c.b16 %v671, %v670
      %v681 = vpack.c.b16 %v673, %v672
      %690 = vmatprep.subr.bf16.mxu0 0
      %691 = vmatpush1.bf16.msra.mxu0 %v674
      %692 = vmatprep.subr.bf16.mxu0 0
      %693 = vmatpush1.bf16.msra.mxu0 %v675
      %694 = vmatprep.subr.bf16.mxu0 0
      %695 = vmatpush1.bf16.msra.mxu0 %v676
      %696 = vmatprep.subr.bf16.mxu0 0
      %697 = vmatpush1.bf16.msra.mxu0 %v677
      %698 = vmatprep.subr.bf16.mxu0 0
      %699 = vmatpush1.bf16.msra.mxu0 %v678
      %700 = vmatprep.subr.bf16.mxu0 0
      %701 = vmatpush1.bf16.msra.mxu0 %v679
      %702 = vmatprep.subr.bf16.mxu0 0
      %703 = vmatpush1.bf16.msra.mxu0 %v680
      %704 = vmatprep.subr.bf16.mxu0 0
      %705 = vmatpush1.bf16.msra.mxu0 %v681
      %706 = vmatprep.subr.bf16.mxu0 0
      %707 = vmatpush1.bf16.msra.mxu0 0
      %708 = vmatprep.subr.bf16.mxu0 0
      %709 = vmatpush1.bf16.msra.mxu0 0
      %710 = vmatprep.subr.bf16.mxu0 0
      %711 = vmatpush1.bf16.msra.mxu0 0
      %712 = vmatprep.subr.bf16.mxu0 0
      %713 = vmatpush1.bf16.msra.mxu0 0
      %714 = vmatprep.subr.bf16.mxu0 0
      %715 = vmatpush1.bf16.msra.mxu0 0
      %716 = vmatprep.subr.bf16.mxu0 0
      %717 = vmatpush1.bf16.msra.mxu0 0
      %718 = vmatprep.subr.bf16.mxu0 0
      %719 = vmatpush1.bf16.msra.mxu0 0
      %720 = vmatprep.subr.bf16.mxu0 0
      %721 = vmatpush1.bf16.msra.mxu0 0
      %722 = vmatprep.mubr.bf16.mxu0 0
      %723 = vmatmul.mubr.bf16.gmra.mrb[0].mxu0 %v621
      %v724 = vpop.f32.mrb[0].mxu0
      %v725 = vadd.f32 0.0, %v724
      %v726 = vpop.f32.mrb[0].mxu0
      %v727 = vpop.f32.mrb[0].mxu0
      %v728 = vadd.f32 0.0, %v727
      %v729 = vpop.f32.mrb[0].mxu0
      %730 = vmatprep.mubr.bf16.mxu0 0
      %731 = vmatmul.mubr.bf16.gmra.mrb[0].mxu0 %v622
      %v732 = vpop.f32.mrb[0].mxu0
      %v733 = vadd.f32 0.0, %v732
      %v734 = vpop.f32.mrb[0].mxu0
      %v735 = vpop.f32.mrb[0].mxu0
      %v736 = vadd.f32 0.0, %v735
      %v737 = vpop.f32.mrb[0].mxu0
      %738 = vmatprep.mubr.bf16.mxu0 0
      %739 = vmatmul.mubr.bf16.gmra.mrb[0].mxu0 %v623
      %v740 = vpop.f32.mrb[0].mxu0
      %v741 = vadd.f32 0.0, %v740
      %v742 = vpop.f32.mrb[0].mxu0
      %v743 = vpop.f32.mrb[0].mxu0
      %v744 = vadd.f32 0.0, %v743
      %v745 = vpop.f32.mrb[0].mxu0
      %746 = vmatprep.mubr.bf16.mxu0 0
      %747 = vmatmul.mubr.bf16.gmra.mrb[0].mxu0 %v624
      %v748 = vpop.f32.mrb[0].mxu0
      %v749 = vadd.f32 0.0, %v748
      %v750 = vpop.f32.mrb[0].mxu0
      %v751 = vpop.f32.mrb[0].mxu0
      %v752 = vadd.f32 0.0, %v751
      %v753 = vpop.f32.mrb[0].mxu0
      %754 = vdwg.mxu0
      %v755 = vadd.f32 %v534, %v725
      %v756 = vadd.f32 %v537, %v728
      %v757 = vadd.f32 %v542, %v733
      %v758 = vadd.f32 %v545, %v736
      %v759 = vadd.f32 %v550, %v741
      %v760 = vadd.f32 %v553, %v744
      %v761 = vadd.f32 %v558, %v749
      %v762 = vadd.f32 %v561, %v752
      %s763 = sadd.s32 %s212, 1
      %s764 = smul.u32 %s763, 2
      %s765 = smul.addr %s764, 4
      %s766 = scalar_lea.vmem %s202, %s765
      %v767 = vld [vmem:[%s766] sm:$0xf]
      %v768 = vld [vmem:[%s766 + $0x8] sm:$0xf]
      %v769 = vld [vmem:[%s766 + $0x10] sm:$0xf]
      %v770 = vld [vmem:[%s766 + $0x18] sm:$0xf]
      %v771 = vld [vmem:[%s766 + $0x20] sm:$0xf]
      %v772 = vld [vmem:[%s766 + $0x28] sm:$0xf]
      %v773 = vld [vmem:[%s766 + $0x30] sm:$0xf]
      %v774 = vld [vmem:[%s766 + $0x38] sm:$0xf]
      %v775 = vunpack.c.l.bf16 %v767
      %v776 = vunpack.c.l.bf16 %v768
      %v777 = vunpack.c.l.bf16 %v769
      %v778 = vunpack.c.l.bf16 %v770
      %v779 = vunpack.c.l.bf16 %v771
      %v780 = vunpack.c.l.bf16 %v772
      %v781 = vunpack.c.l.bf16 %v773
      %v782 = vunpack.c.l.bf16 %v774
      %v783 = vpack.c.bf16 %v776, %v775
      %v784 = vpack.c.bf16 %v778, %v777
      %v785 = vpack.c.bf16 %v780, %v779
      %v786 = vpack.c.bf16 %v782, %v781
      %s787 = scalar_lea.vmem %s1, 192
      %v788 = vld [vmem:[%s787] sm:$0xf]
      %v789 = vld [vmem:[%s787 + $0x4] sm:$0xf]
      %v790 = vld [vmem:[%s787 + $0x8] sm:$0xf]
      %v791 = vld [vmem:[%s787 + $0xc] sm:$0xf]
      %v792 = vld [vmem:[%s787 + $0x10] sm:$0xf]
      %v793 = vld [vmem:[%s787 + $0x14] sm:$0xf]
      %v794 = vld [vmem:[%s787 + $0x18] sm:$0xf]
      %v795 = vld [vmem:[%s787 + $0x1c] sm:$0xf]
      %v796 = vld [vmem:[%s787 + $0x20] sm:$0xf]
      %v797 = vld [vmem:[%s787 + $0x24] sm:$0xf]
      %v798 = vld [vmem:[%s787 + $0x28] sm:$0xf]
      %v799 = vld [vmem:[%s787 + $0x2c] sm:$0xf]
      %v800 = vld [vmem:[%s787 + $0x30] sm:$0xf]
      %v801 = vld [vmem:[%s787 + $0x34] sm:$0xf]
      %v802 = vld [vmem:[%s787 + $0x38] sm:$0xf]
      %v803 = vld [vmem:[%s787 + $0x3c] sm:$0xf]
      %v820 = vunpack.c.l.b16 %v788
      %v821 = vunpack.c.l.b16 %v789
      %v822 = vunpack.c.l.b16 %v790
      %v823 = vunpack.c.l.b16 %v791
      %v824 = vunpack.c.l.b16 %v792
      %v825 = vunpack.c.l.b16 %v793
      %v826 = vunpack.c.l.b16 %v794
      %v827 = vunpack.c.l.b16 %v795
      %v828 = vunpack.c.l.b16 %v796
      %v829 = vunpack.c.l.b16 %v797
      %v830 = vunpack.c.l.b16 %v798
      %v831 = vunpack.c.l.b16 %v799
      %v832 = vunpack.c.l.b16 %v800
      %v833 = vunpack.c.l.b16 %v801
      %v834 = vunpack.c.l.b16 %v802
      %v835 = vunpack.c.l.b16 %v803
      %v836 = vpack.c.b16 %v821, %v820
      %v837 = vpack.c.b16 %v823, %v822
      %v838 = vpack.c.b16 %v825, %v824
      %v839 = vpack.c.b16 %v827, %v826
      %v840 = vpack.c.b16 %v829, %v828
      %v841 = vpack.c.b16 %v831, %v830
      %v842 = vpack.c.b16 %v833, %v832
      %v843 = vpack.c.b16 %v835, %v834
      %852 = vmatprep.subr.bf16.mxu0 0
      %853 = vmatpush1.bf16.msra.mxu0 %v836
      %854 = vmatprep.subr.bf16.mxu0 0
      %855 = vmatpush1.bf16.msra.mxu0 %v837
      %856 = vmatprep.subr.bf16.mxu0 0
      %857 = vmatpush1.bf16.msra.mxu0 %v838
      %858 = vmatprep.subr.bf16.mxu0 0
      %859 = vmatpush1.bf16.msra.mxu0 %v839
      %860 = vmatprep.subr.bf16.mxu0 0
      %861 = vmatpush1.bf16.msra.mxu0 %v840
      %862 = vmatprep.subr.bf16.mxu0 0
      %863 = vmatpush1.bf16.msra.mxu0 %v841
      %864 = vmatprep.subr.bf16.mxu0 0
      %865 = vmatpush1.bf16.msra.mxu0 %v842
      %866 = vmatprep.subr.bf16.mxu0 0
      %867 = vmatpush1.bf16.msra.mxu0 %v843
      %868 = vmatprep.subr.bf16.mxu0 0
      %869 = vmatpush1.bf16.msra.mxu0 0
      %870 = vmatprep.subr.bf16.mxu0 0
      %871 = vmatpush1.bf16.msra.mxu0 0
      %872 = vmatprep.subr.bf16.mxu0 0
      %873 = vmatpush1.bf16.msra.mxu0 0
      %874 = vmatprep.subr.bf16.mxu0 0
      %875 = vmatpush1.bf16.msra.mxu0 0
      %876 = vmatprep.subr.bf16.mxu0 0
      %877 = vmatpush1.bf16.msra.mxu0 0
      %878 = vmatprep.subr.bf16.mxu0 0
      %879 = vmatpush1.bf16.msra.mxu0 0
      %880 = vmatprep.subr.bf16.mxu0 0
      %881 = vmatpush1.bf16.msra.mxu0 0
      %882 = vmatprep.subr.bf16.mxu0 0
      %883 = vmatpush1.bf16.msra.mxu0 0
      %884 = vmatprep.mubr.bf16.mxu0 0
      %885 = vmatmul.mubr.bf16.gmra.mrb[0].mxu0 %v783
      %v886 = vpop.f32.mrb[0].mxu0
      %v887 = vadd.f32 0.0, %v886
      %v888 = vpop.f32.mrb[0].mxu0
      %v889 = vpop.f32.mrb[0].mxu0
      %v890 = vadd.f32 0.0, %v889
      %v891 = vpop.f32.mrb[0].mxu0
      %892 = vmatprep.mubr.bf16.mxu0 0
      %893 = vmatmul.mubr.bf16.gmra.mrb[0].mxu0 %v784
      %v894 = vpop.f32.mrb[0].mxu0
      %v895 = vadd.f32 0.0, %v894
      %v896 = vpop.f32.mrb[0].mxu0
      %v897 = vpop.f32.mrb[0].mxu0
      %v898 = vadd.f32 0.0, %v897
      %v899 = vpop.f32.mrb[0].mxu0
      %900 = vmatprep.mubr.bf16.mxu0 0
      %901 = vmatmul.mubr.bf16.gmra.mrb[0].mxu0 %v785
      %v902 = vpop.f32.mrb[0].mxu0
      %v903 = vadd.f32 0.0, %v902
      %v904 = vpop.f32.mrb[0].mxu0
      %v905 = vpop.f32.mrb[0].mxu0
      %v906 = vadd.f32 0.0, %v905
      %v907 = vpop.f32.mrb[0].mxu0
      %908 = vmatprep.mubr.bf16.mxu0 0
      %909 = vmatmul.mubr.bf16.gmra.mrb[0].mxu0 %v786
      %v910 = vpop.f32.mrb[0].mxu0
      %v911 = vadd.f32 0.0, %v910
      %v912 = vpop.f32.mrb[0].mxu0
      %v913 = vpop.f32.mrb[0].mxu0
      %v914 = vadd.f32 0.0, %v913
      %v915 = vpop.f32.mrb[0].mxu0
      %916 = vdwg.mxu0
      %v917 = vadd.f32 %v755, %v887
      %v918 = vadd.f32 %v756, %v890
      %v919 = vadd.f32 %v757, %v895
      %v920 = vadd.f32 %v758, %v898
      %v921 = vadd.f32 %v759, %v903
      %v922 = vadd.f32 %v760, %v906
      %v923 = vadd.f32 %v761, %v911
      %v924 = vadd.f32 %v762, %v914
      %v925 = vld [vmem:[%s766] sm:$0xf]
      %v926 = vld [vmem:[%s766 + $0x4] sm:$0x1]
      %v927 = vld [vmem:[%s766 + $0x8] sm:$0xf]
      %v928 = vld [vmem:[%s766 + $0xc] sm:$0x1]
      %v929 = vld [vmem:[%s766 + $0x10] sm:$0xf]
      %v930 = vld [vmem:[%s766 + $0x14] sm:$0x1]
      %v931 = vld [vmem:[%s766 + $0x18] sm:$0xf]
      %v932 = vld [vmem:[%s766 + $0x1c] sm:$0x1]
      %v933 = vld [vmem:[%s766 + $0x20] sm:$0xf]
      %v934 = vld [vmem:[%s766 + $0x24] sm:$0x1]
      %v935 = vld [vmem:[%s766 + $0x28] sm:$0xf]
      %v936 = vld [vmem:[%s766 + $0x2c] sm:$0x1]
      %v937 = vld [vmem:[%s766 + $0x30] sm:$0xf]
      %v938 = vld [vmem:[%s766 + $0x34] sm:$0x1]
      %v939 = vld [vmem:[%s766 + $0x38] sm:$0xf]
      %v940 = vld [vmem:[%s766 + $0x3c] sm:$0x1]
      %v941 = vunpack.c.l.bf16 %v925
      %v942 = vunpack.c.l.bf16 %v926
      %v943 = vunpack.c.l.bf16 %v927
      %v944 = vunpack.c.l.bf16 %v928
      %v945 = vunpack.c.l.bf16 %v929
      %v946 = vunpack.c.l.bf16 %v930
      %v947 = vunpack.c.l.bf16 %v931
      %v948 = vunpack.c.l.bf16 %v932
      %v949 = vunpack.c.l.bf16 %v933
      %v950 = vunpack.c.l.bf16 %v934
      %v951 = vunpack.c.l.bf16 %v935
      %v952 = vunpack.c.l.bf16 %v936
      %v953 = vunpack.c.l.bf16 %v937
      %v954 = vunpack.c.l.bf16 %v938
      %v955 = vunpack.c.l.bf16 %v939
      %v956 = vunpack.c.l.bf16 %v940
      %v973 = vrot.slane %v941, 1
      %v974 = vrot.slane %v942, 1
      %v975 = vsel %vm284, %v973, %v974
      %v976 = vrot.slane %v943, 1
      %v977 = vrot.slane %v944, 1
      %v978 = vsel %vm284, %v976, %v977
      %v979 = vrot.slane %v945, 1
      %v980 = vrot.slane %v946, 1
      %v981 = vsel %vm284, %v979, %v980
      %v982 = vrot.slane %v947, 1
      %v983 = vrot.slane %v948, 1
      %v984 = vsel %vm284, %v982, %v983
      %v985 = vrot.slane %v949, 1
      %v986 = vrot.slane %v950, 1
      %v987 = vsel %vm284, %v985, %v986
      %v988 = vrot.slane %v951, 1
      %v989 = vrot.slane %v952, 1
      %v990 = vsel %vm284, %v988, %v989
      %v991 = vrot.slane %v953, 1
      %v992 = vrot.slane %v954, 1
      %v993 = vsel %vm284, %v991, %v992
      %v994 = vrot.slane %v955, 1
      %v995 = vrot.slane %v956, 1
      %v996 = vsel %vm284, %v994, %v995
      %v1005 = vpack.c.bf16 %v978, %v975
      %v1006 = vpack.c.bf16 %v984, %v981
      %v1007 = vpack.c.bf16 %v990, %v987
      %v1008 = vpack.c.bf16 %v996, %v993
      %s1009 = scalar_lea.vmem %s1, 256
      %v1010 = vld [vmem:[%s1009] sm:$0xf]
      %v1011 = vld [vmem:[%s1009 + $0x4] sm:$0xf]
      %v1012 = vld [vmem:[%s1009 + $0x8] sm:$0xf]
      %v1013 = vld [vmem:[%s1009 + $0xc] sm:$0xf]
      %v1014 = vld [vmem:[%s1009 + $0x10] sm:$0xf]
      %v1015 = vld [vmem:[%s1009 + $0x14] sm:$0xf]
      %v1016 = vld [vmem:[%s1009 + $0x18] sm:$0xf]
      %v1017 = vld [vmem:[%s1009 + $0x1c] sm:$0xf]
      %v1018 = vld [vmem:[%s1009 + $0x20] sm:$0xf]
      %v1019 = vld [vmem:[%s1009 + $0x24] sm:$0xf]
      %v1020 = vld [vmem:[%s1009 + $0x28] sm:$0xf]
      %v1021 = vld [vmem:[%s1009 + $0x2c] sm:$0xf]
      %v1022 = vld [vmem:[%s1009 + $0x30] sm:$0xf]
      %v1023 = vld [vmem:[%s1009 + $0x34] sm:$0xf]
      %v1024 = vld [vmem:[%s1009 + $0x38] sm:$0xf]
      %v1025 = vld [vmem:[%s1009 + $0x3c] sm:$0xf]
      %v1042 = vunpack.c.l.b16 %v1010
      %v1043 = vunpack.c.l.b16 %v1011
      %v1044 = vunpack.c.l.b16 %v1012
      %v1045 = vunpack.c.l.b16 %v1013
      %v1046 = vunpack.c.l.b16 %v1014
      %v1047 = vunpack.c.l.b16 %v1015
      %v1048 = vunpack.c.l.b16 %v1016
      %v1049 = vunpack.c.l.b16 %v1017
      %v1050 = vunpack.c.l.b16 %v1018
      %v1051 = vunpack.c.l.b16 %v1019
      %v1052 = vunpack.c.l.b16 %v1020
      %v1053 = vunpack.c.l.b16 %v1021
      %v1054 = vunpack.c.l.b16 %v1022
      %v1055 = vunpack.c.l.b16 %v1023
      %v1056 = vunpack.c.l.b16 %v1024
      %v1057 = vunpack.c.l.b16 %v1025
      %v1058 = vpack.c.b16 %v1043, %v1042
      %v1059 = vpack.c.b16 %v1045, %v1044
      %v1060 = vpack.c.b16 %v1047, %v1046
      %v1061 = vpack.c.b16 %v1049, %v1048
      %v1062 = vpack.c.b16 %v1051, %v1050
      %v1063 = vpack.c.b16 %v1053, %v1052
      %v1064 = vpack.c.b16 %v1055, %v1054
      %v1065 = vpack.c.b16 %v1057, %v1056
      %1074 = vmatprep.subr.bf16.mxu0 0
      %1075 = vmatpush1.bf16.msra.mxu0 %v1058
      %1076 = vmatprep.subr.bf16.mxu0 0
      %1077 = vmatpush1.bf16.msra.mxu0 %v1059
      %1078 = vmatprep.subr.bf16.mxu0 0
      %1079 = vmatpush1.bf16.msra.mxu0 %v1060
      %1080 = vmatprep.subr.bf16.mxu0 0
      %1081 = vmatpush1.bf16.msra.mxu0 %v1061
      %1082 = vmatprep.subr.bf16.mxu0 0
      %1083 = vmatpush1.bf16.msra.mxu0 %v1062
      %1084 = vmatprep.subr.bf16.mxu0 0
      %1085 = vmatpush1.bf16.msra.mxu0 %v1063
      %1086 = vmatprep.subr.bf16.mxu0 0
      %1087 = vmatpush1.bf16.msra.mxu0 %v1064
      %1088 = vmatprep.subr.bf16.mxu0 0
      %1089 = vmatpush1.bf16.msra.mxu0 %v1065
      %1090 = vmatprep.subr.bf16.mxu0 0
      %1091 = vmatpush1.bf16.msra.mxu0 0
      %1092 = vmatprep.subr.bf16.mxu0 0
      %1093 = vmatpush1.bf16.msra.mxu0 0
      %1094 = vmatprep.subr.bf16.mxu0 0
      %1095 = vmatpush1.bf16.msra.mxu0 0
      %1096 = vmatprep.subr.bf16.mxu0 0
      %1097 = vmatpush1.bf16.msra.mxu0 0
      %1098 = vmatprep.subr.bf16.mxu0 0
      %1099 = vmatpush1.bf16.msra.mxu0 0
      %1100 = vmatprep.subr.bf16.mxu0 0
      %1101 = vmatpush1.bf16.msra.mxu0 0
      %1102 = vmatprep.subr.bf16.mxu0 0
      %1103 = vmatpush1.bf16.msra.mxu0 0
      %1104 = vmatprep.subr.bf16.mxu0 0
      %1105 = vmatpush1.bf16.msra.mxu0 0
      %1106 = vmatprep.mubr.bf16.mxu0 0
      %1107 = vmatmul.mubr.bf16.gmra.mrb[0].mxu0 %v1005
      %v1108 = vpop.f32.mrb[0].mxu0
      %v1109 = vadd.f32 0.0, %v1108
      %v1110 = vpop.f32.mrb[0].mxu0
      %v1111 = vpop.f32.mrb[0].mxu0
      %v1112 = vadd.f32 0.0, %v1111
      %v1113 = vpop.f32.mrb[0].mxu0
      %1114 = vmatprep.mubr.bf16.mxu0 0
      %1115 = vmatmul.mubr.bf16.gmra.mrb[0].mxu0 %v1006
      %v1116 = vpop.f32.mrb[0].mxu0
      %v1117 = vadd.f32 0.0, %v1116
      %v1118 = vpop.f32.mrb[0].mxu0
      %v1119 = vpop.f32.mrb[0].mxu0
      %v1120 = vadd.f32 0.0, %v1119
      %v1121 = vpop.f32.mrb[0].mxu0
      %1122 = vmatprep.mubr.bf16.mxu0 0
      %1123 = vmatmul.mubr.bf16.gmra.mrb[0].mxu0 %v1007
      %v1124 = vpop.f32.mrb[0].mxu0
      %v1125 = vadd.f32 0.0, %v1124
      %v1126 = vpop.f32.mrb[0].mxu0
      %v1127 = vpop.f32.mrb[0].mxu0
      %v1128 = vadd.f32 0.0, %v1127
      %v1129 = vpop.f32.mrb[0].mxu0
      %1130 = vmatprep.mubr.bf16.mxu0 0
      %1131 = vmatmul.mubr.bf16.gmra.mrb[0].mxu0 %v1008
      %v1132 = vpop.f32.mrb[0].mxu0
      %v1133 = vadd.f32 0.0, %v1132
      %v1134 = vpop.f32.mrb[0].mxu0
      %v1135 = vpop.f32.mrb[0].mxu0
      %v1136 = vadd.f32 0.0, %v1135
      %v1137 = vpop.f32.mrb[0].mxu0
      %1138 = vdwg.mxu0
      %v1139 = vadd.f32 %v917, %v1109
      %v1140 = vadd.f32 %v918, %v1112
      %v1141 = vadd.f32 %v919, %v1117
      %v1142 = vadd.f32 %v920, %v1120
      %v1143 = vadd.f32 %v921, %v1125
      %v1144 = vadd.f32 %v922, %v1128
      %v1145 = vadd.f32 %v923, %v1133
      %v1146 = vadd.f32 %v924, %v1136
      %v1147 = vld [vmem:[%s766] sm:$0xe]
      %v1148 = vld [vmem:[%s766 + $0x8] sm:$0xe]
      %v1149 = vld [vmem:[%s766 + $0x10] sm:$0xe]
      %v1150 = vld [vmem:[%s766 + $0x18] sm:$0xe]
      %v1151 = vld [vmem:[%s766 + $0x20] sm:$0xe]
      %v1152 = vld [vmem:[%s766 + $0x28] sm:$0xe]
      %v1153 = vld [vmem:[%s766 + $0x30] sm:$0xe]
      %v1154 = vld [vmem:[%s766 + $0x38] sm:$0xe]
      %v1155 = vunpack.c.l.bf16 %v1147
      %v1156 = vunpack.c.l.bf16 %v1148
      %v1157 = vunpack.c.l.bf16 %v1149
      %v1158 = vunpack.c.l.bf16 %v1150
      %v1159 = vunpack.c.l.bf16 %v1151
      %v1160 = vunpack.c.l.bf16 %v1152
      %v1161 = vunpack.c.l.bf16 %v1153
      %v1162 = vunpack.c.l.bf16 %v1154
      %v1171 = vrot.slane %v1155, 2
      %v1172 = vrot.slane %v942, 2
      %v1173 = vsel %vm588, %v1171, %v1172
      %v1174 = vrot.slane %v1156, 2
      %v1175 = vrot.slane %v944, 2
      %v1176 = vsel %vm588, %v1174, %v1175
      %v1177 = vrot.slane %v1157, 2
      %v1178 = vrot.slane %v946, 2
      %v1179 = vsel %vm588, %v1177, %v1178
      %v1180 = vrot.slane %v1158, 2
      %v1181 = vrot.slane %v948, 2
      %v1182 = vsel %vm588, %v1180, %v1181
      %v1183 = vrot.slane %v1159, 2
      %v1184 = vrot.slane %v950, 2
      %v1185 = vsel %vm588, %v1183, %v1184
      %v1186 = vrot.slane %v1160, 2
      %v1187 = vrot.slane %v952, 2
      %v1188 = vsel %vm588, %v1186, %v1187
      %v1189 = vrot.slane %v1161, 2
      %v1190 = vrot.slane %v954, 2
      %v1191 = vsel %vm588, %v1189, %v1190
      %v1192 = vrot.slane %v1162, 2
      %v1193 = vrot.slane %v956, 2
      %v1194 = vsel %vm588, %v1192, %v1193
      %v1203 = vpack.c.bf16 %v1176, %v1173
      %v1204 = vpack.c.bf16 %v1182, %v1179
      %v1205 = vpack.c.bf16 %v1188, %v1185
      %v1206 = vpack.c.bf16 %v1194, %v1191
      %s1207 = scalar_lea.vmem %s1, 320
      %v1208 = vld [vmem:[%s1207] sm:$0xf]
      %v1209 = vld [vmem:[%s1207 + $0x4] sm:$0xf]
      %v1210 = vld [vmem:[%s1207 + $0x8] sm:$0xf]
      %v1211 = vld [vmem:[%s1207 + $0xc] sm:$0xf]
      %v1212 = vld [vmem:[%s1207 + $0x10] sm:$0xf]
      %v1213 = vld [vmem:[%s1207 + $0x14] sm:$0xf]
      %v1214 = vld [vmem:[%s1207 + $0x18] sm:$0xf]
      %v1215 = vld [vmem:[%s1207 + $0x1c] sm:$0xf]
      %v1216 = vld [vmem:[%s1207 + $0x20] sm:$0xf]
      %v1217 = vld [vmem:[%s1207 + $0x24] sm:$0xf]
      %v1218 = vld [vmem:[%s1207 + $0x28] sm:$0xf]
      %v1219 = vld [vmem:[%s1207 + $0x2c] sm:$0xf]
      %v1220 = vld [vmem:[%s1207 + $0x30] sm:$0xf]
      %v1221 = vld [vmem:[%s1207 + $0x34] sm:$0xf]
      %v1222 = vld [vmem:[%s1207 + $0x38] sm:$0xf]
      %v1223 = vld [vmem:[%s1207 + $0x3c] sm:$0xf]
      %v1240 = vunpack.c.l.b16 %v1208
      %v1241 = vunpack.c.l.b16 %v1209
      %v1242 = vunpack.c.l.b16 %v1210
      %v1243 = vunpack.c.l.b16 %v1211
      %v1244 = vunpack.c.l.b16 %v1212
      %v1245 = vunpack.c.l.b16 %v1213
      %v1246 = vunpack.c.l.b16 %v1214
      %v1247 = vunpack.c.l.b16 %v1215
      %v1248 = vunpack.c.l.b16 %v1216
      %v1249 = vunpack.c.l.b16 %v1217
      %v1250 = vunpack.c.l.b16 %v1218
      %v1251 = vunpack.c.l.b16 %v1219
      %v1252 = vunpack.c.l.b16 %v1220
      %v1253 = vunpack.c.l.b16 %v1221
      %v1254 = vunpack.c.l.b16 %v1222
      %v1255 = vunpack.c.l.b16 %v1223
      %v1256 = vpack.c.b16 %v1241, %v1240
      %v1257 = vpack.c.b16 %v1243, %v1242
      %v1258 = vpack.c.b16 %v1245, %v1244
      %v1259 = vpack.c.b16 %v1247, %v1246
      %v1260 = vpack.c.b16 %v1249, %v1248
      %v1261 = vpack.c.b16 %v1251, %v1250
      %v1262 = vpack.c.b16 %v1253, %v1252
      %v1263 = vpack.c.b16 %v1255, %v1254
      %1272 = vmatprep.subr.bf16.mxu0 0
      %1273 = vmatpush1.bf16.msra.mxu0 %v1256
      %1274 = vmatprep.subr.bf16.mxu0 0
      %1275 = vmatpush1.bf16.msra.mxu0 %v1257
      %1276 = vmatprep.subr.bf16.mxu0 0
      %1277 = vmatpush1.bf16.msra.mxu0 %v1258
      %1278 = vmatprep.subr.bf16.mxu0 0
      %1279 = vmatpush1.bf16.msra.mxu0 %v1259
      %1280 = vmatprep.subr.bf16.mxu0 0
      %1281 = vmatpush1.bf16.msra.mxu0 %v1260
      %1282 = vmatprep.subr.bf16.mxu0 0
      %1283 = vmatpush1.bf16.msra.mxu0 %v1261
      %1284 = vmatprep.subr.bf16.mxu0 0
      %1285 = vmatpush1.bf16.msra.mxu0 %v1262
      %1286 = vmatprep.subr.bf16.mxu0 0
      %1287 = vmatpush1.bf16.msra.mxu0 %v1263
      %1288 = vmatprep.subr.bf16.mxu0 0
      %1289 = vmatpush1.bf16.msra.mxu0 0
      %1290 = vmatprep.subr.bf16.mxu0 0
      %1291 = vmatpush1.bf16.msra.mxu0 0
      %1292 = vmatprep.subr.bf16.mxu0 0
      %1293 = vmatpush1.bf16.msra.mxu0 0
      %1294 = vmatprep.subr.bf16.mxu0 0
      %1295 = vmatpush1.bf16.msra.mxu0 0
      %1296 = vmatprep.subr.bf16.mxu0 0
      %1297 = vmatpush1.bf16.msra.mxu0 0
      %1298 = vmatprep.subr.bf16.mxu0 0
      %1299 = vmatpush1.bf16.msra.mxu0 0
      %1300 = vmatprep.subr.bf16.mxu0 0
      %1301 = vmatpush1.bf16.msra.mxu0 0
      %1302 = vmatprep.subr.bf16.mxu0 0
      %1303 = vmatpush1.bf16.msra.mxu0 0
      %1304 = vmatprep.mubr.bf16.mxu0 0
      %1305 = vmatmul.mubr.bf16.gmra.mrb[0].mxu0 %v1203
      %v1306 = vpop.f32.mrb[0].mxu0
      %v1307 = vadd.f32 0.0, %v1306
      %v1308 = vpop.f32.mrb[0].mxu0
      %v1309 = vpop.f32.mrb[0].mxu0
      %v1310 = vadd.f32 0.0, %v1309
      %v1311 = vpop.f32.mrb[0].mxu0
      %1312 = vmatprep.mubr.bf16.mxu0 0
      %1313 = vmatmul.mubr.bf16.gmra.mrb[0].mxu0 %v1204
      %v1314 = vpop.f32.mrb[0].mxu0
      %v1315 = vadd.f32 0.0, %v1314
      %v1316 = vpop.f32.mrb[0].mxu0
      %v1317 = vpop.f32.mrb[0].mxu0
      %v1318 = vadd.f32 0.0, %v1317
      %v1319 = vpop.f32.mrb[0].mxu0
      %1320 = vmatprep.mubr.bf16.mxu0 0
      %1321 = vmatmul.mubr.bf16.gmra.mrb[0].mxu0 %v1205
      %v1322 = vpop.f32.mrb[0].mxu0
      %v1323 = vadd.f32 0.0, %v1322
      %v1324 = vpop.f32.mrb[0].mxu0
      %v1325 = vpop.f32.mrb[0].mxu0
      %v1326 = vadd.f32 0.0, %v1325
      %v1327 = vpop.f32.mrb[0].mxu0
      %1328 = vmatprep.mubr.bf16.mxu0 0
      %1329 = vmatmul.mubr.bf16.gmra.mrb[0].mxu0 %v1206
      %v1330 = vpop.f32.mrb[0].mxu0
      %v1331 = vadd.f32 0.0, %v1330
      %v1332 = vpop.f32.mrb[0].mxu0
      %v1333 = vpop.f32.mrb[0].mxu0
      %v1334 = vadd.f32 0.0, %v1333
      %v1335 = vpop.f32.mrb[0].mxu0
      %1336 = vdwg.mxu0
      %v1337 = vadd.f32 %v1139, %v1307
      %v1338 = vadd.f32 %v1140, %v1310
      %v1339 = vadd.f32 %v1141, %v1315
      %v1340 = vadd.f32 %v1142, %v1318
      %v1341 = vadd.f32 %v1143, %v1323
      %v1342 = vadd.f32 %v1144, %v1326
      %v1343 = vadd.f32 %v1145, %v1331
      %v1344 = vadd.f32 %v1146, %v1334
      %s1345 = sadd.s32 %s212, 2
      %s1346 = smul.u32 %s1345, 2
      %s1347 = smul.addr %s1346, 4
      %s1348 = scalar_lea.vmem %s202, %s1347
      %v1349 = vld [vmem:[%s1348] sm:$0xf]
      %v1350 = vld [vmem:[%s1348 + $0x8] sm:$0xf]
      %v1351 = vld [vmem:[%s1348 + $0x10] sm:$0xf]
      %v1352 = vld [vmem:[%s1348 + $0x18] sm:$0xf]
      %v1353 = vld [vmem:[%s1348 + $0x20] sm:$0xf]
      %v1354 = vld [vmem:[%s1348 + $0x28] sm:$0xf]
      %v1355 = vld [vmem:[%s1348 + $0x30] sm:$0xf]
      %v1356 = vld [vmem:[%s1348 + $0x38] sm:$0xf]
      %v1357 = vunpack.c.l.bf16 %v1349
      %v1358 = vunpack.c.l.bf16 %v1350
      %v1359 = vunpack.c.l.bf16 %v1351
      %v1360 = vunpack.c.l.bf16 %v1352
      %v1361 = vunpack.c.l.bf16 %v1353
      %v1362 = vunpack.c.l.bf16 %v1354
      %v1363 = vunpack.c.l.bf16 %v1355
      %v1364 = vunpack.c.l.bf16 %v1356
      %v1365 = vpack.c.bf16 %v1358, %v1357
      %v1366 = vpack.c.bf16 %v1360, %v1359
      %v1367 = vpack.c.bf16 %v1362, %v1361
      %v1368 = vpack.c.bf16 %v1364, %v1363
      %s1369 = scalar_lea.vmem %s1, 384
      %v1370 = vld [vmem:[%s1369] sm:$0xf]
      %v1371 = vld [vmem:[%s1369 + $0x4] sm:$0xf]
      %v1372 = vld [vmem:[%s1369 + $0x8] sm:$0xf]
      %v1373 = vld [vmem:[%s1369 + $0xc] sm:$0xf]
      %v1374 = vld [vmem:[%s1369 + $0x10] sm:$0xf]
      %v1375 = vld [vmem:[%s1369 + $0x14] sm:$0xf]
      %v1376 = vld [vmem:[%s1369 + $0x18] sm:$0xf]
      %v1377 = vld [vmem:[%s1369 + $0x1c] sm:$0xf]
      %v1378 = vld [vmem:[%s1369 + $0x20] sm:$0xf]
      %v1379 = vld [vmem:[%s1369 + $0x24] sm:$0xf]
      %v1380 = vld [vmem:[%s1369 + $0x28] sm:$0xf]
      %v1381 = vld [vmem:[%s1369 + $0x2c] sm:$0xf]
      %v1382 = vld [vmem:[%s1369 + $0x30] sm:$0xf]
      %v1383 = vld [vmem:[%s1369 + $0x34] sm:$0xf]
      %v1384 = vld [vmem:[%s1369 + $0x38] sm:$0xf]
      %v1385 = vld [vmem:[%s1369 + $0x3c] sm:$0xf]
      %v1402 = vunpack.c.l.b16 %v1370
      %v1403 = vunpack.c.l.b16 %v1371
      %v1404 = vunpack.c.l.b16 %v1372
      %v1405 = vunpack.c.l.b16 %v1373
      %v1406 = vunpack.c.l.b16 %v1374
      %v1407 = vunpack.c.l.b16 %v1375
      %v1408 = vunpack.c.l.b16 %v1376
      %v1409 = vunpack.c.l.b16 %v1377
      %v1410 = vunpack.c.l.b16 %v1378
      %v1411 = vunpack.c.l.b16 %v1379
      %v1412 = vunpack.c.l.b16 %v1380
      %v1413 = vunpack.c.l.b16 %v1381
      %v1414 = vunpack.c.l.b16 %v1382
      %v1415 = vunpack.c.l.b16 %v1383
      %v1416 = vunpack.c.l.b16 %v1384
      %v1417 = vunpack.c.l.b16 %v1385
      %v1418 = vpack.c.b16 %v1403, %v1402
      %v1419 = vpack.c.b16 %v1405, %v1404
      %v1420 = vpack.c.b16 %v1407, %v1406
      %v1421 = vpack.c.b16 %v1409, %v1408
      %v1422 = vpack.c.b16 %v1411, %v1410
      %v1423 = vpack.c.b16 %v1413, %v1412
      %v1424 = vpack.c.b16 %v1415, %v1414
      %v1425 = vpack.c.b16 %v1417, %v1416
      %1434 = vmatprep.subr.bf16.mxu0 0
      %1435 = vmatpush1.bf16.msra.mxu0 %v1418
      %1436 = vmatprep.subr.bf16.mxu0 0
      %1437 = vmatpush1.bf16.msra.mxu0 %v1419
      %1438 = vmatprep.subr.bf16.mxu0 0
      %1439 = vmatpush1.bf16.msra.mxu0 %v1420
      %1440 = vmatprep.subr.bf16.mxu0 0
      %1441 = vmatpush1.bf16.msra.mxu0 %v1421
      %1442 = vmatprep.subr.bf16.mxu0 0
      %1443 = vmatpush1.bf16.msra.mxu0 %v1422
      %1444 = vmatprep.subr.bf16.mxu0 0
      %1445 = vmatpush1.bf16.msra.mxu0 %v1423
      %1446 = vmatprep.subr.bf16.mxu0 0
      %1447 = vmatpush1.bf16.msra.mxu0 %v1424
      %1448 = vmatprep.subr.bf16.mxu0 0
      %1449 = vmatpush1.bf16.msra.mxu0 %v1425
      %1450 = vmatprep.subr.bf16.mxu0 0
      %1451 = vmatpush1.bf16.msra.mxu0 0
      %1452 = vmatprep.subr.bf16.mxu0 0
      %1453 = vmatpush1.bf16.msra.mxu0 0
      %1454 = vmatprep.subr.bf16.mxu0 0
      %1455 = vmatpush1.bf16.msra.mxu0 0
      %1456 = vmatprep.subr.bf16.mxu0 0
      %1457 = vmatpush1.bf16.msra.mxu0 0
      %1458 = vmatprep.subr.bf16.mxu0 0
      %1459 = vmatpush1.bf16.msra.mxu0 0
      %1460 = vmatprep.subr.bf16.mxu0 0
      %1461 = vmatpush1.bf16.msra.mxu0 0
      %1462 = vmatprep.subr.bf16.mxu0 0
      %1463 = vmatpush1.bf16.msra.mxu0 0
      %1464 = vmatprep.subr.bf16.mxu0 0
      %1465 = vmatpush1.bf16.msra.mxu0 0
      %1466 = vmatprep.mubr.bf16.mxu0 0
      %1467 = vmatmul.mubr.bf16.gmra.mrb[0].mxu0 %v1365
      %v1468 = vpop.f32.mrb[0].mxu0
      %v1469 = vadd.f32 0.0, %v1468
      %v1470 = vpop.f32.mrb[0].mxu0
      %v1471 = vpop.f32.mrb[0].mxu0
      %v1472 = vadd.f32 0.0, %v1471
      %v1473 = vpop.f32.mrb[0].mxu0
      %1474 = vmatprep.mubr.bf16.mxu0 0
      %1475 = vmatmul.mubr.bf16.gmra.mrb[0].mxu0 %v1366
      %v1476 = vpop.f32.mrb[0].mxu0
      %v1477 = vadd.f32 0.0, %v1476
      %v1478 = vpop.f32.mrb[0].mxu0
      %v1479 = vpop.f32.mrb[0].mxu0
      %v1480 = vadd.f32 0.0, %v1479
      %v1481 = vpop.f32.mrb[0].mxu0
      %1482 = vmatprep.mubr.bf16.mxu0 0
      %1483 = vmatmul.mubr.bf16.gmra.mrb[0].mxu0 %v1367
      %v1484 = vpop.f32.mrb[0].mxu0
      %v1485 = vadd.f32 0.0, %v1484
      %v1486 = vpop.f32.mrb[0].mxu0
      %v1487 = vpop.f32.mrb[0].mxu0
      %v1488 = vadd.f32 0.0, %v1487
      %v1489 = vpop.f32.mrb[0].mxu0
      %1490 = vmatprep.mubr.bf16.mxu0 0
      %1491 = vmatmul.mubr.bf16.gmra.mrb[0].mxu0 %v1368
      %v1492 = vpop.f32.mrb[0].mxu0
      %v1493 = vadd.f32 0.0, %v1492
      %v1494 = vpop.f32.mrb[0].mxu0
      %v1495 = vpop.f32.mrb[0].mxu0
      %v1496 = vadd.f32 0.0, %v1495
      %v1497 = vpop.f32.mrb[0].mxu0
      %1498 = vdwg.mxu0
      %v1499 = vadd.f32 %v1337, %v1469
      %v1500 = vadd.f32 %v1338, %v1472
      %v1501 = vadd.f32 %v1339, %v1477
      %v1502 = vadd.f32 %v1340, %v1480
      %v1503 = vadd.f32 %v1341, %v1485
      %v1504 = vadd.f32 %v1342, %v1488
      %v1505 = vadd.f32 %v1343, %v1493
      %v1506 = vadd.f32 %v1344, %v1496
      %v1507 = vld [vmem:[%s1348] sm:$0xf]
      %v1508 = vld [vmem:[%s1348 + $0x4] sm:$0x1]
      %v1509 = vld [vmem:[%s1348 + $0x8] sm:$0xf]
      %v1510 = vld [vmem:[%s1348 + $0xc] sm:$0x1]
      %v1511 = vld [vmem:[%s1348 + $0x10] sm:$0xf]
      %v1512 = vld [vmem:[%s1348 + $0x14] sm:$0x1]
      %v1513 = vld [vmem:[%s1348 + $0x18] sm:$0xf]
      %v1514 = vld [vmem:[%s1348 + $0x1c] sm:$0x1]
      %v1515 = vld [vmem:[%s1348 + $0x20] sm:$0xf]
      %v1516 = vld [vmem:[%s1348 + $0x24] sm:$0x1]
      %v1517 = vld [vmem:[%s1348 + $0x28] sm:$0xf]
      %v1518 = vld [vmem:[%s1348 + $0x2c] sm:$0x1]
      %v1519 = vld [vmem:[%s1348 + $0x30] sm:$0xf]
      %v1520 = vld [vmem:[%s1348 + $0x34] sm:$0x1]
      %v1521 = vld [vmem:[%s1348 + $0x38] sm:$0xf]
      %v1522 = vld [vmem:[%s1348 + $0x3c] sm:$0x1]
      %v1523 = vunpack.c.l.bf16 %v1507
      %v1524 = vunpack.c.l.bf16 %v1508
      %v1525 = vunpack.c.l.bf16 %v1509
      %v1526 = vunpack.c.l.bf16 %v1510
      %v1527 = vunpack.c.l.bf16 %v1511
      %v1528 = vunpack.c.l.bf16 %v1512
      %v1529 = vunpack.c.l.bf16 %v1513
      %v1530 = vunpack.c.l.bf16 %v1514
      %v1531 = vunpack.c.l.bf16 %v1515
      %v1532 = vunpack.c.l.bf16 %v1516
      %v1533 = vunpack.c.l.bf16 %v1517
      %v1534 = vunpack.c.l.bf16 %v1518
      %v1535 = vunpack.c.l.bf16 %v1519
      %v1536 = vunpack.c.l.bf16 %v1520
      %v1537 = vunpack.c.l.bf16 %v1521
      %v1538 = vunpack.c.l.bf16 %v1522
      %v1555 = vrot.slane %v1523, 1
      %v1556 = vrot.slane %v1524, 1
      %v1557 = vsel %vm284, %v1555, %v1556
      %v1558 = vrot.slane %v1525, 1
      %v1559 = vrot.slane %v1526, 1
      %v1560 = vsel %vm284, %v1558, %v1559
      %v1561 = vrot.slane %v1527, 1
      %v1562 = vrot.slane %v1528, 1
      %v1563 = vsel %vm284, %v1561, %v1562
      %v1564 = vrot.slane %v1529, 1
      %v1565 = vrot.slane %v1530, 1
      %v1566 = vsel %vm284, %v1564, %v1565
      %v1567 = vrot.slane %v1531, 1
      %v1568 = vrot.slane %v1532, 1
      %v1569 = vsel %vm284, %v1567, %v1568
      %v1570 = vrot.slane %v1533, 1
      %v1571 = vrot.slane %v1534, 1
      %v1572 = vsel %vm284, %v1570, %v1571
      %v1573 = vrot.slane %v1535, 1
      %v1574 = vrot.slane %v1536, 1
      %v1575 = vsel %vm284, %v1573, %v1574
      %v1576 = vrot.slane %v1537, 1
      %v1577 = vrot.slane %v1538, 1
      %v1578 = vsel %vm284, %v1576, %v1577
      %v1587 = vpack.c.bf16 %v1560, %v1557
      %v1588 = vpack.c.bf16 %v1566, %v1563
      %v1589 = vpack.c.bf16 %v1572, %v1569
      %v1590 = vpack.c.bf16 %v1578, %v1575
      %s1591 = scalar_lea.vmem %s1, 448
      %v1592 = vld [vmem:[%s1591] sm:$0xf]
      %v1593 = vld [vmem:[%s1591 + $0x4] sm:$0xf]
      %v1594 = vld [vmem:[%s1591 + $0x8] sm:$0xf]
      %v1595 = vld [vmem:[%s1591 + $0xc] sm:$0xf]
      %v1596 = vld [vmem:[%s1591 + $0x10] sm:$0xf]
      %v1597 = vld [vmem:[%s1591 + $0x14] sm:$0xf]
      %v1598 = vld [vmem:[%s1591 + $0x18] sm:$0xf]
      %v1599 = vld [vmem:[%s1591 + $0x1c] sm:$0xf]
      %v1600 = vld [vmem:[%s1591 + $0x20] sm:$0xf]
      %v1601 = vld [vmem:[%s1591 + $0x24] sm:$0xf]
      %v1602 = vld [vmem:[%s1591 + $0x28] sm:$0xf]
      %v1603 = vld [vmem:[%s1591 + $0x2c] sm:$0xf]
      %v1604 = vld [vmem:[%s1591 + $0x30] sm:$0xf]
      %v1605 = vld [vmem:[%s1591 + $0x34] sm:$0xf]
      %v1606 = vld [vmem:[%s1591 + $0x38] sm:$0xf]
      %v1607 = vld [vmem:[%s1591 + $0x3c] sm:$0xf]
      %v1624 = vunpack.c.l.b16 %v1592
      %v1625 = vunpack.c.l.b16 %v1593
      %v1626 = vunpack.c.l.b16 %v1594
      %v1627 = vunpack.c.l.b16 %v1595
      %v1628 = vunpack.c.l.b16 %v1596
      %v1629 = vunpack.c.l.b16 %v1597
      %v1630 = vunpack.c.l.b16 %v1598
      %v1631 = vunpack.c.l.b16 %v1599
      %v1632 = vunpack.c.l.b16 %v1600
      %v1633 = vunpack.c.l.b16 %v1601
      %v1634 = vunpack.c.l.b16 %v1602
      %v1635 = vunpack.c.l.b16 %v1603
      %v1636 = vunpack.c.l.b16 %v1604
      %v1637 = vunpack.c.l.b16 %v1605
      %v1638 = vunpack.c.l.b16 %v1606
      %v1639 = vunpack.c.l.b16 %v1607
      %v1640 = vpack.c.b16 %v1625, %v1624
      %v1641 = vpack.c.b16 %v1627, %v1626
      %v1642 = vpack.c.b16 %v1629, %v1628
      %v1643 = vpack.c.b16 %v1631, %v1630
      %v1644 = vpack.c.b16 %v1633, %v1632
      %v1645 = vpack.c.b16 %v1635, %v1634
      %v1646 = vpack.c.b16 %v1637, %v1636
      %v1647 = vpack.c.b16 %v1639, %v1638
      %1656 = vmatprep.subr.bf16.mxu0 0
      %1657 = vmatpush1.bf16.msra.mxu0 %v1640
      %1658 = vmatprep.subr.bf16.mxu0 0
      %1659 = vmatpush1.bf16.msra.mxu0 %v1641
      %1660 = vmatprep.subr.bf16.mxu0 0
      %1661 = vmatpush1.bf16.msra.mxu0 %v1642
      %1662 = vmatprep.subr.bf16.mxu0 0
      %1663 = vmatpush1.bf16.msra.mxu0 %v1643
      %1664 = vmatprep.subr.bf16.mxu0 0
      %1665 = vmatpush1.bf16.msra.mxu0 %v1644
      %1666 = vmatprep.subr.bf16.mxu0 0
      %1667 = vmatpush1.bf16.msra.mxu0 %v1645
      %1668 = vmatprep.subr.bf16.mxu0 0
      %1669 = vmatpush1.bf16.msra.mxu0 %v1646
      %1670 = vmatprep.subr.bf16.mxu0 0
      %1671 = vmatpush1.bf16.msra.mxu0 %v1647
      %1672 = vmatprep.subr.bf16.mxu0 0
      %1673 = vmatpush1.bf16.msra.mxu0 0
      %1674 = vmatprep.subr.bf16.mxu0 0
      %1675 = vmatpush1.bf16.msra.mxu0 0
      %1676 = vmatprep.subr.bf16.mxu0 0
      %1677 = vmatpush1.bf16.msra.mxu0 0
      %1678 = vmatprep.subr.bf16.mxu0 0
      %1679 = vmatpush1.bf16.msra.mxu0 0
      %1680 = vmatprep.subr.bf16.mxu0 0
      %1681 = vmatpush1.bf16.msra.mxu0 0
      %1682 = vmatprep.subr.bf16.mxu0 0
      %1683 = vmatpush1.bf16.msra.mxu0 0
      %1684 = vmatprep.subr.bf16.mxu0 0
      %1685 = vmatpush1.bf16.msra.mxu0 0
      %1686 = vmatprep.subr.bf16.mxu0 0
      %1687 = vmatpush1.bf16.msra.mxu0 0
      %1688 = vmatprep.mubr.bf16.mxu0 0
      %1689 = vmatmul.mubr.bf16.gmra.mrb[0].mxu0 %v1587
      %v1690 = vpop.f32.mrb[0].mxu0
      %v1691 = vadd.f32 0.0, %v1690
      %v1692 = vpop.f32.mrb[0].mxu0
      %v1693 = vpop.f32.mrb[0].mxu0
      %v1694 = vadd.f32 0.0, %v1693
      %v1695 = vpop.f32.mrb[0].mxu0
      %1696 = vmatprep.mubr.bf16.mxu0 0
      %1697 = vmatmul.mubr.bf16.gmra.mrb[0].mxu0 %v1588
      %v1698 = vpop.f32.mrb[0].mxu0
      %v1699 = vadd.f32 0.0, %v1698
      %v1700 = vpop.f32.mrb[0].mxu0
      %v1701 = vpop.f32.mrb[0].mxu0
      %v1702 = vadd.f32 0.0, %v1701
      %v1703 = vpop.f32.mrb[0].mxu0
      %1704 = vmatprep.mubr.bf16.mxu0 0
      %1705 = vmatmul.mubr.bf16.gmra.mrb[0].mxu0 %v1589
      %v1706 = vpop.f32.mrb[0].mxu0
      %v1707 = vadd.f32 0.0, %v1706
      %v1708 = vpop.f32.mrb[0].mxu0
      %v1709 = vpop.f32.mrb[0].mxu0
      %v1710 = vadd.f32 0.0, %v1709
      %v1711 = vpop.f32.mrb[0].mxu0
      %1712 = vmatprep.mubr.bf16.mxu0 0
      %1713 = vmatmul.mubr.bf16.gmra.mrb[0].mxu0 %v1590
      %v1714 = vpop.f32.mrb[0].mxu0
      %v1715 = vadd.f32 0.0, %v1714
      %v1716 = vpop.f32.mrb[0].mxu0
      %v1717 = vpop.f32.mrb[0].mxu0
      %v1718 = vadd.f32 0.0, %v1717
      %v1719 = vpop.f32.mrb[0].mxu0
      %1720 = vdwg.mxu0
      %v1721 = vadd.f32 %v1499, %v1691
      %v1722 = vadd.f32 %v1500, %v1694
      %v1723 = vadd.f32 %v1501, %v1699
      %v1724 = vadd.f32 %v1502, %v1702
      %v1725 = vadd.f32 %v1503, %v1707
      %v1726 = vadd.f32 %v1504, %v1710
      %v1727 = vadd.f32 %v1505, %v1715
      %v1728 = vadd.f32 %v1506, %v1718
      %v1729 = vld [vmem:[%s1348] sm:$0xe]
      %v1730 = vld [vmem:[%s1348 + $0x8] sm:$0xe]
      %v1731 = vld [vmem:[%s1348 + $0x10] sm:$0xe]
      %v1732 = vld [vmem:[%s1348 + $0x18] sm:$0xe]
      %v1733 = vld [vmem:[%s1348 + $0x20] sm:$0xe]
      %v1734 = vld [vmem:[%s1348 + $0x28] sm:$0xe]
      %v1735 = vld [vmem:[%s1348 + $0x30] sm:$0xe]
      %v1736 = vld [vmem:[%s1348 + $0x38] sm:$0xe]
      %v1737 = vunpack.c.l.bf16 %v1729
      %v1738 = vunpack.c.l.bf16 %v1730
      %v1739 = vunpack.c.l.bf16 %v1731
      %v1740 = vunpack.c.l.bf16 %v1732
      %v1741 = vunpack.c.l.bf16 %v1733
      %v1742 = vunpack.c.l.bf16 %v1734
      %v1743 = vunpack.c.l.bf16 %v1735
      %v1744 = vunpack.c.l.bf16 %v1736
      %v1753 = vrot.slane %v1737, 2
      %v1754 = vrot.slane %v1524, 2
      %v1755 = vsel %vm588, %v1753, %v1754
      %v1756 = vrot.slane %v1738, 2
      %v1757 = vrot.slane %v1526, 2
      %v1758 = vsel %vm588, %v1756, %v1757
      %v1759 = vrot.slane %v1739, 2
      %v1760 = vrot.slane %v1528, 2
      %v1761 = vsel %vm588, %v1759, %v1760
      %v1762 = vrot.slane %v1740, 2
      %v1763 = vrot.slane %v1530, 2
      %v1764 = vsel %vm588, %v1762, %v1763
      %v1765 = vrot.slane %v1741, 2
      %v1766 = vrot.slane %v1532, 2
      %v1767 = vsel %vm588, %v1765, %v1766
      %v1768 = vrot.slane %v1742, 2
      %v1769 = vrot.slane %v1534, 2
      %v1770 = vsel %vm588, %v1768, %v1769
      %v1771 = vrot.slane %v1743, 2
      %v1772 = vrot.slane %v1536, 2
      %v1773 = vsel %vm588, %v1771, %v1772
      %v1774 = vrot.slane %v1744, 2
      %v1775 = vrot.slane %v1538, 2
      %v1776 = vsel %vm588, %v1774, %v1775
      %v1785 = vpack.c.bf16 %v1758, %v1755
      %v1786 = vpack.c.bf16 %v1764, %v1761
      %v1787 = vpack.c.bf16 %v1770, %v1767
      %v1788 = vpack.c.bf16 %v1776, %v1773
      %s1789 = scalar_lea.vmem %s1, 512
      %v1790 = vld [vmem:[%s1789] sm:$0xf]
      %v1791 = vld [vmem:[%s1789 + $0x4] sm:$0xf]
      %v1792 = vld [vmem:[%s1789 + $0x8] sm:$0xf]
      %v1793 = vld [vmem:[%s1789 + $0xc] sm:$0xf]
      %v1794 = vld [vmem:[%s1789 + $0x10] sm:$0xf]
      %v1795 = vld [vmem:[%s1789 + $0x14] sm:$0xf]
      %v1796 = vld [vmem:[%s1789 + $0x18] sm:$0xf]
      %v1797 = vld [vmem:[%s1789 + $0x1c] sm:$0xf]
      %v1798 = vld [vmem:[%s1789 + $0x20] sm:$0xf]
      %v1799 = vld [vmem:[%s1789 + $0x24] sm:$0xf]
      %v1800 = vld [vmem:[%s1789 + $0x28] sm:$0xf]
      %v1801 = vld [vmem:[%s1789 + $0x2c] sm:$0xf]
      %v1802 = vld [vmem:[%s1789 + $0x30] sm:$0xf]
      %v1803 = vld [vmem:[%s1789 + $0x34] sm:$0xf]
      %v1804 = vld [vmem:[%s1789 + $0x38] sm:$0xf]
      %v1805 = vld [vmem:[%s1789 + $0x3c] sm:$0xf]
      %v1822 = vunpack.c.l.b16 %v1790
      %v1823 = vunpack.c.l.b16 %v1791
      %v1824 = vunpack.c.l.b16 %v1792
      %v1825 = vunpack.c.l.b16 %v1793
      %v1826 = vunpack.c.l.b16 %v1794
      %v1827 = vunpack.c.l.b16 %v1795
      %v1828 = vunpack.c.l.b16 %v1796
      %v1829 = vunpack.c.l.b16 %v1797
      %v1830 = vunpack.c.l.b16 %v1798
      %v1831 = vunpack.c.l.b16 %v1799
      %v1832 = vunpack.c.l.b16 %v1800
      %v1833 = vunpack.c.l.b16 %v1801
      %v1834 = vunpack.c.l.b16 %v1802
      %v1835 = vunpack.c.l.b16 %v1803
      %v1836 = vunpack.c.l.b16 %v1804
      %v1837 = vunpack.c.l.b16 %v1805
      %v1838 = vpack.c.b16 %v1823, %v1822
      %v1839 = vpack.c.b16 %v1825, %v1824
      %v1840 = vpack.c.b16 %v1827, %v1826
      %v1841 = vpack.c.b16 %v1829, %v1828
      %v1842 = vpack.c.b16 %v1831, %v1830
      %v1843 = vpack.c.b16 %v1833, %v1832
      %v1844 = vpack.c.b16 %v1835, %v1834
      %v1845 = vpack.c.b16 %v1837, %v1836
      %1854 = vmatprep.subr.bf16.mxu0 0
      %1855 = vmatpush1.bf16.msra.mxu0 %v1838
      %1856 = vmatprep.subr.bf16.mxu0 0
      %1857 = vmatpush1.bf16.msra.mxu0 %v1839
      %1858 = vmatprep.subr.bf16.mxu0 0
      %1859 = vmatpush1.bf16.msra.mxu0 %v1840
      %1860 = vmatprep.subr.bf16.mxu0 0
      %1861 = vmatpush1.bf16.msra.mxu0 %v1841
      %1862 = vmatprep.subr.bf16.mxu0 0
      %1863 = vmatpush1.bf16.msra.mxu0 %v1842
      %1864 = vmatprep.subr.bf16.mxu0 0
      %1865 = vmatpush1.bf16.msra.mxu0 %v1843
      %1866 = vmatprep.subr.bf16.mxu0 0
      %1867 = vmatpush1.bf16.msra.mxu0 %v1844
      %1868 = vmatprep.subr.bf16.mxu0 0
      %1869 = vmatpush1.bf16.msra.mxu0 %v1845
      %1870 = vmatprep.subr.bf16.mxu0 0
      %1871 = vmatpush1.bf16.msra.mxu0 0
      %1872 = vmatprep.subr.bf16.mxu0 0
      %1873 = vmatpush1.bf16.msra.mxu0 0
      %1874 = vmatprep.subr.bf16.mxu0 0
      %1875 = vmatpush1.bf16.msra.mxu0 0
      %1876 = vmatprep.subr.bf16.mxu0 0
      %1877 = vmatpush1.bf16.msra.mxu0 0
      %1878 = vmatprep.subr.bf16.mxu0 0
      %1879 = vmatpush1.bf16.msra.mxu0 0
      %1880 = vmatprep.subr.bf16.mxu0 0
      %1881 = vmatpush1.bf16.msra.mxu0 0
      %1882 = vmatprep.subr.bf16.mxu0 0
      %1883 = vmatpush1.bf16.msra.mxu0 0
      %1884 = vmatprep.subr.bf16.mxu0 0
      %1885 = vmatpush1.bf16.msra.mxu0 0
      %1886 = vmatprep.mubr.bf16.mxu0 0
      %1887 = vmatmul.mubr.bf16.gmra.mrb[0].mxu0 %v1785
      %v1888 = vpop.f32.mrb[0].mxu0
      %v1889 = vadd.f32 0.0, %v1888
      %v1890 = vpop.f32.mrb[0].mxu0
      %v1891 = vpop.f32.mrb[0].mxu0
      %v1892 = vadd.f32 0.0, %v1891
      %v1893 = vpop.f32.mrb[0].mxu0
      %1894 = vmatprep.mubr.bf16.mxu0 0
      %1895 = vmatmul.mubr.bf16.gmra.mrb[0].mxu0 %v1786
      %v1896 = vpop.f32.mrb[0].mxu0
      %v1897 = vadd.f32 0.0, %v1896
      %v1898 = vpop.f32.mrb[0].mxu0
      %v1899 = vpop.f32.mrb[0].mxu0
      %v1900 = vadd.f32 0.0, %v1899
      %v1901 = vpop.f32.mrb[0].mxu0
      %1902 = vmatprep.mubr.bf16.mxu0 0
      %1903 = vmatmul.mubr.bf16.gmra.mrb[0].mxu0 %v1787
      %v1904 = vpop.f32.mrb[0].mxu0
      %v1905 = vadd.f32 0.0, %v1904
      %v1906 = vpop.f32.mrb[0].mxu0
      %v1907 = vpop.f32.mrb[0].mxu0
      %v1908 = vadd.f32 0.0, %v1907
      %v1909 = vpop.f32.mrb[0].mxu0
      %1910 = vmatprep.mubr.bf16.mxu0 0
      %1911 = vmatmul.mubr.bf16.gmra.mrb[0].mxu0 %v1788
      %v1912 = vpop.f32.mrb[0].mxu0
      %v1913 = vadd.f32 0.0, %v1912
      %v1914 = vpop.f32.mrb[0].mxu0
      %v1915 = vpop.f32.mrb[0].mxu0
      %v1916 = vadd.f32 0.0, %v1915
      %v1917 = vpop.f32.mrb[0].mxu0
      %1918 = vdwg.mxu0
      %v1919 = vadd.f32 %v1721, %v1889
      %v1920 = vadd.f32 %v1722, %v1892
      %v1921 = vadd.f32 %v1723, %v1897
      %v1922 = vadd.f32 %v1724, %v1900
      %v1923 = vadd.f32 %v1725, %v1905
      %v1924 = vadd.f32 %v1726, %v1908
      %v1925 = vadd.f32 %v1727, %v1913
      %v1926 = vadd.f32 %v1728, %v1916
      %1927 = vst [vmem:[%s208] sm:$0xff] %v1919
      %1928 = vst [vmem:[%s208 + $0x8] sm:$0xff] %v1920
      %1929 = vst [vmem:[%s208 + $0x10] sm:$0xff] %v1921
      %1930 = vst [vmem:[%s208 + $0x18] sm:$0xff] %v1922
      %1931 = vst [vmem:[%s208 + $0x20] sm:$0xff] %v1923
      %1932 = vst [vmem:[%s208 + $0x28] sm:$0xff] %v1924
      %1933 = vst [vmem:[%s208 + $0x30] sm:$0xff] %v1925
      %1934 = vst [vmem:[%s208 + $0x38] sm:$0xff] %v1926
      %p1935 = scmp.eq.s32.totalorder %s20, 0
      %p1936 = scmp.eq.s32.totalorder %s21, 0
      %p1937 = pnand %p1935, %p1936
      %p1938 = pneg %p1937
      // Predicated region
      $region29: #{residual_block_forward.14} parent=27 // pred_check
        _
      $region30: #{residual_block_forward.14} parent=27 // pred_check_branch
        %1940 = sbr.rel (%p1937) target = $region32
      $region31: #{residual_block_forward.14} parent=27 // pred_region
        %1941 = vst [vmem:[#allocation2] sm:$0x1] 0.0
        %1942 = vst [vmem:[#allocation3] sm:$0x1] 0.0
      $region32: #{residual_block_forward.14} parent=27 // pred_fallthru
        _
      %v1943 = vld [vmem:[#allocation2] sm:$0x1]
      %v1944 = vadd.f32 %v1919, %v1920
      %v1945 = vadd.f32 %v1944, %v1921
      %v1946 = vadd.f32 %v1945, %v1922
      %v1947 = vadd.f32 %v1946, %v1923
      %v1948 = vadd.f32 %v1947, %v1924
      %v1949 = vadd.f32 %v1948, %v1925
      %v1950 = vadd.f32 %v1949, %v1926
      %v1951 = vrot.slane %v1950, 4
      %v1952 = vadd.f32 %v1950, %v1951
      %v1953 = vrot.slane %v1952, 2
      %v1954 = vadd.f32 %v1952, %v1953
      %v1955 = vrot.slane %v1954, 1
      %v1956 = vadd.f32 %v1954, %v1955
      %v1957 = vadd.f32 %v1943, %v1956
      %1958 = vst [vmem:[#allocation2] sm:$0x1] %v1957
      %v1959 = vld [vmem:[#allocation3] sm:$0x1]
      %v1960 = vmul.f32 %v1919, %v1919
      %v1961 = vmul.f32 %v1920, %v1920
      %v1962 = vmul.f32 %v1921, %v1921
      %v1963 = vmul.f32 %v1922, %v1922
      %v1964 = vmul.f32 %v1923, %v1923
      %v1965 = vmul.f32 %v1924, %v1924
      %v1966 = vmul.f32 %v1925, %v1925
      %v1967 = vmul.f32 %v1926, %v1926
      %v1968 = vadd.f32 %v1960, %v1961
      %v1969 = vadd.f32 %v1968, %v1962
      %v1970 = vadd.f32 %v1969, %v1963
      %v1971 = vadd.f32 %v1970, %v1964
      %v1972 = vadd.f32 %v1971, %v1965
      %v1973 = vadd.f32 %v1972, %v1966
      %v1974 = vadd.f32 %v1973, %v1967
      %v1975 = vrot.slane %v1974, 4
      %v1976 = vadd.f32 %v1974, %v1975
      %v1977 = vrot.slane %v1976, 2
      %v1978 = vadd.f32 %v1976, %v1977
      %v1979 = vrot.slane %v1978, 1
      %v1980 = vadd.f32 %v1978, %v1979
      %v1981 = vadd.f32 %v1959, %v1980
      %1982 = vst [vmem:[#allocation3] sm:$0x1] %v1981
      %v1983 = vld [vmem:[#allocation2] sm:$0x1]
      %1984 = vst [vmem:[%s3] sm:$0x1] %v1983
      %v1985 = vld [vmem:[#allocation3] sm:$0x1]
      %1986 = vst [vmem:[%s4] sm:$0x1] %v1985
      %s1987 = sadd.s32 %s20, %s21
      %s1988 = smul.u32 8, %s1987
      %p1989 = scmp.lt.s32.totalorder %s1988, 15
      %s1990 = scalar_select %p1989, %s1988, 15
      %s1991 = smul.addr %s1990, 8
      %s1992 = scalar_lea.vmem %s2, %s1991
      // Predicated region
      $region33: #{residual_block_forward.14} parent=27 // pred_check
        %p1993 = pneg %p95
      $region34: #{residual_block_forward.14} parent=27 // pred_check_branch
        %1995 = sbr.rel (%p1993) target = $region36
      $region35: #{residual_block_forward.14} parent=27 // pred_region
        %s1996 = sadd.s32 %s20, %s21
        %s1997 = smul.u32 8, %s1996
      $region36: #{residual_block_forward.14} parent=27 // pred_fallthru
        _
      // Predicated region
      $region37: #{residual_block_forward.14} parent=27 // pred_check
        %p1998 = pneg %p116
      $region38: #{residual_block_forward.14} parent=27 // pred_check_branch
        %2000 = sbr.rel (%p1998) target = $region40
      $region39: #{residual_block_forward.14} parent=27 // pred_region
        _
      $region40: #{residual_block_forward.14} parent=27 // pred_fallthru
        _
      // Predicated region
      $region41: #{residual_block_forward.14} parent=27 // pred_check
        %p2001 = pneg %p137
      $region42: #{residual_block_forward.14} parent=27 // pred_check_branch
        %2003 = sbr.rel (%p2001) target = $region44
      $region43: #{residual_block_forward.14} parent=27 // pred_region
        _
      $region44: #{residual_block_forward.14} parent=27 // pred_fallthru
        _
      // Predicated region
      $region45: #{residual_block_forward.14} parent=27 // pred_check
        %p2004 = pneg %p116
      $region46: #{residual_block_forward.14} parent=27 // pred_check_branch
        %2006 = sbr.rel (%p2004) target = $region48
      $region47: #{residual_block_forward.14} parent=27 // pred_region
        _
      $region48: #{residual_block_forward.14} parent=27 // pred_fallthru
        _
      // Predicated region
      $region49: #{residual_block_forward.14} parent=27 // pred_check
        %p2007 = pneg %p137
      $region50: #{residual_block_forward.14} parent=27 // pred_check_branch
        %2009 = sbr.rel (%p2007) target = $region52
      $region51: #{residual_block_forward.14} parent=27 // pred_region
        _
      $region52: #{residual_block_forward.14} parent=27 // pred_fallthru
        _
    $region28: #{residual_block_forward.14} parent=5 // pred_fallthru
      _
    %p2010 = scmp.le.s32.totalorder 2, %s11
    // Predicated region
    $region53: #{residual_block_forward.14} parent=5 // pred_check
      %p2011 = pneg %p2010
    $region54: #{residual_block_forward.14} parent=5 // pred_check_branch
      %2013 = sbr.rel (%p2011) target = $region56
    $region55: #{residual_block_forward.14} parent=5 // pred_region
      %s2014 = ssub.s32 %s11, 2
      // Predicated region
      $region57: #{residual_block_forward.14} parent=55 // pred_check
        %p2015 = pneg %p101
      $region58: #{residual_block_forward.14} parent=55 // pred_check_branch
        %2017 = sbr.rel (%p2015) target = $region60
      $region59: #{residual_block_forward.14} parent=55 // pred_region
        %s2018 = sadd.s32 %s22, %s23
        %s2019 = smul.u32 8, %s2018
        %p2020 = scmp.lt.s32.totalorder %s2019, 15
        %s2021 = scalar_select %p2020, %s2019, 15
        %s2022 = smul.addr %s2021, 8
        %s2023 = scalar_lea.vmem %s2, %s2022
      $region60: #{residual_block_forward.14} parent=55 // pred_fallthru
        _
    $region56: #{residual_block_forward.14} parent=5 // pred_fallthru
      _
  $region6: #{residual_block_forward.14} parent=0 // loop_footer
    %s15 = sadd.s32 1, %s11
  $region7: #{residual_block_forward.14} parent=0 // loop_footer_branch
    %10 = sbr.rel target = $region3
  $region8: #{residual_block_forward.14} parent=0 // loop_exit
    _

</llo_original>
